<compile_context>
chip_gen: v6e
topology: v6e:2x2x1
jax: 0.10.0
libtpu: 0.0.40
codegen_flags: <defaults>
</compile_context>

<pallas_src>
import jax
import jax.numpy as jnp
from jax.experimental import pallas as pl
from jax.experimental.pallas import tpu as pltpu

LANES = 128


# ---------------------------------------------------------------------------
# Fused forward kernel (one grid step == one image)
# ---------------------------------------------------------------------------
def _fused_mnist_kernel(m1_ref, w1_ref, b1_ref, w2_ref, b2_ref,
                        wf1_ref, bf1_ref, wf2_ref, bf2_ref, o_ref):
    f32 = jnp.float32

    # ---- stage 1: conv1 as 4 pooling-phase matmuls; max over phases == 2x2 pool
    acc = None
    for ph in range(4):
        y = jnp.dot(m1_ref[0, ph], w1_ref[...],
                    preferred_element_type=f32)          # (144, 128)
        acc = y if acc is None else jnp.maximum(acc, y)
    p1 = jnp.maximum(acc + b1_ref[...], 0.0)             # pooled1: rows=h*12+w, lanes=C1(pad)
    # pad 8 zero rows so every conv2 window slice stays in-bounds; keep 16 Cin lanes
    p1 = jnp.concatenate([p1, jnp.zeros((8, LANES), f32)], axis=0)[:, :16]   # (152, 16)

    # ---- stage 2: conv2 via one in-kernel im2col matmul, K = 25 taps * 16 (padded Cin)
    # piece(ki,kj)[y*12+z, ci] = pooled1[y+ki, z+kj, ci]  (columns z>=8 are garbage,
    # they are never read by pool2/fc below)
    pieces = [p1[ki * 12 + kj: ki * 12 + kj + 96, :]
              for ki in range(5) for kj in range(5)]      # 25 x (96, 16)
    patch = jnp.concatenate(pieces, axis=1)               # (96, 400)
    c2 = jnp.dot(patch, w2_ref[...], preferred_element_type=f32)   # (96, 128)
    c2 = jnp.maximum(c2 + b2_ref[...], 0.0)               # rows=y*12+z (z<8 valid), lanes=C2

    # ---- 2x2 max-pool on conv2 + flatten (lane order (s*4+t)*16+co; fc1 weight
    # is pre-permuted at init to match torch's channel-major .view(-1, 256))
    chunks = []
    for s in range(4):
        for t in range(4):
            r0 = (2 * s) * 12 + 2 * t
            r1 = (2 * s + 1) * 12 + 2 * t
            m = jnp.maximum(
                jnp.maximum(c2[r0:r0 + 1, :], c2[r0 + 1:r0 + 2, :]),
                jnp.maximum(c2[r1:r1 + 1, :], c2[r1 + 1:r1 + 2, :]))
            chunks.append(m[:, :16])
    flat = jnp.concatenate(chunks, axis=1)                 # (1, 256)

    # ---- fc1 + relu, fc2 + relu
    h1 = jnp.maximum(
        jnp.dot(flat, wf1_ref[...], preferred_element_type=f32) + bf1_ref[...], 0.0)
    out = jnp.maximum(
        jnp.dot(h1, wf2_ref[...], preferred_element_type=f32) + bf2_ref[...], 0.0)  # (1,128)

    o_ref[...] = jnp.broadcast_to(out, (1, 8, LANES)).astype(o_ref.dtype)


# ---------------------------------------------------------------------------
# Wrapper-side input prep: conv1 im2col in 4 max-pool phases (raw input only,
# one small slicing fusion; everything downstream stays inside the kernel).
# ---------------------------------------------------------------------------
def _conv1_pool_patches(x):
    # x: (B,1,28,28) -> (B,4,144,32)
    # m1[b, di*2+dj, h*12+w, ki*5+kj] = x[b,0, 2h+di+ki, 2w+dj+kj],  K padded 25->32
    B = x.shape[0]
    xs = x[:, 0]
    phases = []
    for di in range(2):
        for dj in range(2):
            cols = [xs[:, di + ki: di + ki + 24: 2,
                       dj + kj: dj + kj + 24: 2].reshape(B, 144)
                    for ki in range(5) for kj in range(5)]
            phases.append(jnp.stack(cols, axis=-1))        # (B,144,25)
    m1 = jnp.stack(phases, axis=1)                         # (B,4,144,25)
    return jnp.pad(m1, ((0, 0), (0, 0), (0, 0), (0, 7)))   # (B,4,144,32)


# ---------------------------------------------------------------------------
# Parameters: torch-layout init, then one-time padding/permutation to the
# lane-dense kernel layouts (all N padded to 128, conv K padded 25->32 / Cin->16).
# ---------------------------------------------------------------------------
def init_params(key):
    ks = jax.random.split(key, 8)

    def unif(k, shape, fan_in):
        bound = 1.0 / jnp.sqrt(float(fan_in))
        return jax.random.uniform(k, shape, jnp.float32, -bound, bound)

    return {
        "conv1_w": unif(ks[0], (8, 1, 5, 5), 1 * 5 * 5),
        "conv1_b": unif(ks[1], (8,), 1 * 5 * 5),
        "conv2_w": unif(ks[2], (16, 8, 5, 5), 8 * 5 * 5),
        "conv2_b": unif(ks[3], (16,), 8 * 5 * 5),
        "fc1_w":   unif(ks[4], (120, 256), 256),
        "fc1_b":   unif(ks[5], (120,), 256),
        "fc2_w":   unif(ks[6], (10, 120), 120),
        "fc2_b":   unif(ks[7], (10,), 120),
    }


def prepare_params(params):
    f32 = jnp.float32

    def pad2(a, rows, cols):
        return jnp.pad(a, ((0, rows - a.shape[0]), (0, cols - a.shape[1]))).astype(f32)

    def bias_row(b):
        return jnp.pad(b, (0, LANES - b.shape[0])).reshape(1, LANES).astype(f32)

    # conv1: (25->32, Cout 8->128); rows ordered ki*5+kj
    w1 = params["conv1_w"].reshape(8, 25).T                       # (25, 8)
    # conv2: rows ordered (ki*5+kj)*16 + ci (Cin 8->16), cols Cout 16->128
    w2 = jnp.transpose(params["conv2_w"], (2, 3, 1, 0))           # (5,5,8,16)
    w2 = jnp.pad(w2, ((0, 0), (0, 0), (0, 8), (0, 0))).reshape(400, 16)
    # fc1: rows ordered (s*4+t)*16 + co (matches kernel flatten), cols 120->128
    wf1 = params["fc1_w"].reshape(120, 16, 4, 4)
    wf1 = jnp.transpose(wf1, (2, 3, 1, 0)).reshape(256, 120)
    # fc2: rows 120->128, cols 10->128
    wf2 = params["fc2_w"].T                                       # (120, 10)

    return {
        "w1": pad2(w1, 32, LANES),   "b1": bias_row(params["conv1_b"]),
        "w2": pad2(w2, 400, LANES),  "b2": bias_row(params["conv2_b"]),
        "wf1": pad2(wf1, 256, LANES), "bf1": bias_row(params["fc1_b"]),
        "wf2": pad2(wf2, 128, LANES), "bf2": bias_row(params["fc2_b"]),
    }


# ---------------------------------------------------------------------------
# Forward pass (mirrors MnistNet.forward) — single pallas_call
# ---------------------------------------------------------------------------
def mnist_net_forward(kparams, x):
    B = x.shape[0]
    m1 = _conv1_pool_patches(x)                                   # (B,4,144,32)
    const2 = lambda b: (0, 0)

    out = pl.pallas_call(
        _fused_mnist_kernel,
        out_shape=jax.ShapeDtypeStruct((B, 8, LANES), jnp.float32),
        grid=(B,),
        in_specs=[
            pl.BlockSpec((1, 4, 144, 32), lambda b: (b, 0, 0, 0)),  # per-image patches
            pl.BlockSpec((32, LANES), const2),    # conv1 weight (resident)
            pl.BlockSpec((1, LANES), const2),     # conv1 bias
            pl.BlockSpec((400, LANES), const2),   # conv2 weight (resident)
            pl.BlockSpec((1, LANES), const2),     # conv2 bias
            pl.BlockSpec((256, LANES), const2),   # fc1 weight (resident)
            pl.BlockSpec((1, LANES), const2),     # fc1 bias
            pl.BlockSpec((128, LANES), const2),   # fc2 weight (resident)
            pl.BlockSpec((1, LANES), const2),     # fc2 bias
        ],
        out_specs=pl.BlockSpec((1, 8, LANES), lambda b: (b, 0, 0)),
        compiler_params=pltpu.CompilerParams(
            dimension_semantics=("parallel",)),   # shards batch across TCs on v7x
    )(m1, kparams["w1"], kparams["b1"], kparams["w2"], kparams["b2"],
      kparams["wf1"], kparams["bf1"], kparams["wf2"], kparams["bf2"])

    return out[:, 0, :10]


if __name__ == "__main__":
    key = jax.random.PRNGKey(0)
    k_param, k_x = jax.random.split(key)
    params = init_params(k_param)
    kparams = prepare_params(params)   # one-time pad/permute to kernel layouts

    # MNIST-shaped input (28x28 required by fc1's 16*4*4 input size)
    x = jax.random.normal(k_x, (2, 1, 28, 28), dtype=jnp.float32)

    out = jax.jit(mnist_net_forward)(kparams, x)
    out = jax.block_until_ready(out)
    assert out.shape == (2, 10) and out.dtype == jnp.float32
    print("KERNEL_OK")
</pallas_src>

<mosaic_0001>
module attributes {stable_mosaic.version = 11 : i64} {
  func.func @_fused_mnist_kernel(%arg0: i32, %arg1: memref<1x4x144x32xf32, #tpu.memory_space<vmem>>, %arg2: memref<32x128xf32, #tpu.memory_space<vmem>>, %arg3: memref<1x128xf32, #tpu.memory_space<vmem>>, %arg4: memref<400x128xf32, #tpu.memory_space<vmem>>, %arg5: memref<1x128xf32, #tpu.memory_space<vmem>>, %arg6: memref<256x128xf32, #tpu.memory_space<vmem>>, %arg7: memref<1x128xf32, #tpu.memory_space<vmem>>, %arg8: memref<128x128xf32, #tpu.memory_space<vmem>>, %arg9: memref<1x128xf32, #tpu.memory_space<vmem>>, %arg10: memref<1x8x128xf32, #tpu.memory_space<vmem>>) attributes {dimension_semantics = [#tpu.dimension_semantics<parallel>], iteration_bounds = array<i64: 2>, scalar_prefetch = 0 : i64, scratch_operands = 0 : i64, tpu.core_type = #tpu.core_type<tc>, window_params = [{transform_indices = @transform_0, window_bounds = array<i64: 1, 4, 144, 32>}, {pipeline_mode = #tpu.pipeline_mode<synchronous>, transform_indices = @transform_1, window_bounds = array<i64: 32, 128>}, {pipeline_mode = #tpu.pipeline_mode<synchronous>, transform_indices = @transform_2, window_bounds = array<i64: 1, 128>}, {pipeline_mode = #tpu.pipeline_mode<synchronous>, transform_indices = @transform_3, window_bounds = array<i64: 400, 128>}, {pipeline_mode = #tpu.pipeline_mode<synchronous>, transform_indices = @transform_4, window_bounds = array<i64: 1, 128>}, {pipeline_mode = #tpu.pipeline_mode<synchronous>, transform_indices = @transform_5, window_bounds = array<i64: 256, 128>}, {pipeline_mode = #tpu.pipeline_mode<synchronous>, transform_indices = @transform_6, window_bounds = array<i64: 1, 128>}, {pipeline_mode = #tpu.pipeline_mode<synchronous>, transform_indices = @transform_7, window_bounds = array<i64: 128, 128>}, {pipeline_mode = #tpu.pipeline_mode<synchronous>, transform_indices = @transform_8, window_bounds = array<i64: 1, 128>}, {transform_indices = @transform_9, window_bounds = array<i64: 1, 8, 128>}]} {
    %c0 = arith.constant 0 : index
    %c0_0 = arith.constant 0 : index
    %c0_1 = arith.constant 0 : index
    %c0_2 = arith.constant 0 : index
    %0 = vector.load %arg1[%c0, %c0_0, %c0_1, %c0_2] : memref<1x4x144x32xf32, #tpu.memory_space<vmem>>, vector<1x1x144x32xf32>
    %1 = vector.shape_cast %0 : vector<1x1x144x32xf32> to vector<144x32xf32>
    %c0_3 = arith.constant 0 : index
    %c0_4 = arith.constant 0 : index
    %2 = vector.load %arg2[%c0_3, %c0_4] : memref<32x128xf32, #tpu.memory_space<vmem>>, vector<32x128xf32>
    %cst = arith.constant dense<0.000000e+00> : vector<144x128xf32>
    %3 = tpu.matmul %1, %2, %cst {dimension_numbers = #tpu.dot_dimension_numbers<[1], [0], [0], [1], [0, 0, 1, 1], [], []>} : vector<144x32xf32>, vector<32x128xf32>, vector<144x128xf32> -> vector<144x128xf32>
    %c0_5 = arith.constant 0 : index
    %c1 = arith.constant 1 : index
    %c0_6 = arith.constant 0 : index
    %c0_7 = arith.constant 0 : index
    %4 = vector.load %arg1[%c0_5, %c1, %c0_6, %c0_7] : memref<1x4x144x32xf32, #tpu.memory_space<vmem>>, vector<1x1x144x32xf32>
    %5 = vector.shape_cast %4 : vector<1x1x144x32xf32> to vector<144x32xf32>
    %c0_8 = arith.constant 0 : index
    %c0_9 = arith.constant 0 : index
    %6 = vector.load %arg2[%c0_8, %c0_9] : memref<32x128xf32, #tpu.memory_space<vmem>>, vector<32x128xf32>
    %cst_10 = arith.constant dense<0.000000e+00> : vector<144x128xf32>
    %7 = tpu.matmul %5, %6, %cst_10 {dimension_numbers = #tpu.dot_dimension_numbers<[1], [0], [0], [1], [0, 0, 1, 1], [], []>} : vector<144x32xf32>, vector<32x128xf32>, vector<144x128xf32> -> vector<144x128xf32>
    %8 = arith.maximumf %3, %7 : vector<144x128xf32>
    %c0_11 = arith.constant 0 : index
    %c2 = arith.constant 2 : index
    %c0_12 = arith.constant 0 : index
    %c0_13 = arith.constant 0 : index
    %9 = vector.load %arg1[%c0_11, %c2, %c0_12, %c0_13] : memref<1x4x144x32xf32, #tpu.memory_space<vmem>>, vector<1x1x144x32xf32>
    %10 = vector.shape_cast %9 : vector<1x1x144x32xf32> to vector<144x32xf32>
    %c0_14 = arith.constant 0 : index
    %c0_15 = arith.constant 0 : index
    %11 = vector.load %arg2[%c0_14, %c0_15] : memref<32x128xf32, #tpu.memory_space<vmem>>, vector<32x128xf32>
    %cst_16 = arith.constant dense<0.000000e+00> : vector<144x128xf32>
    %12 = tpu.matmul %10, %11, %cst_16 {dimension_numbers = #tpu.dot_dimension_numbers<[1], [0], [0], [1], [0, 0, 1, 1], [], []>} : vector<144x32xf32>, vector<32x128xf32>, vector<144x128xf32> -> vector<144x128xf32>
    %13 = arith.maximumf %8, %12 : vector<144x128xf32>
    %c0_17 = arith.constant 0 : index
    %c3 = arith.constant 3 : index
    %c0_18 = arith.constant 0 : index
    %c0_19 = arith.constant 0 : index
    %14 = vector.load %arg1[%c0_17, %c3, %c0_18, %c0_19] : memref<1x4x144x32xf32, #tpu.memory_space<vmem>>, vector<1x1x144x32xf32>
    %15 = vector.shape_cast %14 : vector<1x1x144x32xf32> to vector<144x32xf32>
    %c0_20 = arith.constant 0 : index
    %c0_21 = arith.constant 0 : index
    %16 = vector.load %arg2[%c0_20, %c0_21] : memref<32x128xf32, #tpu.memory_space<vmem>>, vector<32x128xf32>
    %cst_22 = arith.constant dense<0.000000e+00> : vector<144x128xf32>
    %17 = tpu.matmul %15, %16, %cst_22 {dimension_numbers = #tpu.dot_dimension_numbers<[1], [0], [0], [1], [0, 0, 1, 1], [], []>} : vector<144x32xf32>, vector<32x128xf32>, vector<144x128xf32> -> vector<144x128xf32>
    %18 = arith.maximumf %13, %17 : vector<144x128xf32>
    %c0_23 = arith.constant 0 : index
    %c0_24 = arith.constant 0 : index
    %19 = vector.load %arg3[%c0_23, %c0_24] : memref<1x128xf32, #tpu.memory_space<vmem>>, vector<1x128xf32>
    %20 = vector.broadcast %19 : vector<1x128xf32> to vector<144x128xf32>
    %21 = arith.addf %18, %20 : vector<144x128xf32>
    %cst_25 = arith.constant 0.000000e+00 : f32
    %22 = vector.broadcast %cst_25 : f32 to vector<144x128xf32>
    %23 = arith.maximumf %21, %22 : vector<144x128xf32>
    %cst_26 = arith.constant 0.000000e+00 : f32
    %24 = vector.broadcast %cst_26 : f32 to vector<8x128xf32>
    %25 = tpu.concatenate %23, %24 in 0 : vector<144x128xf32>, vector<8x128xf32> -> vector<152x128xf32>
    %26 = vector.extract_strided_slice %25 {offsets = [0, 0], sizes = [152, 16], strides = [1, 1]} : vector<152x128xf32> to vector<152x16xf32>
    %27 = vector.extract_strided_slice %26 {offsets = [0, 0], sizes = [96, 16], strides = [1, 1]} : vector<152x16xf32> to vector<96x16xf32>
    %28 = vector.extract_strided_slice %26 {offsets = [1, 0], sizes = [96, 16], strides = [1, 1]} : vector<152x16xf32> to vector<96x16xf32>
    %29 = vector.extract_strided_slice %26 {offsets = [2, 0], sizes = [96, 16], strides = [1, 1]} : vector<152x16xf32> to vector<96x16xf32>
    %30 = vector.extract_strided_slice %26 {offsets = [3, 0], sizes = [96, 16], strides = [1, 1]} : vector<152x16xf32> to vector<96x16xf32>
    %31 = vector.extract_strided_slice %26 {offsets = [4, 0], sizes = [96, 16], strides = [1, 1]} : vector<152x16xf32> to vector<96x16xf32>
    %32 = vector.extract_strided_slice %26 {offsets = [12, 0], sizes = [96, 16], strides = [1, 1]} : vector<152x16xf32> to vector<96x16xf32>
    %33 = vector.extract_strided_slice %26 {offsets = [13, 0], sizes = [96, 16], strides = [1, 1]} : vector<152x16xf32> to vector<96x16xf32>
    %34 = vector.extract_strided_slice %26 {offsets = [14, 0], sizes = [96, 16], strides = [1, 1]} : vector<152x16xf32> to vector<96x16xf32>
    %35 = vector.extract_strided_slice %26 {offsets = [15, 0], sizes = [96, 16], strides = [1, 1]} : vector<152x16xf32> to vector<96x16xf32>
    %36 = vector.extract_strided_slice %26 {offsets = [16, 0], sizes = [96, 16], strides = [1, 1]} : vector<152x16xf32> to vector<96x16xf32>
    %37 = vector.extract_strided_slice %26 {offsets = [24, 0], sizes = [96, 16], strides = [1, 1]} : vector<152x16xf32> to vector<96x16xf32>
    %38 = vector.extract_strided_slice %26 {offsets = [25, 0], sizes = [96, 16], strides = [1, 1]} : vector<152x16xf32> to vector<96x16xf32>
    %39 = vector.extract_strided_slice %26 {offsets = [26, 0], sizes = [96, 16], strides = [1, 1]} : vector<152x16xf32> to vector<96x16xf32>
    %40 = vector.extract_strided_slice %26 {offsets = [27, 0], sizes = [96, 16], strides = [1, 1]} : vector<152x16xf32> to vector<96x16xf32>
    %41 = vector.extract_strided_slice %26 {offsets = [28, 0], sizes = [96, 16], strides = [1, 1]} : vector<152x16xf32> to vector<96x16xf32>
    %42 = vector.extract_strided_slice %26 {offsets = [36, 0], sizes = [96, 16], strides = [1, 1]} : vector<152x16xf32> to vector<96x16xf32>
    %43 = vector.extract_strided_slice %26 {offsets = [37, 0], sizes = [96, 16], strides = [1, 1]} : vector<152x16xf32> to vector<96x16xf32>
    %44 = vector.extract_strided_slice %26 {offsets = [38, 0], sizes = [96, 16], strides = [1, 1]} : vector<152x16xf32> to vector<96x16xf32>
    %45 = vector.extract_strided_slice %26 {offsets = [39, 0], sizes = [96, 16], strides = [1, 1]} : vector<152x16xf32> to vector<96x16xf32>
    %46 = vector.extract_strided_slice %26 {offsets = [40, 0], sizes = [96, 16], strides = [1, 1]} : vector<152x16xf32> to vector<96x16xf32>
    %47 = vector.extract_strided_slice %26 {offsets = [48, 0], sizes = [96, 16], strides = [1, 1]} : vector<152x16xf32> to vector<96x16xf32>
    %48 = vector.extract_strided_slice %26 {offsets = [49, 0], sizes = [96, 16], strides = [1, 1]} : vector<152x16xf32> to vector<96x16xf32>
    %49 = vector.extract_strided_slice %26 {offsets = [50, 0], sizes = [96, 16], strides = [1, 1]} : vector<152x16xf32> to vector<96x16xf32>
    %50 = vector.extract_strided_slice %26 {offsets = [51, 0], sizes = [96, 16], strides = [1, 1]} : vector<152x16xf32> to vector<96x16xf32>
    %51 = vector.extract_strided_slice %26 {offsets = [52, 0], sizes = [96, 16], strides = [1, 1]} : vector<152x16xf32> to vector<96x16xf32>
    %52 = tpu.concatenate %27, %28, %29, %30, %31, %32, %33, %34, %35, %36, %37, %38, %39, %40, %41, %42 in 1 : vector<96x16xf32>, vector<96x16xf32>, vector<96x16xf32>, vector<96x16xf32>, vector<96x16xf32>, vector<96x16xf32>, vector<96x16xf32>, vector<96x16xf32>, vector<96x16xf32>, vector<96x16xf32>, vector<96x16xf32>, vector<96x16xf32>, vector<96x16xf32>, vector<96x16xf32>, vector<96x16xf32>, vector<96x16xf32> -> vector<96x256xf32>
    %53 = tpu.concatenate %43, %44, %45, %46, %47, %48, %49, %50, %51 in 1 : vector<96x16xf32>, vector<96x16xf32>, vector<96x16xf32>, vector<96x16xf32>, vector<96x16xf32>, vector<96x16xf32>, vector<96x16xf32>, vector<96x16xf32>, vector<96x16xf32> -> vector<96x144xf32>
    %54 = tpu.concatenate %52, %53 in 1 : vector<96x256xf32>, vector<96x144xf32> -> vector<96x400xf32>
    %c0_27 = arith.constant 0 : index
    %c0_28 = arith.constant 0 : index
    %55 = vector.load %arg4[%c0_27, %c0_28] : memref<400x128xf32, #tpu.memory_space<vmem>>, vector<400x128xf32>
    %cst_29 = arith.constant dense<0.000000e+00> : vector<96x128xf32>
    %56 = tpu.matmul %54, %55, %cst_29 {dimension_numbers = #tpu.dot_dimension_numbers<[1], [0], [0], [1], [0, 0, 1, 1], [], []>} : vector<96x400xf32>, vector<400x128xf32>, vector<96x128xf32> -> vector<96x128xf32>
    %c0_30 = arith.constant 0 : index
    %c0_31 = arith.constant 0 : index
    %57 = vector.load %arg5[%c0_30, %c0_31] : memref<1x128xf32, #tpu.memory_space<vmem>>, vector<1x128xf32>
    %58 = vector.broadcast %57 : vector<1x128xf32> to vector<96x128xf32>
    %59 = arith.addf %56, %58 : vector<96x128xf32>
    %cst_32 = arith.constant 0.000000e+00 : f32
    %60 = vector.broadcast %cst_32 : f32 to vector<96x128xf32>
    %61 = arith.maximumf %59, %60 : vector<96x128xf32>
    %62 = vector.extract_strided_slice %61 {offsets = [0, 0], sizes = [1, 128], strides = [1, 1]} : vector<96x128xf32> to vector<1x128xf32>
    %63 = vector.extract_strided_slice %61 {offsets = [1, 0], sizes = [1, 128], strides = [1, 1]} : vector<96x128xf32> to vector<1x128xf32>
    %64 = arith.maximumf %62, %63 : vector<1x128xf32>
    %65 = vector.extract_strided_slice %61 {offsets = [12, 0], sizes = [1, 128], strides = [1, 1]} : vector<96x128xf32> to vector<1x128xf32>
    %66 = vector.extract_strided_slice %61 {offsets = [13, 0], sizes = [1, 128], strides = [1, 1]} : vector<96x128xf32> to vector<1x128xf32>
    %67 = arith.maximumf %65, %66 : vector<1x128xf32>
    %68 = arith.maximumf %64, %67 : vector<1x128xf32>
    %69 = vector.extract_strided_slice %68 {offsets = [0, 0], sizes = [1, 16], strides = [1, 1]} : vector<1x128xf32> to vector<1x16xf32>
    %70 = vector.extract_strided_slice %61 {offsets = [2, 0], sizes = [1, 128], strides = [1, 1]} : vector<96x128xf32> to vector<1x128xf32>
    %71 = vector.extract_strided_slice %61 {offsets = [3, 0], sizes = [1, 128], strides = [1, 1]} : vector<96x128xf32> to vector<1x128xf32>
    %72 = arith.maximumf %70, %71 : vector<1x128xf32>
    %73 = vector.extract_strided_slice %61 {offsets = [14, 0], sizes = [1, 128], strides = [1, 1]} : vector<96x128xf32> to vector<1x128xf32>
    %74 = vector.extract_strided_slice %61 {offsets = [15, 0], sizes = [1, 128], strides = [1, 1]} : vector<96x128xf32> to vector<1x128xf32>
    %75 = arith.maximumf %73, %74 : vector<1x128xf32>
    %76 = arith.maximumf %72, %75 : vector<1x128xf32>
    %77 = vector.extract_strided_slice %76 {offsets = [0, 0], sizes = [1, 16], strides = [1, 1]} : vector<1x128xf32> to vector<1x16xf32>
    %78 = vector.extract_strided_slice %61 {offsets = [4, 0], sizes = [1, 128], strides = [1, 1]} : vector<96x128xf32> to vector<1x128xf32>
    %79 = vector.extract_strided_slice %61 {offsets = [5, 0], sizes = [1, 128], strides = [1, 1]} : vector<96x128xf32> to vector<1x128xf32>
    %80 = arith.maximumf %78, %79 : vector<1x128xf32>
    %81 = vector.extract_strided_slice %61 {offsets = [16, 0], sizes = [1, 128], strides = [1, 1]} : vector<96x128xf32> to vector<1x128xf32>
    %82 = vector.extract_strided_slice %61 {offsets = [17, 0], sizes = [1, 128], strides = [1, 1]} : vector<96x128xf32> to vector<1x128xf32>
    %83 = arith.maximumf %81, %82 : vector<1x128xf32>
    %84 = arith.maximumf %80, %83 : vector<1x128xf32>
    %85 = vector.extract_strided_slice %84 {offsets = [0, 0], sizes = [1, 16], strides = [1, 1]} : vector<1x128xf32> to vector<1x16xf32>
    %86 = vector.extract_strided_slice %61 {offsets = [6, 0], sizes = [1, 128], strides = [1, 1]} : vector<96x128xf32> to vector<1x128xf32>
    %87 = vector.extract_strided_slice %61 {offsets = [7, 0], sizes = [1, 128], strides = [1, 1]} : vector<96x128xf32> to vector<1x128xf32>
    %88 = arith.maximumf %86, %87 : vector<1x128xf32>
    %89 = vector.extract_strided_slice %61 {offsets = [18, 0], sizes = [1, 128], strides = [1, 1]} : vector<96x128xf32> to vector<1x128xf32>
    %90 = vector.extract_strided_slice %61 {offsets = [19, 0], sizes = [1, 128], strides = [1, 1]} : vector<96x128xf32> to vector<1x128xf32>
    %91 = arith.maximumf %89, %90 : vector<1x128xf32>
    %92 = arith.maximumf %88, %91 : vector<1x128xf32>
    %93 = vector.extract_strided_slice %92 {offsets = [0, 0], sizes = [1, 16], strides = [1, 1]} : vector<1x128xf32> to vector<1x16xf32>
    %94 = vector.extract_strided_slice %61 {offsets = [24, 0], sizes = [1, 128], strides = [1, 1]} : vector<96x128xf32> to vector<1x128xf32>
    %95 = vector.extract_strided_slice %61 {offsets = [25, 0], sizes = [1, 128], strides = [1, 1]} : vector<96x128xf32> to vector<1x128xf32>
    %96 = arith.maximumf %94, %95 : vector<1x128xf32>
    %97 = vector.extract_strided_slice %61 {offsets = [36, 0], sizes = [1, 128], strides = [1, 1]} : vector<96x128xf32> to vector<1x128xf32>
    %98 = vector.extract_strided_slice %61 {offsets = [37, 0], sizes = [1, 128], strides = [1, 1]} : vector<96x128xf32> to vector<1x128xf32>
    %99 = arith.maximumf %97, %98 : vector<1x128xf32>
    %100 = arith.maximumf %96, %99 : vector<1x128xf32>
    %101 = vector.extract_strided_slice %100 {offsets = [0, 0], sizes = [1, 16], strides = [1, 1]} : vector<1x128xf32> to vector<1x16xf32>
    %102 = vector.extract_strided_slice %61 {offsets = [26, 0], sizes = [1, 128], strides = [1, 1]} : vector<96x128xf32> to vector<1x128xf32>
    %103 = vector.extract_strided_slice %61 {offsets = [27, 0], sizes = [1, 128], strides = [1, 1]} : vector<96x128xf32> to vector<1x128xf32>
    %104 = arith.maximumf %102, %103 : vector<1x128xf32>
    %105 = vector.extract_strided_slice %61 {offsets = [38, 0], sizes = [1, 128], strides = [1, 1]} : vector<96x128xf32> to vector<1x128xf32>
    %106 = vector.extract_strided_slice %61 {offsets = [39, 0], sizes = [1, 128], strides = [1, 1]} : vector<96x128xf32> to vector<1x128xf32>
    %107 = arith.maximumf %105, %106 : vector<1x128xf32>
    %108 = arith.maximumf %104, %107 : vector<1x128xf32>
    %109 = vector.extract_strided_slice %108 {offsets = [0, 0], sizes = [1, 16], strides = [1, 1]} : vector<1x128xf32> to vector<1x16xf32>
    %110 = vector.extract_strided_slice %61 {offsets = [28, 0], sizes = [1, 128], strides = [1, 1]} : vector<96x128xf32> to vector<1x128xf32>
    %111 = vector.extract_strided_slice %61 {offsets = [29, 0], sizes = [1, 128], strides = [1, 1]} : vector<96x128xf32> to vector<1x128xf32>
    %112 = arith.maximumf %110, %111 : vector<1x128xf32>
    %113 = vector.extract_strided_slice %61 {offsets = [40, 0], sizes = [1, 128], strides = [1, 1]} : vector<96x128xf32> to vector<1x128xf32>
    %114 = vector.extract_strided_slice %61 {offsets = [41, 0], sizes = [1, 128], strides = [1, 1]} : vector<96x128xf32> to vector<1x128xf32>
    %115 = arith.maximumf %113, %114 : vector<1x128xf32>
    %116 = arith.maximumf %112, %115 : vector<1x128xf32>
    %117 = vector.extract_strided_slice %116 {offsets = [0, 0], sizes = [1, 16], strides = [1, 1]} : vector<1x128xf32> to vector<1x16xf32>
    %118 = vector.extract_strided_slice %61 {offsets = [30, 0], sizes = [1, 128], strides = [1, 1]} : vector<96x128xf32> to vector<1x128xf32>
    %119 = vector.extract_strided_slice %61 {offsets = [31, 0], sizes = [1, 128], strides = [1, 1]} : vector<96x128xf32> to vector<1x128xf32>
    %120 = arith.maximumf %118, %119 : vector<1x128xf32>
    %121 = vector.extract_strided_slice %61 {offsets = [42, 0], sizes = [1, 128], strides = [1, 1]} : vector<96x128xf32> to vector<1x128xf32>
    %122 = vector.extract_strided_slice %61 {offsets = [43, 0], sizes = [1, 128], strides = [1, 1]} : vector<96x128xf32> to vector<1x128xf32>
    %123 = arith.maximumf %121, %122 : vector<1x128xf32>
    %124 = arith.maximumf %120, %123 : vector<1x128xf32>
    %125 = vector.extract_strided_slice %124 {offsets = [0, 0], sizes = [1, 16], strides = [1, 1]} : vector<1x128xf32> to vector<1x16xf32>
    %126 = vector.extract_strided_slice %61 {offsets = [48, 0], sizes = [1, 128], strides = [1, 1]} : vector<96x128xf32> to vector<1x128xf32>
    %127 = vector.extract_strided_slice %61 {offsets = [49, 0], sizes = [1, 128], strides = [1, 1]} : vector<96x128xf32> to vector<1x128xf32>
    %128 = arith.maximumf %126, %127 : vector<1x128xf32>
    %129 = vector.extract_strided_slice %61 {offsets = [60, 0], sizes = [1, 128], strides = [1, 1]} : vector<96x128xf32> to vector<1x128xf32>
    %130 = vector.extract_strided_slice %61 {offsets = [61, 0], sizes = [1, 128], strides = [1, 1]} : vector<96x128xf32> to vector<1x128xf32>
    %131 = arith.maximumf %129, %130 : vector<1x128xf32>
    %132 = arith.maximumf %128, %131 : vector<1x128xf32>
    %133 = vector.extract_strided_slice %132 {offsets = [0, 0], sizes = [1, 16], strides = [1, 1]} : vector<1x128xf32> to vector<1x16xf32>
    %134 = vector.extract_strided_slice %61 {offsets = [50, 0], sizes = [1, 128], strides = [1, 1]} : vector<96x128xf32> to vector<1x128xf32>
    %135 = vector.extract_strided_slice %61 {offsets = [51, 0], sizes = [1, 128], strides = [1, 1]} : vector<96x128xf32> to vector<1x128xf32>
    %136 = arith.maximumf %134, %135 : vector<1x128xf32>
    %137 = vector.extract_strided_slice %61 {offsets = [62, 0], sizes = [1, 128], strides = [1, 1]} : vector<96x128xf32> to vector<1x128xf32>
    %138 = vector.extract_strided_slice %61 {offsets = [63, 0], sizes = [1, 128], strides = [1, 1]} : vector<96x128xf32> to vector<1x128xf32>
    %139 = arith.maximumf %137, %138 : vector<1x128xf32>
    %140 = arith.maximumf %136, %139 : vector<1x128xf32>
    %141 = vector.extract_strided_slice %140 {offsets = [0, 0], sizes = [1, 16], strides = [1, 1]} : vector<1x128xf32> to vector<1x16xf32>
    %142 = vector.extract_strided_slice %61 {offsets = [52, 0], sizes = [1, 128], strides = [1, 1]} : vector<96x128xf32> to vector<1x128xf32>
    %143 = vector.extract_strided_slice %61 {offsets = [53, 0], sizes = [1, 128], strides = [1, 1]} : vector<96x128xf32> to vector<1x128xf32>
    %144 = arith.maximumf %142, %143 : vector<1x128xf32>
    %145 = vector.extract_strided_slice %61 {offsets = [64, 0], sizes = [1, 128], strides = [1, 1]} : vector<96x128xf32> to vector<1x128xf32>
    %146 = vector.extract_strided_slice %61 {offsets = [65, 0], sizes = [1, 128], strides = [1, 1]} : vector<96x128xf32> to vector<1x128xf32>
    %147 = arith.maximumf %145, %146 : vector<1x128xf32>
    %148 = arith.maximumf %144, %147 : vector<1x128xf32>
    %149 = vector.extract_strided_slice %148 {offsets = [0, 0], sizes = [1, 16], strides = [1, 1]} : vector<1x128xf32> to vector<1x16xf32>
    %150 = vector.extract_strided_slice %61 {offsets = [54, 0], sizes = [1, 128], strides = [1, 1]} : vector<96x128xf32> to vector<1x128xf32>
    %151 = vector.extract_strided_slice %61 {offsets = [55, 0], sizes = [1, 128], strides = [1, 1]} : vector<96x128xf32> to vector<1x128xf32>
    %152 = arith.maximumf %150, %151 : vector<1x128xf32>
    %153 = vector.extract_strided_slice %61 {offsets = [66, 0], sizes = [1, 128], strides = [1, 1]} : vector<96x128xf32> to vector<1x128xf32>
    %154 = vector.extract_strided_slice %61 {offsets = [67, 0], sizes = [1, 128], strides = [1, 1]} : vector<96x128xf32> to vector<1x128xf32>
    %155 = arith.maximumf %153, %154 : vector<1x128xf32>
    %156 = arith.maximumf %152, %155 : vector<1x128xf32>
    %157 = vector.extract_strided_slice %156 {offsets = [0, 0], sizes = [1, 16], strides = [1, 1]} : vector<1x128xf32> to vector<1x16xf32>
    %158 = vector.extract_strided_slice %61 {offsets = [72, 0], sizes = [1, 128], strides = [1, 1]} : vector<96x128xf32> to vector<1x128xf32>
    %159 = vector.extract_strided_slice %61 {offsets = [73, 0], sizes = [1, 128], strides = [1, 1]} : vector<96x128xf32> to vector<1x128xf32>
    %160 = arith.maximumf %158, %159 : vector<1x128xf32>
    %161 = vector.extract_strided_slice %61 {offsets = [84, 0], sizes = [1, 128], strides = [1, 1]} : vector<96x128xf32> to vector<1x128xf32>
    %162 = vector.extract_strided_slice %61 {offsets = [85, 0], sizes = [1, 128], strides = [1, 1]} : vector<96x128xf32> to vector<1x128xf32>
    %163 = arith.maximumf %161, %162 : vector<1x128xf32>
    %164 = arith.maximumf %160, %163 : vector<1x128xf32>
    %165 = vector.extract_strided_slice %164 {offsets = [0, 0], sizes = [1, 16], strides = [1, 1]} : vector<1x128xf32> to vector<1x16xf32>
    %166 = vector.extract_strided_slice %61 {offsets = [74, 0], sizes = [1, 128], strides = [1, 1]} : vector<96x128xf32> to vector<1x128xf32>
    %167 = vector.extract_strided_slice %61 {offsets = [75, 0], sizes = [1, 128], strides = [1, 1]} : vector<96x128xf32> to vector<1x128xf32>
    %168 = arith.maximumf %166, %167 : vector<1x128xf32>
    %169 = vector.extract_strided_slice %61 {offsets = [86, 0], sizes = [1, 128], strides = [1, 1]} : vector<96x128xf32> to vector<1x128xf32>
    %170 = vector.extract_strided_slice %61 {offsets = [87, 0], sizes = [1, 128], strides = [1, 1]} : vector<96x128xf32> to vector<1x128xf32>
    %171 = arith.maximumf %169, %170 : vector<1x128xf32>
    %172 = arith.maximumf %168, %171 : vector<1x128xf32>
    %173 = vector.extract_strided_slice %172 {offsets = [0, 0], sizes = [1, 16], strides = [1, 1]} : vector<1x128xf32> to vector<1x16xf32>
    %174 = vector.extract_strided_slice %61 {offsets = [76, 0], sizes = [1, 128], strides = [1, 1]} : vector<96x128xf32> to vector<1x128xf32>
    %175 = vector.extract_strided_slice %61 {offsets = [77, 0], sizes = [1, 128], strides = [1, 1]} : vector<96x128xf32> to vector<1x128xf32>
    %176 = arith.maximumf %174, %175 : vector<1x128xf32>
    %177 = vector.extract_strided_slice %61 {offsets = [88, 0], sizes = [1, 128], strides = [1, 1]} : vector<96x128xf32> to vector<1x128xf32>
    %178 = vector.extract_strided_slice %61 {offsets = [89, 0], sizes = [1, 128], strides = [1, 1]} : vector<96x128xf32> to vector<1x128xf32>
    %179 = arith.maximumf %177, %178 : vector<1x128xf32>
    %180 = arith.maximumf %176, %179 : vector<1x128xf32>
    %181 = vector.extract_strided_slice %180 {offsets = [0, 0], sizes = [1, 16], strides = [1, 1]} : vector<1x128xf32> to vector<1x16xf32>
    %182 = vector.extract_strided_slice %61 {offsets = [78, 0], sizes = [1, 128], strides = [1, 1]} : vector<96x128xf32> to vector<1x128xf32>
    %183 = vector.extract_strided_slice %61 {offsets = [79, 0], sizes = [1, 128], strides = [1, 1]} : vector<96x128xf32> to vector<1x128xf32>
    %184 = arith.maximumf %182, %183 : vector<1x128xf32>
    %185 = vector.extract_strided_slice %61 {offsets = [90, 0], sizes = [1, 128], strides = [1, 1]} : vector<96x128xf32> to vector<1x128xf32>
    %186 = vector.extract_strided_slice %61 {offsets = [91, 0], sizes = [1, 128], strides = [1, 1]} : vector<96x128xf32> to vector<1x128xf32>
    %187 = arith.maximumf %185, %186 : vector<1x128xf32>
    %188 = arith.maximumf %184, %187 : vector<1x128xf32>
    %189 = vector.extract_strided_slice %188 {offsets = [0, 0], sizes = [1, 16], strides = [1, 1]} : vector<1x128xf32> to vector<1x16xf32>
    %190 = tpu.concatenate %69, %77, %85, %93, %101, %109, %117, %125, %133, %141, %149, %157, %165, %173, %181, %189 in 1 : vector<1x16xf32>, vector<1x16xf32>, vector<1x16xf32>, vector<1x16xf32>, vector<1x16xf32>, vector<1x16xf32>, vector<1x16xf32>, vector<1x16xf32>, vector<1x16xf32>, vector<1x16xf32>, vector<1x16xf32>, vector<1x16xf32>, vector<1x16xf32>, vector<1x16xf32>, vector<1x16xf32>, vector<1x16xf32> -> vector<1x256xf32>
    %c0_33 = arith.constant 0 : index
    %c0_34 = arith.constant 0 : index
    %191 = vector.load %arg6[%c0_33, %c0_34] : memref<256x128xf32, #tpu.memory_space<vmem>>, vector<256x128xf32>
    %cst_35 = arith.constant dense<0.000000e+00> : vector<1x128xf32>
    %192 = tpu.matmul %190, %191, %cst_35 {dimension_numbers = #tpu.dot_dimension_numbers<[1], [0], [0], [1], [0, 0, 1, 1], [], []>} : vector<1x256xf32>, vector<256x128xf32>, vector<1x128xf32> -> vector<1x128xf32>
    %c0_36 = arith.constant 0 : index
    %c0_37 = arith.constant 0 : index
    %193 = vector.load %arg7[%c0_36, %c0_37] : memref<1x128xf32, #tpu.memory_space<vmem>>, vector<1x128xf32>
    %194 = arith.addf %192, %193 : vector<1x128xf32>
    %cst_38 = arith.constant 0.000000e+00 : f32
    %195 = vector.broadcast %cst_38 : f32 to vector<1x128xf32>
    %196 = arith.maximumf %194, %195 : vector<1x128xf32>
    %c0_39 = arith.constant 0 : index
    %c0_40 = arith.constant 0 : index
    %197 = vector.load %arg8[%c0_39, %c0_40] : memref<128x128xf32, #tpu.memory_space<vmem>>, vector<128x128xf32>
    %cst_41 = arith.constant dense<0.000000e+00> : vector<1x128xf32>
    %198 = tpu.matmul %196, %197, %cst_41 {dimension_numbers = #tpu.dot_dimension_numbers<[1], [0], [0], [1], [0, 0, 1, 1], [], []>} : vector<1x128xf32>, vector<128x128xf32>, vector<1x128xf32> -> vector<1x128xf32>
    %c0_42 = arith.constant 0 : index
    %c0_43 = arith.constant 0 : index
    %199 = vector.load %arg9[%c0_42, %c0_43] : memref<1x128xf32, #tpu.memory_space<vmem>>, vector<1x128xf32>
    %200 = arith.addf %198, %199 : vector<1x128xf32>
    %cst_44 = arith.constant 0.000000e+00 : f32
    %201 = vector.broadcast %cst_44 : f32 to vector<1x128xf32>
    %202 = arith.maximumf %200, %201 : vector<1x128xf32>
    %203 = vector.shape_cast %202 : vector<1x128xf32> to vector<1x1x128xf32>
    %204 = vector.broadcast %203 : vector<1x1x128xf32> to vector<1x8x128xf32>
    %c0_45 = arith.constant 0 : index
    %c0_46 = arith.constant 0 : index
    %c0_47 = arith.constant 0 : index
    %205 = vector.load %arg10[%c0_45, %c0_46, %c0_47] : memref<1x8x128xf32, #tpu.memory_space<vmem>>, vector<1x8x128xf32>
    tpu.vector_store %arg10[%c0_45, %c0_46, %c0_47], %204 {strides = array<i32>} : memref<1x8x128xf32, #tpu.memory_space<vmem>>, vector<1x8x128xf32>,
    return
  }
  func.func @transform_0(%arg0: i32) -> (i32, i32, i32, i32) {
    %c0_i32 = arith.constant 0 : i32
    %c0_i32_0 = arith.constant 0 : i32
    %c0_i32_1 = arith.constant 0 : i32
    %c0_i32_2 = arith.constant 0 : i32
    return %arg0, %c0_i32, %c0_i32_0, %c0_i32_1 : i32, i32, i32, i32
  }
  func.func @transform_1(%arg0: i32) -> (i32, i32) {
    %c0_i32 = arith.constant 0 : i32
    %c0_i32_0 = arith.constant 0 : i32
    %c0_i32_1 = arith.constant 0 : i32
    return %c0_i32, %c0_i32_0 : i32, i32
  }
  func.func @transform_2(%arg0: i32) -> (i32, i32) {
    %c0_i32 = arith.constant 0 : i32
    %c0_i32_0 = arith.constant 0 : i32
    %c0_i32_1 = arith.constant 0 : i32
    return %c0_i32, %c0_i32_0 : i32, i32
  }
  func.func @transform_3(%arg0: i32) -> (i32, i32) {
    %c0_i32 = arith.constant 0 : i32
    %c0_i32_0 = arith.constant 0 : i32
    %c0_i32_1 = arith.constant 0 : i32
    return %c0_i32, %c0_i32_0 : i32, i32
  }
  func.func @transform_4(%arg0: i32) -> (i32, i32) {
    %c0_i32 = arith.constant 0 : i32
    %c0_i32_0 = arith.constant 0 : i32
    %c0_i32_1 = arith.constant 0 : i32
    return %c0_i32, %c0_i32_0 : i32, i32
  }
  func.func @transform_5(%arg0: i32) -> (i32, i32) {
    %c0_i32 = arith.constant 0 : i32
    %c0_i32_0 = arith.constant 0 : i32
    %c0_i32_1 = arith.constant 0 : i32
    return %c0_i32, %c0_i32_0 : i32, i32
  }
  func.func @transform_6(%arg0: i32) -> (i32, i32) {
    %c0_i32 = arith.constant 0 : i32
    %c0_i32_0 = arith.constant 0 : i32
    %c0_i32_1 = arith.constant 0 : i32
    return %c0_i32, %c0_i32_0 : i32, i32
  }
  func.func @transform_7(%arg0: i32) -> (i32, i32) {
    %c0_i32 = arith.constant 0 : i32
    %c0_i32_0 = arith.constant 0 : i32
    %c0_i32_1 = arith.constant 0 : i32
    return %c0_i32, %c0_i32_0 : i32, i32
  }
  func.func @transform_8(%arg0: i32) -> (i32, i32) {
    %c0_i32 = arith.constant 0 : i32
    %c0_i32_0 = arith.constant 0 : i32
    %c0_i32_1 = arith.constant 0 : i32
    return %c0_i32, %c0_i32_0 : i32, i32
  }
  func.func @transform_9(%arg0: i32) -> (i32, i32, i32) {
    %c0_i32 = arith.constant 0 : i32
    %c0_i32_0 = arith.constant 0 : i32
    %c0_i32_1 = arith.constant 0 : i32
    return %arg0, %c0_i32, %c0_i32_0 : i32, i32, i32
  }
}

</mosaic_0001>

<llo_original>
// kernel: mnist_net_forward.1
$region0: #{mnist_net_forward.1}
  #allocation0 [shape = 'u32[]', space=smem, size = 0x4, offset = 0x4, fixed_abs, tag = 'smem constant byte address 0x4 - core index']
  #allocation1 [shape = 'u32[144,128]{1,0:T(1,128)}', space=vmem, size = 0x12000, scoped, tag = 'internal scratch']
  %s0 = inlined_call_operand.vmem [shape: f32[2,4,144,32], index: 0, kind: input, shape index: {}]
  %s1 = inlined_call_operand.vmem [shape: f32[32,128], index: 1, kind: input, shape index: {}]
  %s2 = inlined_call_operand.vmem [shape: f32[1,128], index: 2, kind: input, shape index: {}]
  %s3 = inlined_call_operand.vmem [shape: f32[400,128], index: 3, kind: input, shape index: {}]
  %s4 = inlined_call_operand.vmem [shape: f32[1,128], index: 4, kind: input, shape index: {}]
  %s5 = inlined_call_operand.vmem [shape: f32[256,128], index: 5, kind: input, shape index: {}]
  %s6 = inlined_call_operand.vmem [shape: f32[1,128], index: 6, kind: input, shape index: {}]
  %s7 = inlined_call_operand.vmem [shape: f32[128,128], index: 7, kind: input, shape index: {}]
  %s8 = inlined_call_operand.vmem [shape: f32[1,128], index: 8, kind: input, shape index: {}]
  %s9 = inlined_call_operand.vmem [shape: f32[2,8,128], index: 9, kind: output, shape index: {}]
  %s10 = sld [smem:[#allocation0]]
  $region69: #{mnist_net_forward.1} parent=0
    _
  %s12 = ssub.s32 1, %s10
  %s13 = scalar_select 0, %s12, %s10
  loop: start=0, step=1, limit=4
  $region2: #{mnist_net_forward.1} parent=0 // loop_pre_header
    _
  $region3: #{mnist_net_forward.1} parent=0 // loop_header
    %s15 = sphi 0, %s19
    %p16 = scmp.ge.s32.totalorder %s15, 4
    %s25 = sphi 0, %s27
    %s28 = sphi 0, %s25
    %s29 = sphi 0, %s28
    %s45 = sphi 0, %s29
    %s49 = sphi 0, %s49
    %s51 = sphi 0, %s49
    %s52 = sphi 0, %s51
    %s66 = sphi 0, %s52
    %s70 = sphi 0, %s70
    %s72 = sphi 0, %s70
    %s73 = sphi 0, %s72
    %s87 = sphi 0, %s73
    %s91 = sphi 0, %s91
    %s93 = sphi 0, %s91
    %s94 = sphi 0, %s93
    %s108 = sphi 0, %s94
    %s112 = sphi 0, %s112
    %s114 = sphi 0, %s112
    %s115 = sphi 0, %s114
    %s129 = sphi 0, %s115
    %s133 = sphi 0, %s133
    %s135 = sphi 0, %s133
    %s136 = sphi 0, %s135
    %s150 = sphi 0, %s136
    %s154 = sphi 0, %s154
    %s156 = sphi 0, %s154
    %s157 = sphi 0, %s156
    %s171 = sphi 0, %s157
    %s175 = sphi 0, %s175
    %s177 = sphi 0, %s175
    %s178 = sphi 0, %s177
    %s192 = sphi 0, %s178
    %s196 = sphi 0, %s196
    %s198 = sphi 0, %s196
    %s199 = sphi 0, %s198
    %s213 = sphi 0, %s199
    %s219 = sphi 0, %s221
    %s222 = sphi 0, %s219
    %s223 = sphi 0, %s222
    %s239 = sphi 0, %s223
  $region4: #{mnist_net_forward.1} parent=0 // loop_header_branch
    %18 = sbr.rel (%p16) target = $region8
  $region5: #{mnist_net_forward.1} parent=0 // loop_body
    %s20 = ssub.s32 %s15, 1
    %s21 = ssub.s32 %s15, 2
    %s22 = sadd.s32 %s15, 1
    %s23 = ssub.s32 %s15, %s22
    %p24 = scmp.eq.s32.totalorder %s23, 0
    %s26 = sadd.s32 %s25, 1
    %s27 = scalar_select %p24, %s25, %s26
    %p30 = pneg %p24
    %p31 = scmp.eq.s32.totalorder %s15, 1
    %p32 = por %p30, %p31
    %p33 = scmp.ne.s32.totalorder %s25, %s28
    %p34 = scmp.eq.s32.totalorder %s15, 0
    %p35 = por %p33, %p34
    %p36 = scmp.ne.s32.totalorder %s25, %s28
    %p37 = scmp.eq.s32.totalorder %s20, 1
    %p38 = por %p36, %p37
    %p39 = scmp.ne.s32.totalorder %s28, %s29
    %p40 = scmp.eq.s32.totalorder %s20, 0
    %p41 = por %p39, %p40
    %p42 = scmp.ne.s32.totalorder %s28, %s29
    %p43 = scmp.eq.s32.totalorder %s21, 1
    %p44 = por %p42, %p43
    %p46 = scmp.ne.s32.totalorder %s29, %s45
    %p47 = scmp.eq.s32.totalorder %s21, 0
    %p48 = por %p46, %p47
    %s50 = sadd.s32 %s49, 1
    %p53 = scmp.eq.s32.totalorder %s15, 1
    %p54 = scmp.ne.s32.totalorder %s49, %s51
    %p55 = scmp.eq.s32.totalorder %s15, 0
    %p56 = por %p54, %p55
    %p57 = scmp.ne.s32.totalorder %s49, %s51
    %p58 = scmp.eq.s32.totalorder %s20, 1
    %p59 = por %p57, %p58
    %p60 = scmp.ne.s32.totalorder %s51, %s52
    %p61 = scmp.eq.s32.totalorder %s20, 0
    %p62 = por %p60, %p61
    %p63 = scmp.ne.s32.totalorder %s51, %s52
    %p64 = scmp.eq.s32.totalorder %s21, 1
    %p65 = por %p63, %p64
    %p67 = scmp.ne.s32.totalorder %s52, %s66
    %p68 = scmp.eq.s32.totalorder %s21, 0
    %p69 = por %p67, %p68
    %s71 = sadd.s32 %s70, 1
    %p74 = scmp.eq.s32.totalorder %s15, 1
    %p75 = scmp.ne.s32.totalorder %s70, %s72
    %p76 = scmp.eq.s32.totalorder %s15, 0
    %p77 = por %p75, %p76
    %p78 = scmp.ne.s32.totalorder %s70, %s72
    %p79 = scmp.eq.s32.totalorder %s20, 1
    %p80 = por %p78, %p79
    %p81 = scmp.ne.s32.totalorder %s72, %s73
    %p82 = scmp.eq.s32.totalorder %s20, 0
    %p83 = por %p81, %p82
    %p84 = scmp.ne.s32.totalorder %s72, %s73
    %p85 = scmp.eq.s32.totalorder %s21, 1
    %p86 = por %p84, %p85
    %p88 = scmp.ne.s32.totalorder %s73, %s87
    %p89 = scmp.eq.s32.totalorder %s21, 0
    %p90 = por %p88, %p89
    %s92 = sadd.s32 %s91, 1
    %p95 = scmp.eq.s32.totalorder %s15, 1
    %p96 = scmp.ne.s32.totalorder %s91, %s93
    %p97 = scmp.eq.s32.totalorder %s15, 0
    %p98 = por %p96, %p97
    %p99 = scmp.ne.s32.totalorder %s91, %s93
    %p100 = scmp.eq.s32.totalorder %s20, 1
    %p101 = por %p99, %p100
    %p102 = scmp.ne.s32.totalorder %s93, %s94
    %p103 = scmp.eq.s32.totalorder %s20, 0
    %p104 = por %p102, %p103
    %p105 = scmp.ne.s32.totalorder %s93, %s94
    %p106 = scmp.eq.s32.totalorder %s21, 1
    %p107 = por %p105, %p106
    %p109 = scmp.ne.s32.totalorder %s94, %s108
    %p110 = scmp.eq.s32.totalorder %s21, 0
    %p111 = por %p109, %p110
    %s113 = sadd.s32 %s112, 1
    %p116 = scmp.eq.s32.totalorder %s15, 1
    %p117 = scmp.ne.s32.totalorder %s112, %s114
    %p118 = scmp.eq.s32.totalorder %s15, 0
    %p119 = por %p117, %p118
    %p120 = scmp.ne.s32.totalorder %s112, %s114
    %p121 = scmp.eq.s32.totalorder %s20, 1
    %p122 = por %p120, %p121
    %p123 = scmp.ne.s32.totalorder %s114, %s115
    %p124 = scmp.eq.s32.totalorder %s20, 0
    %p125 = por %p123, %p124
    %p126 = scmp.ne.s32.totalorder %s114, %s115
    %p127 = scmp.eq.s32.totalorder %s21, 1
    %p128 = por %p126, %p127
    %p130 = scmp.ne.s32.totalorder %s115, %s129
    %p131 = scmp.eq.s32.totalorder %s21, 0
    %p132 = por %p130, %p131
    %s134 = sadd.s32 %s133, 1
    %p137 = scmp.eq.s32.totalorder %s15, 1
    %p138 = scmp.ne.s32.totalorder %s133, %s135
    %p139 = scmp.eq.s32.totalorder %s15, 0
    %p140 = por %p138, %p139
    %p141 = scmp.ne.s32.totalorder %s133, %s135
    %p142 = scmp.eq.s32.totalorder %s20, 1
    %p143 = por %p141, %p142
    %p144 = scmp.ne.s32.totalorder %s135, %s136
    %p145 = scmp.eq.s32.totalorder %s20, 0
    %p146 = por %p144, %p145
    %p147 = scmp.ne.s32.totalorder %s135, %s136
    %p148 = scmp.eq.s32.totalorder %s21, 1
    %p149 = por %p147, %p148
    %p151 = scmp.ne.s32.totalorder %s136, %s150
    %p152 = scmp.eq.s32.totalorder %s21, 0
    %p153 = por %p151, %p152
    %s155 = sadd.s32 %s154, 1
    %p158 = scmp.eq.s32.totalorder %s15, 1
    %p159 = scmp.ne.s32.totalorder %s154, %s156
    %p160 = scmp.eq.s32.totalorder %s15, 0
    %p161 = por %p159, %p160
    %p162 = scmp.ne.s32.totalorder %s154, %s156
    %p163 = scmp.eq.s32.totalorder %s20, 1
    %p164 = por %p162, %p163
    %p165 = scmp.ne.s32.totalorder %s156, %s157
    %p166 = scmp.eq.s32.totalorder %s20, 0
    %p167 = por %p165, %p166
    %p168 = scmp.ne.s32.totalorder %s156, %s157
    %p169 = scmp.eq.s32.totalorder %s21, 1
    %p170 = por %p168, %p169
    %p172 = scmp.ne.s32.totalorder %s157, %s171
    %p173 = scmp.eq.s32.totalorder %s21, 0
    %p174 = por %p172, %p173
    %s176 = sadd.s32 %s175, 1
    %p179 = scmp.eq.s32.totalorder %s15, 1
    %p180 = scmp.ne.s32.totalorder %s175, %s177
    %p181 = scmp.eq.s32.totalorder %s15, 0
    %p182 = por %p180, %p181
    %p183 = scmp.ne.s32.totalorder %s175, %s177
    %p184 = scmp.eq.s32.totalorder %s20, 1
    %p185 = por %p183, %p184
    %p186 = scmp.ne.s32.totalorder %s177, %s178
    %p187 = scmp.eq.s32.totalorder %s20, 0
    %p188 = por %p186, %p187
    %p189 = scmp.ne.s32.totalorder %s177, %s178
    %p190 = scmp.eq.s32.totalorder %s21, 1
    %p191 = por %p189, %p190
    %p193 = scmp.ne.s32.totalorder %s178, %s192
    %p194 = scmp.eq.s32.totalorder %s21, 0
    %p195 = por %p193, %p194
    %s197 = sadd.s32 %s196, 1
    %p200 = scmp.eq.s32.totalorder %s15, 1
    %p201 = scmp.ne.s32.totalorder %s196, %s198
    %p202 = scmp.eq.s32.totalorder %s15, 0
    %p203 = por %p201, %p202
    %p204 = scmp.ne.s32.totalorder %s196, %s198
    %p205 = scmp.eq.s32.totalorder %s20, 1
    %p206 = por %p204, %p205
    %p207 = scmp.ne.s32.totalorder %s198, %s199
    %p208 = scmp.eq.s32.totalorder %s20, 0
    %p209 = por %p207, %p208
    %p210 = scmp.ne.s32.totalorder %s198, %s199
    %p211 = scmp.eq.s32.totalorder %s21, 1
    %p212 = por %p210, %p211
    %p214 = scmp.ne.s32.totalorder %s199, %s213
    %p215 = scmp.eq.s32.totalorder %s21, 0
    %p216 = por %p214, %p215
    %s217 = ssub.s32 %s15, %s22
    %p218 = scmp.eq.s32.totalorder %s217, 0
    %s220 = sadd.s32 %s219, 1
    %s221 = scalar_select %p218, %s219, %s220
    %p224 = pneg %p218
    %p225 = scmp.eq.s32.totalorder %s15, 1
    %p226 = por %p224, %p225
    %p227 = scmp.ne.s32.totalorder %s219, %s222
    %p228 = scmp.eq.s32.totalorder %s15, 0
    %p229 = por %p227, %p228
    %p230 = scmp.ne.s32.totalorder %s219, %s222
    %p231 = scmp.eq.s32.totalorder %s20, 1
    %p232 = por %p230, %p231
    %p233 = scmp.ne.s32.totalorder %s222, %s223
    %p234 = scmp.eq.s32.totalorder %s20, 0
    %p235 = por %p233, %p234
    %p236 = scmp.ne.s32.totalorder %s222, %s223
    %p237 = scmp.eq.s32.totalorder %s21, 1
    %p238 = por %p236, %p237
    %p240 = scmp.ne.s32.totalorder %s223, %s239
    %p241 = scmp.eq.s32.totalorder %s21, 0
    %p242 = por %p240, %p241
    %p243 = scmp.le.s32.totalorder 1, %s15
    %p244 = scmp.lt.s32.totalorder %s15, 3
    %p245 = pnand %p243, %p244
    %p246 = pneg %p245
    // Predicated region
    $region9: #{mnist_net_forward.1} parent=5 // pred_check
      _
    $region10: #{mnist_net_forward.1} parent=5 // pred_check_branch
      %248 = sbr.rel (%p245) target = $region12
    $region11: #{mnist_net_forward.1} parent=5 // pred_region
      %s249 = ssub.s32 %s15, 1
      // Predicated region
      $region13: #{mnist_net_forward.1} parent=11 // pred_check
        %p250 = pneg %p62
      $region14: #{mnist_net_forward.1} parent=11 // pred_check_branch
        %252 = sbr.rel (%p250) target = $region16
      $region15: #{mnist_net_forward.1} parent=11 // pred_region
        _
      $region16: #{mnist_net_forward.1} parent=11 // pred_fallthru
        _
      // Predicated region
      $region17: #{mnist_net_forward.1} parent=11 // pred_check
        %p253 = pneg %p83
      $region18: #{mnist_net_forward.1} parent=11 // pred_check_branch
        %255 = sbr.rel (%p253) target = $region20
      $region19: #{mnist_net_forward.1} parent=11 // pred_region
        _
      $region20: #{mnist_net_forward.1} parent=11 // pred_fallthru
        _
      // Predicated region
      $region21: #{mnist_net_forward.1} parent=11 // pred_check
        %p256 = pneg %p104
      $region22: #{mnist_net_forward.1} parent=11 // pred_check_branch
        %258 = sbr.rel (%p256) target = $region24
      $region23: #{mnist_net_forward.1} parent=11 // pred_region
        _
      $region24: #{mnist_net_forward.1} parent=11 // pred_fallthru
        _
      // Predicated region
      $region25: #{mnist_net_forward.1} parent=11 // pred_check
        %p259 = pneg %p125
      $region26: #{mnist_net_forward.1} parent=11 // pred_check_branch
        %261 = sbr.rel (%p259) target = $region28
      $region27: #{mnist_net_forward.1} parent=11 // pred_region
        _
      $region28: #{mnist_net_forward.1} parent=11 // pred_fallthru
        _
      // Predicated region
      $region29: #{mnist_net_forward.1} parent=11 // pred_check
        %p262 = pneg %p146
      $region30: #{mnist_net_forward.1} parent=11 // pred_check_branch
        %264 = sbr.rel (%p262) target = $region32
      $region31: #{mnist_net_forward.1} parent=11 // pred_region
        _
      $region32: #{mnist_net_forward.1} parent=11 // pred_fallthru
        _
      // Predicated region
      $region33: #{mnist_net_forward.1} parent=11 // pred_check
        %p265 = pneg %p167
      $region34: #{mnist_net_forward.1} parent=11 // pred_check_branch
        %267 = sbr.rel (%p265) target = $region36
      $region35: #{mnist_net_forward.1} parent=11 // pred_region
        _
      $region36: #{mnist_net_forward.1} parent=11 // pred_fallthru
        _
      // Predicated region
      $region37: #{mnist_net_forward.1} parent=11 // pred_check
        %p268 = pneg %p188
      $region38: #{mnist_net_forward.1} parent=11 // pred_check_branch
        %270 = sbr.rel (%p268) target = $region40
      $region39: #{mnist_net_forward.1} parent=11 // pred_region
        _
      $region40: #{mnist_net_forward.1} parent=11 // pred_fallthru
        _
      // Predicated region
      $region41: #{mnist_net_forward.1} parent=11 // pred_check
        %p271 = pneg %p209
      $region42: #{mnist_net_forward.1} parent=11 // pred_check_branch
        %273 = sbr.rel (%p271) target = $region44
      $region43: #{mnist_net_forward.1} parent=11 // pred_region
        _
      $region44: #{mnist_net_forward.1} parent=11 // pred_fallthru
        _
    $region12: #{mnist_net_forward.1} parent=5 // pred_fallthru
      _
    %p274 = scmp.lt.s32.totalorder %s15, 2
    // Predicated region
    $region45: #{mnist_net_forward.1} parent=5 // pred_check
      %p275 = pneg %p274
    $region46: #{mnist_net_forward.1} parent=5 // pred_check_branch
      %277 = sbr.rel (%p275) target = $region48
    $region47: #{mnist_net_forward.1} parent=5 // pred_region
      // Predicated region
      $region49: #{mnist_net_forward.1} parent=47 // pred_check
        %p278 = pneg %p35
      $region50: #{mnist_net_forward.1} parent=47 // pred_check_branch
        %280 = sbr.rel (%p278) target = $region52
      $region51: #{mnist_net_forward.1} parent=47 // pred_region
        %p281 = scmp.lt.s32.totalorder %s15, 1
        %s282 = scalar_select %p281, %s15, 1
        %s283 = smul.addr %s282, 72
        %s284 = smul.addr %s283, 8
        %s285 = scalar_lea.vmem %s0, %s284
      $region52: #{mnist_net_forward.1} parent=47 // pred_fallthru
        _
    $region48: #{mnist_net_forward.1} parent=5 // pred_fallthru
      _
    %p286 = scmp.le.s32.totalorder 1, %s15
    %p287 = scmp.lt.s32.totalorder %s15, 3
    %p288 = pnand %p286, %p287
    %p289 = pneg %p288
    // Predicated region
    $region53: #{mnist_net_forward.1} parent=5 // pred_check
      _
    $region54: #{mnist_net_forward.1} parent=5 // pred_check_branch
      %291 = sbr.rel (%p288) target = $region56
    $region55: #{mnist_net_forward.1} parent=5 // pred_region
      %s292 = ssub.s32 %s15, 1
      %p293 = scmp.lt.s32.totalorder %s20, 1
      %s294 = scalar_select %p293, %s20, 1
      %s295 = smul.addr %s294, 72
      %s296 = smul.addr %s295, 8
      %s297 = scalar_lea.vmem %s0, %s296
      %p298 = pneg %p41
      %p299 = pneg %p38
      %p300 = pneg %p62
      %p301 = pneg %p59
      %p302 = pneg %p83
      %p303 = pneg %p80
      %p304 = pneg %p104
      %p305 = pneg %p101
      %p306 = pneg %p125
      %p307 = pneg %p122
      %p308 = pneg %p146
      %p309 = pneg %p143
      %p310 = pneg %p167
      %p311 = pneg %p164
      %p312 = pneg %p188
      %p313 = pneg %p185
      %p314 = pneg %p209
      %p315 = pneg %p206
      %p316 = pneg %p235
      %p317 = pneg %p232
      %p318 = scmp.lt.s32.totalorder %s20, 1
      %s319 = scalar_select %p318, %s20, 1
      %s320 = smul.addr %s319, 8
      %s321 = scalar_lea.vmem %s9, %s320
      %p322 = scmp.lt.s32.totalorder %s20, 1
      %s323 = scalar_select %p322, %s20, 1
      %s324 = smul.addr %s323, 72
      %s325 = smul.addr %s324, 8
      %s326 = scalar_lea.vmem %s0, %s325
      %p327 = scmp.lt.s32.totalorder %s20, 1
      %s328 = scalar_select %p327, %s20, 1
      %s329 = smul.addr %s328, 8
      %s330 = scalar_lea.vmem %s9, %s329
      %v331 = vld [vmem:[%s326] sm:$0xff]
      %v332 = vld [vmem:[%s326 + $0x8] sm:$0xff]
      %v333 = vld [vmem:[%s326 + $0x10] sm:$0xff]
      %v334 = vld [vmem:[%s326 + $0x18] sm:$0xff]
      %v335 = vld [vmem:[%s326 + $0x20] sm:$0xff]
      %v336 = vld [vmem:[%s326 + $0x28] sm:$0xff]
      %v337 = vld [vmem:[%s326 + $0x30] sm:$0xff]
      %v338 = vld [vmem:[%s326 + $0x38] sm:$0xff]
      %v339 = vld [vmem:[%s326 + $0x40] sm:$0xff]
      %v340 = vld [vmem:[%s326 + $0x48] sm:$0xff]
      %v341 = vld [vmem:[%s326 + $0x50] sm:$0xff]
      %v342 = vld [vmem:[%s326 + $0x58] sm:$0xff]
      %v343 = vld [vmem:[%s326 + $0x60] sm:$0xff]
      %v344 = vld [vmem:[%s326 + $0x68] sm:$0xff]
      %v345 = vld [vmem:[%s326 + $0x70] sm:$0xff]
      %v346 = vld [vmem:[%s326 + $0x78] sm:$0xff]
      %v347 = vld [vmem:[%s326 + $0x80] sm:$0xff]
      %v348 = vld [vmem:[%s326 + $0x88] sm:$0xff]
      %v349 = vld [vmem:[%s1] sm:$0xff]
      %v350 = vld [vmem:[%s1 + $0x8] sm:$0xff]
      %v351 = vld [vmem:[%s1 + $0x10] sm:$0xff]
      %v352 = vld [vmem:[%s1 + $0x18] sm:$0xff]
      %vm353 = vcmask 261120
      %v355 = vsel %vm353, %v331, 0
      %v358 = vsel %vm353, %v332, 0
      %v361 = vsel %vm353, %v333, 0
      %v364 = vsel %vm353, %v334, 0
      %v367 = vsel %vm353, %v335, 0
      %v370 = vsel %vm353, %v336, 0
      %v373 = vsel %vm353, %v337, 0
      %v376 = vsel %vm353, %v338, 0
      %v379 = vsel %vm353, %v339, 0
      %v382 = vsel %vm353, %v340, 0
      %v385 = vsel %vm353, %v341, 0
      %v388 = vsel %vm353, %v342, 0
      %v391 = vsel %vm353, %v343, 0
      %v394 = vsel %vm353, %v344, 0
      %v397 = vsel %vm353, %v345, 0
      %v400 = vsel %vm353, %v346, 0
      %v403 = vsel %vm353, %v347, 0
      %v406 = vsel %vm353, %v348, 0
      %408 = vmatprep.subr.mxu0 0.0
      %409 = vmatpush1.msra.mxu0 0.0
      %410 = vmatprep.subr.mxu0 0.0
      %411 = vmatpush1.msra.mxu0 0.0
      %412 = vmatprep.subr.mxu0 0.0
      %413 = vmatpush1.msra.mxu0 0.0
      %414 = vmatprep.subr.mxu0 0.0
      %415 = vmatpush1.msra.mxu0 0.0
      %416 = vmatprep.subr.mxu0 0.0
      %417 = vmatpush1.msra.mxu0 0.0
      %418 = vmatprep.subr.mxu0 0.0
      %419 = vmatpush1.msra.mxu0 0.0
      %420 = vmatprep.subr.mxu0 0.0
      %421 = vmatpush1.msra.mxu0 0.0
      %422 = vmatprep.subr.mxu0 0.0
      %423 = vmatpush1.msra.mxu0 0.0
      %424 = vmatprep.subr.mxu0 0.0
      %425 = vmatpush1.msra.mxu0 0.0
      %426 = vmatprep.subr.mxu0 0.0
      %427 = vmatpush1.msra.mxu0 0.0
      %428 = vmatprep.subr.mxu0 0.0
      %429 = vmatpush1.msra.mxu0 0.0
      %430 = vmatprep.subr.mxu0 0.0
      %431 = vmatpush1.msra.mxu0 0.0
      %432 = vmatprep.subr.mxu0 0.0
      %433 = vmatpush1.msra.mxu0 %v352
      %434 = vmatprep.subr.mxu0 0.0
      %435 = vmatpush1.msra.mxu0 %v351
      %436 = vmatprep.subr.mxu0 0.0
      %437 = vmatpush1.msra.mxu0 %v350
      %438 = vmatprep.subr.mxu0 0.0
      %439 = vmatpush1.msra.mxu0 %v349
      %440 = vmatprep.subr.mxu0 0.0
      %441 = vmatpush2.msra.mxu0 0.0
      %442 = vmatprep.subr.mxu0 0.0
      %443 = vmatpush2.msra.mxu0 0.0
      %444 = vmatprep.subr.mxu0 0.0
      %445 = vmatpush2.msra.mxu0 0.0
      %446 = vmatprep.subr.mxu0 0.0
      %447 = vmatpush2.msra.mxu0 0.0
      %448 = vmatprep.subr.mxu0 0.0
      %449 = vmatpush2.msra.mxu0 0.0
      %450 = vmatprep.subr.mxu0 0.0
      %451 = vmatpush2.msra.mxu0 0.0
      %452 = vmatprep.subr.mxu0 0.0
      %453 = vmatpush2.msra.mxu0 0.0
      %454 = vmatprep.subr.mxu0 0.0
      %455 = vmatpush2.msra.mxu0 0.0
      %456 = vmatprep.subr.mxu0 0.0
      %457 = vmatpush2.msra.mxu0 0.0
      %458 = vmatprep.subr.mxu0 0.0
      %459 = vmatpush2.msra.mxu0 0.0
      %460 = vmatprep.subr.mxu0 0.0
      %461 = vmatpush2.msra.mxu0 0.0
      %462 = vmatprep.subr.mxu0 0.0
      %463 = vmatpush2.msra.mxu0 0.0
      %464 = vmatprep.subr.mxu0 0.0
      %465 = vmatpush2.msra.mxu0 0.0
      %466 = vmatprep.subr.mxu0 0.0
      %467 = vmatpush2.msra.mxu0 0.0
      %468 = vmatprep.subr.mxu0 0.0
      %469 = vmatpush2.msra.mxu0 0.0
      %470 = vmatprep.subr.mxu0 0.0
      %471 = vmatpush2.msra.mxu0 0.0
      %472 = vmatprep.mubr.f32.mxu0 0.0
      %473 = vmatmul.mubr.f32.gmra.mxu0 %v355
      %v474 = vpop.f32.mrf.mxu0
      %v475 = vadd.f32 0.0, %v474
      %v476 = vpop.f32.mrf.mxu0
      %477 = vmatprep.mubr.f32.mxu0 0.0
      %478 = vmatmul.mubr.f32.gmra.mxu0 %v358
      %v479 = vpop.f32.mrf.mxu0
      %v480 = vadd.f32 0.0, %v479
      %v481 = vpop.f32.mrf.mxu0
      %482 = vmatprep.mubr.f32.mxu0 0.0
      %483 = vmatmul.mubr.f32.gmra.mxu0 %v361
      %v484 = vpop.f32.mrf.mxu0
      %v485 = vadd.f32 0.0, %v484
      %v486 = vpop.f32.mrf.mxu0
      %487 = vmatprep.mubr.f32.mxu0 0.0
      %488 = vmatmul.mubr.f32.gmra.mxu0 %v364
      %v489 = vpop.f32.mrf.mxu0
      %v490 = vadd.f32 0.0, %v489
      %v491 = vpop.f32.mrf.mxu0
      %492 = vmatprep.mubr.f32.mxu0 0.0
      %493 = vmatmul.mubr.f32.gmra.mxu0 %v367
      %v494 = vpop.f32.mrf.mxu0
      %v495 = vadd.f32 0.0, %v494
      %v496 = vpop.f32.mrf.mxu0
      %497 = vmatprep.mubr.f32.mxu0 0.0
      %498 = vmatmul.mubr.f32.gmra.mxu0 %v370
      %v499 = vpop.f32.mrf.mxu0
      %v500 = vadd.f32 0.0, %v499
      %v501 = vpop.f32.mrf.mxu0
      %502 = vmatprep.mubr.f32.mxu0 0.0
      %503 = vmatmul.mubr.f32.gmra.mxu0 %v373
      %v504 = vpop.f32.mrf.mxu0
      %v505 = vadd.f32 0.0, %v504
      %v506 = vpop.f32.mrf.mxu0
      %507 = vmatprep.mubr.f32.mxu0 0.0
      %508 = vmatmul.mubr.f32.gmra.mxu0 %v376
      %v509 = vpop.f32.mrf.mxu0
      %v510 = vadd.f32 0.0, %v509
      %v511 = vpop.f32.mrf.mxu0
      %512 = vmatprep.mubr.f32.mxu0 0.0
      %513 = vmatmul.mubr.f32.gmra.mxu0 %v379
      %v514 = vpop.f32.mrf.mxu0
      %v515 = vadd.f32 0.0, %v514
      %v516 = vpop.f32.mrf.mxu0
      %517 = vmatprep.mubr.f32.mxu0 0.0
      %518 = vmatmul.mubr.f32.gmra.mxu0 %v382
      %v519 = vpop.f32.mrf.mxu0
      %v520 = vadd.f32 0.0, %v519
      %v521 = vpop.f32.mrf.mxu0
      %522 = vmatprep.mubr.f32.mxu0 0.0
      %523 = vmatmul.mubr.f32.gmra.mxu0 %v385
      %v524 = vpop.f32.mrf.mxu0
      %v525 = vadd.f32 0.0, %v524
      %v526 = vpop.f32.mrf.mxu0
      %527 = vmatprep.mubr.f32.mxu0 0.0
      %528 = vmatmul.mubr.f32.gmra.mxu0 %v388
      %v529 = vpop.f32.mrf.mxu0
      %v530 = vadd.f32 0.0, %v529
      %v531 = vpop.f32.mrf.mxu0
      %532 = vmatprep.mubr.f32.mxu0 0.0
      %533 = vmatmul.mubr.f32.gmra.mxu0 %v391
      %v534 = vpop.f32.mrf.mxu0
      %v535 = vadd.f32 0.0, %v534
      %v536 = vpop.f32.mrf.mxu0
      %537 = vmatprep.mubr.f32.mxu0 0.0
      %538 = vmatmul.mubr.f32.gmra.mxu0 %v394
      %v539 = vpop.f32.mrf.mxu0
      %v540 = vadd.f32 0.0, %v539
      %v541 = vpop.f32.mrf.mxu0
      %542 = vmatprep.mubr.f32.mxu0 0.0
      %543 = vmatmul.mubr.f32.gmra.mxu0 %v397
      %v544 = vpop.f32.mrf.mxu0
      %v545 = vadd.f32 0.0, %v544
      %v546 = vpop.f32.mrf.mxu0
      %547 = vmatprep.mubr.f32.mxu0 0.0
      %548 = vmatmul.mubr.f32.gmra.mxu0 %v400
      %v549 = vpop.f32.mrf.mxu0
      %v550 = vadd.f32 0.0, %v549
      %v551 = vpop.f32.mrf.mxu0
      %552 = vmatprep.mubr.f32.mxu0 0.0
      %553 = vmatmul.mubr.f32.gmra.mxu0 %v403
      %v554 = vpop.f32.mrf.mxu0
      %v555 = vadd.f32 0.0, %v554
      %v556 = vpop.f32.mrf.mxu0
      %557 = vmatprep.mubr.f32.mxu0 0.0
      %558 = vmatmul.mubr.f32.gmra.mxu0 %v406
      %v559 = vpop.f32.mrf.mxu0
      %v560 = vadd.f32 0.0, %v559
      %v561 = vpop.f32.mrf.mxu0
      %562 = vdwg.mxu0
      %s563 = scalar_lea.vmem %s326, 144
      %v564 = vld [vmem:[%s563] sm:$0xff]
      %v565 = vld [vmem:[%s563 + $0x8] sm:$0xff]
      %v566 = vld [vmem:[%s563 + $0x10] sm:$0xff]
      %v567 = vld [vmem:[%s563 + $0x18] sm:$0xff]
      %v568 = vld [vmem:[%s563 + $0x20] sm:$0xff]
      %v569 = vld [vmem:[%s563 + $0x28] sm:$0xff]
      %v570 = vld [vmem:[%s563 + $0x30] sm:$0xff]
      %v571 = vld [vmem:[%s563 + $0x38] sm:$0xff]
      %v572 = vld [vmem:[%s563 + $0x40] sm:$0xff]
      %v573 = vld [vmem:[%s563 + $0x48] sm:$0xff]
      %v574 = vld [vmem:[%s563 + $0x50] sm:$0xff]
      %v575 = vld [vmem:[%s563 + $0x58] sm:$0xff]
      %v576 = vld [vmem:[%s563 + $0x60] sm:$0xff]
      %v577 = vld [vmem:[%s563 + $0x68] sm:$0xff]
      %v578 = vld [vmem:[%s563 + $0x70] sm:$0xff]
      %v579 = vld [vmem:[%s563 + $0x78] sm:$0xff]
      %v580 = vld [vmem:[%s563 + $0x80] sm:$0xff]
      %v581 = vld [vmem:[%s563 + $0x88] sm:$0xff]
      %v583 = vsel %vm353, %v564, 0
      %v586 = vsel %vm353, %v565, 0
      %v589 = vsel %vm353, %v566, 0
      %v592 = vsel %vm353, %v567, 0
      %v595 = vsel %vm353, %v568, 0
      %v598 = vsel %vm353, %v569, 0
      %v601 = vsel %vm353, %v570, 0
      %v604 = vsel %vm353, %v571, 0
      %v607 = vsel %vm353, %v572, 0
      %v610 = vsel %vm353, %v573, 0
      %v613 = vsel %vm353, %v574, 0
      %v616 = vsel %vm353, %v575, 0
      %v619 = vsel %vm353, %v576, 0
      %v622 = vsel %vm353, %v577, 0
      %v625 = vsel %vm353, %v578, 0
      %v628 = vsel %vm353, %v579, 0
      %v631 = vsel %vm353, %v580, 0
      %v634 = vsel %vm353, %v581, 0
      %636 = vmatprep.subr.mxu0 0.0
      %637 = vmatpush1.msra.mxu0 0.0
      %638 = vmatprep.subr.mxu0 0.0
      %639 = vmatpush1.msra.mxu0 0.0
      %640 = vmatprep.subr.mxu0 0.0
      %641 = vmatpush1.msra.mxu0 0.0
      %642 = vmatprep.subr.mxu0 0.0
      %643 = vmatpush1.msra.mxu0 0.0
      %644 = vmatprep.subr.mxu0 0.0
      %645 = vmatpush1.msra.mxu0 0.0
      %646 = vmatprep.subr.mxu0 0.0
      %647 = vmatpush1.msra.mxu0 0.0
      %648 = vmatprep.subr.mxu0 0.0
      %649 = vmatpush1.msra.mxu0 0.0
      %650 = vmatprep.subr.mxu0 0.0
      %651 = vmatpush1.msra.mxu0 0.0
      %652 = vmatprep.subr.mxu0 0.0
      %653 = vmatpush1.msra.mxu0 0.0
      %654 = vmatprep.subr.mxu0 0.0
      %655 = vmatpush1.msra.mxu0 0.0
      %656 = vmatprep.subr.mxu0 0.0
      %657 = vmatpush1.msra.mxu0 0.0
      %658 = vmatprep.subr.mxu0 0.0
      %659 = vmatpush1.msra.mxu0 0.0
      %660 = vmatprep.subr.mxu0 0.0
      %661 = vmatpush1.msra.mxu0 %v352
      %662 = vmatprep.subr.mxu0 0.0
      %663 = vmatpush1.msra.mxu0 %v351
      %664 = vmatprep.subr.mxu0 0.0
      %665 = vmatpush1.msra.mxu0 %v350
      %666 = vmatprep.subr.mxu0 0.0
      %667 = vmatpush1.msra.mxu0 %v349
      %668 = vmatprep.subr.mxu0 0.0
      %669 = vmatpush2.msra.mxu0 0.0
      %670 = vmatprep.subr.mxu0 0.0
      %671 = vmatpush2.msra.mxu0 0.0
      %672 = vmatprep.subr.mxu0 0.0
      %673 = vmatpush2.msra.mxu0 0.0
      %674 = vmatprep.subr.mxu0 0.0
      %675 = vmatpush2.msra.mxu0 0.0
      %676 = vmatprep.subr.mxu0 0.0
      %677 = vmatpush2.msra.mxu0 0.0
      %678 = vmatprep.subr.mxu0 0.0
      %679 = vmatpush2.msra.mxu0 0.0
      %680 = vmatprep.subr.mxu0 0.0
      %681 = vmatpush2.msra.mxu0 0.0
      %682 = vmatprep.subr.mxu0 0.0
      %683 = vmatpush2.msra.mxu0 0.0
      %684 = vmatprep.subr.mxu0 0.0
      %685 = vmatpush2.msra.mxu0 0.0
      %686 = vmatprep.subr.mxu0 0.0
      %687 = vmatpush2.msra.mxu0 0.0
      %688 = vmatprep.subr.mxu0 0.0
      %689 = vmatpush2.msra.mxu0 0.0
      %690 = vmatprep.subr.mxu0 0.0
      %691 = vmatpush2.msra.mxu0 0.0
      %692 = vmatprep.subr.mxu0 0.0
      %693 = vmatpush2.msra.mxu0 0.0
      %694 = vmatprep.subr.mxu0 0.0
      %695 = vmatpush2.msra.mxu0 0.0
      %696 = vmatprep.subr.mxu0 0.0
      %697 = vmatpush2.msra.mxu0 0.0
      %698 = vmatprep.subr.mxu0 0.0
      %699 = vmatpush2.msra.mxu0 0.0
      %700 = vmatprep.mubr.f32.mxu0 0.0
      %701 = vmatmul.mubr.f32.gmra.mxu0 %v583
      %v702 = vpop.f32.mrf.mxu0
      %v703 = vadd.f32 0.0, %v702
      %v704 = vpop.f32.mrf.mxu0
      %705 = vmatprep.mubr.f32.mxu0 0.0
      %706 = vmatmul.mubr.f32.gmra.mxu0 %v586
      %v707 = vpop.f32.mrf.mxu0
      %v708 = vadd.f32 0.0, %v707
      %v709 = vpop.f32.mrf.mxu0
      %710 = vmatprep.mubr.f32.mxu0 0.0
      %711 = vmatmul.mubr.f32.gmra.mxu0 %v589
      %v712 = vpop.f32.mrf.mxu0
      %v713 = vadd.f32 0.0, %v712
      %v714 = vpop.f32.mrf.mxu0
      %715 = vmatprep.mubr.f32.mxu0 0.0
      %716 = vmatmul.mubr.f32.gmra.mxu0 %v592
      %v717 = vpop.f32.mrf.mxu0
      %v718 = vadd.f32 0.0, %v717
      %v719 = vpop.f32.mrf.mxu0
      %720 = vmatprep.mubr.f32.mxu0 0.0
      %721 = vmatmul.mubr.f32.gmra.mxu0 %v595
      %v722 = vpop.f32.mrf.mxu0
      %v723 = vadd.f32 0.0, %v722
      %v724 = vpop.f32.mrf.mxu0
      %725 = vmatprep.mubr.f32.mxu0 0.0
      %726 = vmatmul.mubr.f32.gmra.mxu0 %v598
      %v727 = vpop.f32.mrf.mxu0
      %v728 = vadd.f32 0.0, %v727
      %v729 = vpop.f32.mrf.mxu0
      %730 = vmatprep.mubr.f32.mxu0 0.0
      %731 = vmatmul.mubr.f32.gmra.mxu0 %v601
      %v732 = vpop.f32.mrf.mxu0
      %v733 = vadd.f32 0.0, %v732
      %v734 = vpop.f32.mrf.mxu0
      %735 = vmatprep.mubr.f32.mxu0 0.0
      %736 = vmatmul.mubr.f32.gmra.mxu0 %v604
      %v737 = vpop.f32.mrf.mxu0
      %v738 = vadd.f32 0.0, %v737
      %v739 = vpop.f32.mrf.mxu0
      %740 = vmatprep.mubr.f32.mxu0 0.0
      %741 = vmatmul.mubr.f32.gmra.mxu0 %v607
      %v742 = vpop.f32.mrf.mxu0
      %v743 = vadd.f32 0.0, %v742
      %v744 = vpop.f32.mrf.mxu0
      %745 = vmatprep.mubr.f32.mxu0 0.0
      %746 = vmatmul.mubr.f32.gmra.mxu0 %v610
      %v747 = vpop.f32.mrf.mxu0
      %v748 = vadd.f32 0.0, %v747
      %v749 = vpop.f32.mrf.mxu0
      %750 = vmatprep.mubr.f32.mxu0 0.0
      %751 = vmatmul.mubr.f32.gmra.mxu0 %v613
      %v752 = vpop.f32.mrf.mxu0
      %v753 = vadd.f32 0.0, %v752
      %v754 = vpop.f32.mrf.mxu0
      %755 = vmatprep.mubr.f32.mxu0 0.0
      %756 = vmatmul.mubr.f32.gmra.mxu0 %v616
      %v757 = vpop.f32.mrf.mxu0
      %v758 = vadd.f32 0.0, %v757
      %v759 = vpop.f32.mrf.mxu0
      %760 = vmatprep.mubr.f32.mxu0 0.0
      %761 = vmatmul.mubr.f32.gmra.mxu0 %v619
      %v762 = vpop.f32.mrf.mxu0
      %v763 = vadd.f32 0.0, %v762
      %v764 = vpop.f32.mrf.mxu0
      %765 = vmatprep.mubr.f32.mxu0 0.0
      %766 = vmatmul.mubr.f32.gmra.mxu0 %v622
      %v767 = vpop.f32.mrf.mxu0
      %v768 = vadd.f32 0.0, %v767
      %v769 = vpop.f32.mrf.mxu0
      %770 = vmatprep.mubr.f32.mxu0 0.0
      %771 = vmatmul.mubr.f32.gmra.mxu0 %v625
      %v772 = vpop.f32.mrf.mxu0
      %v773 = vadd.f32 0.0, %v772
      %v774 = vpop.f32.mrf.mxu0
      %775 = vmatprep.mubr.f32.mxu0 0.0
      %776 = vmatmul.mubr.f32.gmra.mxu0 %v628
      %v777 = vpop.f32.mrf.mxu0
      %v778 = vadd.f32 0.0, %v777
      %v779 = vpop.f32.mrf.mxu0
      %780 = vmatprep.mubr.f32.mxu0 0.0
      %781 = vmatmul.mubr.f32.gmra.mxu0 %v631
      %v782 = vpop.f32.mrf.mxu0
      %v783 = vadd.f32 0.0, %v782
      %v784 = vpop.f32.mrf.mxu0
      %785 = vmatprep.mubr.f32.mxu0 0.0
      %786 = vmatmul.mubr.f32.gmra.mxu0 %v634
      %v787 = vpop.f32.mrf.mxu0
      %v788 = vadd.f32 0.0, %v787
      %v789 = vpop.f32.mrf.mxu0
      %790 = vdwg.mxu0
      %v791 = vmax.f32 %v475, %v703
      %v792 = vmax.f32 %v480, %v708
      %v793 = vmax.f32 %v485, %v713
      %v794 = vmax.f32 %v490, %v718
      %v795 = vmax.f32 %v495, %v723
      %v796 = vmax.f32 %v500, %v728
      %v797 = vmax.f32 %v505, %v733
      %v798 = vmax.f32 %v510, %v738
      %v799 = vmax.f32 %v515, %v743
      %v800 = vmax.f32 %v520, %v748
      %v801 = vmax.f32 %v525, %v753
      %v802 = vmax.f32 %v530, %v758
      %v803 = vmax.f32 %v535, %v763
      %v804 = vmax.f32 %v540, %v768
      %v805 = vmax.f32 %v545, %v773
      %v806 = vmax.f32 %v550, %v778
      %v807 = vmax.f32 %v555, %v783
      %v808 = vmax.f32 %v560, %v788
      %s809 = scalar_lea.vmem %s326, 288
      %v810 = vld [vmem:[%s809] sm:$0xff]
      %v811 = vld [vmem:[%s809 + $0x8] sm:$0xff]
      %v812 = vld [vmem:[%s809 + $0x10] sm:$0xff]
      %v813 = vld [vmem:[%s809 + $0x18] sm:$0xff]
      %v814 = vld [vmem:[%s809 + $0x20] sm:$0xff]
      %v815 = vld [vmem:[%s809 + $0x28] sm:$0xff]
      %v816 = vld [vmem:[%s809 + $0x30] sm:$0xff]
      %v817 = vld [vmem:[%s809 + $0x38] sm:$0xff]
      %v818 = vld [vmem:[%s809 + $0x40] sm:$0xff]
      %v819 = vld [vmem:[%s809 + $0x48] sm:$0xff]
      %v820 = vld [vmem:[%s809 + $0x50] sm:$0xff]
      %v821 = vld [vmem:[%s809 + $0x58] sm:$0xff]
      %v822 = vld [vmem:[%s809 + $0x60] sm:$0xff]
      %v823 = vld [vmem:[%s809 + $0x68] sm:$0xff]
      %v824 = vld [vmem:[%s809 + $0x70] sm:$0xff]
      %v825 = vld [vmem:[%s809 + $0x78] sm:$0xff]
      %v826 = vld [vmem:[%s809 + $0x80] sm:$0xff]
      %v827 = vld [vmem:[%s809 + $0x88] sm:$0xff]
      %v829 = vsel %vm353, %v810, 0
      %v832 = vsel %vm353, %v811, 0
      %v835 = vsel %vm353, %v812, 0
      %v838 = vsel %vm353, %v813, 0
      %v841 = vsel %vm353, %v814, 0
      %v844 = vsel %vm353, %v815, 0
      %v847 = vsel %vm353, %v816, 0
      %v850 = vsel %vm353, %v817, 0
      %v853 = vsel %vm353, %v818, 0
      %v856 = vsel %vm353, %v819, 0
      %v859 = vsel %vm353, %v820, 0
      %v862 = vsel %vm353, %v821, 0
      %v865 = vsel %vm353, %v822, 0
      %v868 = vsel %vm353, %v823, 0
      %v871 = vsel %vm353, %v824, 0
      %v874 = vsel %vm353, %v825, 0
      %v877 = vsel %vm353, %v826, 0
      %v880 = vsel %vm353, %v827, 0
      %882 = vmatprep.subr.mxu0 0.0
      %883 = vmatpush1.msra.mxu0 0.0
      %884 = vmatprep.subr.mxu0 0.0
      %885 = vmatpush1.msra.mxu0 0.0
      %886 = vmatprep.subr.mxu0 0.0
      %887 = vmatpush1.msra.mxu0 0.0
      %888 = vmatprep.subr.mxu0 0.0
      %889 = vmatpush1.msra.mxu0 0.0
      %890 = vmatprep.subr.mxu0 0.0
      %891 = vmatpush1.msra.mxu0 0.0
      %892 = vmatprep.subr.mxu0 0.0
      %893 = vmatpush1.msra.mxu0 0.0
      %894 = vmatprep.subr.mxu0 0.0
      %895 = vmatpush1.msra.mxu0 0.0
      %896 = vmatprep.subr.mxu0 0.0
      %897 = vmatpush1.msra.mxu0 0.0
      %898 = vmatprep.subr.mxu0 0.0
      %899 = vmatpush1.msra.mxu0 0.0
      %900 = vmatprep.subr.mxu0 0.0
      %901 = vmatpush1.msra.mxu0 0.0
      %902 = vmatprep.subr.mxu0 0.0
      %903 = vmatpush1.msra.mxu0 0.0
      %904 = vmatprep.subr.mxu0 0.0
      %905 = vmatpush1.msra.mxu0 0.0
      %906 = vmatprep.subr.mxu0 0.0
      %907 = vmatpush1.msra.mxu0 %v352
      %908 = vmatprep.subr.mxu0 0.0
      %909 = vmatpush1.msra.mxu0 %v351
      %910 = vmatprep.subr.mxu0 0.0
      %911 = vmatpush1.msra.mxu0 %v350
      %912 = vmatprep.subr.mxu0 0.0
      %913 = vmatpush1.msra.mxu0 %v349
      %914 = vmatprep.subr.mxu0 0.0
      %915 = vmatpush2.msra.mxu0 0.0
      %916 = vmatprep.subr.mxu0 0.0
      %917 = vmatpush2.msra.mxu0 0.0
      %918 = vmatprep.subr.mxu0 0.0
      %919 = vmatpush2.msra.mxu0 0.0
      %920 = vmatprep.subr.mxu0 0.0
      %921 = vmatpush2.msra.mxu0 0.0
      %922 = vmatprep.subr.mxu0 0.0
      %923 = vmatpush2.msra.mxu0 0.0
      %924 = vmatprep.subr.mxu0 0.0
      %925 = vmatpush2.msra.mxu0 0.0
      %926 = vmatprep.subr.mxu0 0.0
      %927 = vmatpush2.msra.mxu0 0.0
      %928 = vmatprep.subr.mxu0 0.0
      %929 = vmatpush2.msra.mxu0 0.0
      %930 = vmatprep.subr.mxu0 0.0
      %931 = vmatpush2.msra.mxu0 0.0
      %932 = vmatprep.subr.mxu0 0.0
      %933 = vmatpush2.msra.mxu0 0.0
      %934 = vmatprep.subr.mxu0 0.0
      %935 = vmatpush2.msra.mxu0 0.0
      %936 = vmatprep.subr.mxu0 0.0
      %937 = vmatpush2.msra.mxu0 0.0
      %938 = vmatprep.subr.mxu0 0.0
      %939 = vmatpush2.msra.mxu0 0.0
      %940 = vmatprep.subr.mxu0 0.0
      %941 = vmatpush2.msra.mxu0 0.0
      %942 = vmatprep.subr.mxu0 0.0
      %943 = vmatpush2.msra.mxu0 0.0
      %944 = vmatprep.subr.mxu0 0.0
      %945 = vmatpush2.msra.mxu0 0.0
      %946 = vmatprep.mubr.f32.mxu0 0.0
      %947 = vmatmul.mubr.f32.gmra.mxu0 %v829
      %v948 = vpop.f32.mrf.mxu0
      %v949 = vadd.f32 0.0, %v948
      %v950 = vpop.f32.mrf.mxu0
      %951 = vmatprep.mubr.f32.mxu0 0.0
      %952 = vmatmul.mubr.f32.gmra.mxu0 %v832
      %v953 = vpop.f32.mrf.mxu0
      %v954 = vadd.f32 0.0, %v953
      %v955 = vpop.f32.mrf.mxu0
      %956 = vmatprep.mubr.f32.mxu0 0.0
      %957 = vmatmul.mubr.f32.gmra.mxu0 %v835
      %v958 = vpop.f32.mrf.mxu0
      %v959 = vadd.f32 0.0, %v958
      %v960 = vpop.f32.mrf.mxu0
      %961 = vmatprep.mubr.f32.mxu0 0.0
      %962 = vmatmul.mubr.f32.gmra.mxu0 %v838
      %v963 = vpop.f32.mrf.mxu0
      %v964 = vadd.f32 0.0, %v963
      %v965 = vpop.f32.mrf.mxu0
      %966 = vmatprep.mubr.f32.mxu0 0.0
      %967 = vmatmul.mubr.f32.gmra.mxu0 %v841
      %v968 = vpop.f32.mrf.mxu0
      %v969 = vadd.f32 0.0, %v968
      %v970 = vpop.f32.mrf.mxu0
      %971 = vmatprep.mubr.f32.mxu0 0.0
      %972 = vmatmul.mubr.f32.gmra.mxu0 %v844
      %v973 = vpop.f32.mrf.mxu0
      %v974 = vadd.f32 0.0, %v973
      %v975 = vpop.f32.mrf.mxu0
      %976 = vmatprep.mubr.f32.mxu0 0.0
      %977 = vmatmul.mubr.f32.gmra.mxu0 %v847
      %v978 = vpop.f32.mrf.mxu0
      %v979 = vadd.f32 0.0, %v978
      %v980 = vpop.f32.mrf.mxu0
      %981 = vmatprep.mubr.f32.mxu0 0.0
      %982 = vmatmul.mubr.f32.gmra.mxu0 %v850
      %v983 = vpop.f32.mrf.mxu0
      %v984 = vadd.f32 0.0, %v983
      %v985 = vpop.f32.mrf.mxu0
      %986 = vmatprep.mubr.f32.mxu0 0.0
      %987 = vmatmul.mubr.f32.gmra.mxu0 %v853
      %v988 = vpop.f32.mrf.mxu0
      %v989 = vadd.f32 0.0, %v988
      %v990 = vpop.f32.mrf.mxu0
      %991 = vmatprep.mubr.f32.mxu0 0.0
      %992 = vmatmul.mubr.f32.gmra.mxu0 %v856
      %v993 = vpop.f32.mrf.mxu0
      %v994 = vadd.f32 0.0, %v993
      %v995 = vpop.f32.mrf.mxu0
      %996 = vmatprep.mubr.f32.mxu0 0.0
      %997 = vmatmul.mubr.f32.gmra.mxu0 %v859
      %v998 = vpop.f32.mrf.mxu0
      %v999 = vadd.f32 0.0, %v998
      %v1000 = vpop.f32.mrf.mxu0
      %1001 = vmatprep.mubr.f32.mxu0 0.0
      %1002 = vmatmul.mubr.f32.gmra.mxu0 %v862
      %v1003 = vpop.f32.mrf.mxu0
      %v1004 = vadd.f32 0.0, %v1003
      %v1005 = vpop.f32.mrf.mxu0
      %1006 = vmatprep.mubr.f32.mxu0 0.0
      %1007 = vmatmul.mubr.f32.gmra.mxu0 %v865
      %v1008 = vpop.f32.mrf.mxu0
      %v1009 = vadd.f32 0.0, %v1008
      %v1010 = vpop.f32.mrf.mxu0
      %1011 = vmatprep.mubr.f32.mxu0 0.0
      %1012 = vmatmul.mubr.f32.gmra.mxu0 %v868
      %v1013 = vpop.f32.mrf.mxu0
      %v1014 = vadd.f32 0.0, %v1013
      %v1015 = vpop.f32.mrf.mxu0
      %1016 = vmatprep.mubr.f32.mxu0 0.0
      %1017 = vmatmul.mubr.f32.gmra.mxu0 %v871
      %v1018 = vpop.f32.mrf.mxu0
      %v1019 = vadd.f32 0.0, %v1018
      %v1020 = vpop.f32.mrf.mxu0
      %1021 = vmatprep.mubr.f32.mxu0 0.0
      %1022 = vmatmul.mubr.f32.gmra.mxu0 %v874
      %v1023 = vpop.f32.mrf.mxu0
      %v1024 = vadd.f32 0.0, %v1023
      %v1025 = vpop.f32.mrf.mxu0
      %1026 = vmatprep.mubr.f32.mxu0 0.0
      %1027 = vmatmul.mubr.f32.gmra.mxu0 %v877
      %v1028 = vpop.f32.mrf.mxu0
      %v1029 = vadd.f32 0.0, %v1028
      %v1030 = vpop.f32.mrf.mxu0
      %1031 = vmatprep.mubr.f32.mxu0 0.0
      %1032 = vmatmul.mubr.f32.gmra.mxu0 %v880
      %v1033 = vpop.f32.mrf.mxu0
      %v1034 = vadd.f32 0.0, %v1033
      %v1035 = vpop.f32.mrf.mxu0
      %1036 = vdwg.mxu0
      %v1037 = vmax.f32 %v791, %v949
      %v1038 = vmax.f32 %v792, %v954
      %v1039 = vmax.f32 %v793, %v959
      %v1040 = vmax.f32 %v794, %v964
      %v1041 = vmax.f32 %v795, %v969
      %v1042 = vmax.f32 %v796, %v974
      %v1043 = vmax.f32 %v797, %v979
      %v1044 = vmax.f32 %v798, %v984
      %v1045 = vmax.f32 %v799, %v989
      %v1046 = vmax.f32 %v800, %v994
      %v1047 = vmax.f32 %v801, %v999
      %v1048 = vmax.f32 %v802, %v1004
      %v1049 = vmax.f32 %v803, %v1009
      %v1050 = vmax.f32 %v804, %v1014
      %v1051 = vmax.f32 %v805, %v1019
      %v1052 = vmax.f32 %v806, %v1024
      %v1053 = vmax.f32 %v807, %v1029
      %v1054 = vmax.f32 %v808, %v1034
      %s1055 = scalar_lea.vmem %s326, 432
      %v1056 = vld [vmem:[%s1055] sm:$0xff]
      %v1057 = vld [vmem:[%s1055 + $0x8] sm:$0xff]
      %v1058 = vld [vmem:[%s1055 + $0x10] sm:$0xff]
      %v1059 = vld [vmem:[%s1055 + $0x18] sm:$0xff]
      %v1060 = vld [vmem:[%s1055 + $0x20] sm:$0xff]
      %v1061 = vld [vmem:[%s1055 + $0x28] sm:$0xff]
      %v1062 = vld [vmem:[%s1055 + $0x30] sm:$0xff]
      %v1063 = vld [vmem:[%s1055 + $0x38] sm:$0xff]
      %v1064 = vld [vmem:[%s1055 + $0x40] sm:$0xff]
      %v1065 = vld [vmem:[%s1055 + $0x48] sm:$0xff]
      %v1066 = vld [vmem:[%s1055 + $0x50] sm:$0xff]
      %v1067 = vld [vmem:[%s1055 + $0x58] sm:$0xff]
      %v1068 = vld [vmem:[%s1055 + $0x60] sm:$0xff]
      %v1069 = vld [vmem:[%s1055 + $0x68] sm:$0xff]
      %v1070 = vld [vmem:[%s1055 + $0x70] sm:$0xff]
      %v1071 = vld [vmem:[%s1055 + $0x78] sm:$0xff]
      %v1072 = vld [vmem:[%s1055 + $0x80] sm:$0xff]
      %v1073 = vld [vmem:[%s1055 + $0x88] sm:$0xff]
      %v1075 = vsel %vm353, %v1056, 0
      %v1078 = vsel %vm353, %v1057, 0
      %v1081 = vsel %vm353, %v1058, 0
      %v1084 = vsel %vm353, %v1059, 0
      %v1087 = vsel %vm353, %v1060, 0
      %v1090 = vsel %vm353, %v1061, 0
      %v1093 = vsel %vm353, %v1062, 0
      %v1096 = vsel %vm353, %v1063, 0
      %v1099 = vsel %vm353, %v1064, 0
      %v1102 = vsel %vm353, %v1065, 0
      %v1105 = vsel %vm353, %v1066, 0
      %v1108 = vsel %vm353, %v1067, 0
      %v1111 = vsel %vm353, %v1068, 0
      %v1114 = vsel %vm353, %v1069, 0
      %v1117 = vsel %vm353, %v1070, 0
      %v1120 = vsel %vm353, %v1071, 0
      %v1123 = vsel %vm353, %v1072, 0
      %v1126 = vsel %vm353, %v1073, 0
      %1128 = vmatprep.subr.mxu0 0.0
      %1129 = vmatpush1.msra.mxu0 0.0
      %1130 = vmatprep.subr.mxu0 0.0
      %1131 = vmatpush1.msra.mxu0 0.0
      %1132 = vmatprep.subr.mxu0 0.0
      %1133 = vmatpush1.msra.mxu0 0.0
      %1134 = vmatprep.subr.mxu0 0.0
      %1135 = vmatpush1.msra.mxu0 0.0
      %1136 = vmatprep.subr.mxu0 0.0
      %1137 = vmatpush1.msra.mxu0 0.0
      %1138 = vmatprep.subr.mxu0 0.0
      %1139 = vmatpush1.msra.mxu0 0.0
      %1140 = vmatprep.subr.mxu0 0.0
      %1141 = vmatpush1.msra.mxu0 0.0
      %1142 = vmatprep.subr.mxu0 0.0
      %1143 = vmatpush1.msra.mxu0 0.0
      %1144 = vmatprep.subr.mxu0 0.0
      %1145 = vmatpush1.msra.mxu0 0.0
      %1146 = vmatprep.subr.mxu0 0.0
      %1147 = vmatpush1.msra.mxu0 0.0
      %1148 = vmatprep.subr.mxu0 0.0
      %1149 = vmatpush1.msra.mxu0 0.0
      %1150 = vmatprep.subr.mxu0 0.0
      %1151 = vmatpush1.msra.mxu0 0.0
      %1152 = vmatprep.subr.mxu0 0.0
      %1153 = vmatpush1.msra.mxu0 %v352
      %1154 = vmatprep.subr.mxu0 0.0
      %1155 = vmatpush1.msra.mxu0 %v351
      %1156 = vmatprep.subr.mxu0 0.0
      %1157 = vmatpush1.msra.mxu0 %v350
      %1158 = vmatprep.subr.mxu0 0.0
      %1159 = vmatpush1.msra.mxu0 %v349
      %1160 = vmatprep.subr.mxu0 0.0
      %1161 = vmatpush2.msra.mxu0 0.0
      %1162 = vmatprep.subr.mxu0 0.0
      %1163 = vmatpush2.msra.mxu0 0.0
      %1164 = vmatprep.subr.mxu0 0.0
      %1165 = vmatpush2.msra.mxu0 0.0
      %1166 = vmatprep.subr.mxu0 0.0
      %1167 = vmatpush2.msra.mxu0 0.0
      %1168 = vmatprep.subr.mxu0 0.0
      %1169 = vmatpush2.msra.mxu0 0.0
      %1170 = vmatprep.subr.mxu0 0.0
      %1171 = vmatpush2.msra.mxu0 0.0
      %1172 = vmatprep.subr.mxu0 0.0
      %1173 = vmatpush2.msra.mxu0 0.0
      %1174 = vmatprep.subr.mxu0 0.0
      %1175 = vmatpush2.msra.mxu0 0.0
      %1176 = vmatprep.subr.mxu0 0.0
      %1177 = vmatpush2.msra.mxu0 0.0
      %1178 = vmatprep.subr.mxu0 0.0
      %1179 = vmatpush2.msra.mxu0 0.0
      %1180 = vmatprep.subr.mxu0 0.0
      %1181 = vmatpush2.msra.mxu0 0.0
      %1182 = vmatprep.subr.mxu0 0.0
      %1183 = vmatpush2.msra.mxu0 0.0
      %1184 = vmatprep.subr.mxu0 0.0
      %1185 = vmatpush2.msra.mxu0 0.0
      %1186 = vmatprep.subr.mxu0 0.0
      %1187 = vmatpush2.msra.mxu0 0.0
      %1188 = vmatprep.subr.mxu0 0.0
      %1189 = vmatpush2.msra.mxu0 0.0
      %1190 = vmatprep.subr.mxu0 0.0
      %1191 = vmatpush2.msra.mxu0 0.0
      %1192 = vmatprep.mubr.f32.mxu0 0.0
      %1193 = vmatmul.mubr.f32.gmra.mxu0 %v1075
      %v1194 = vpop.f32.mrf.mxu0
      %v1195 = vadd.f32 0.0, %v1194
      %v1196 = vpop.f32.mrf.mxu0
      %1197 = vmatprep.mubr.f32.mxu0 0.0
      %1198 = vmatmul.mubr.f32.gmra.mxu0 %v1078
      %v1199 = vpop.f32.mrf.mxu0
      %v1200 = vadd.f32 0.0, %v1199
      %v1201 = vpop.f32.mrf.mxu0
      %1202 = vmatprep.mubr.f32.mxu0 0.0
      %1203 = vmatmul.mubr.f32.gmra.mxu0 %v1081
      %v1204 = vpop.f32.mrf.mxu0
      %v1205 = vadd.f32 0.0, %v1204
      %v1206 = vpop.f32.mrf.mxu0
      %1207 = vmatprep.mubr.f32.mxu0 0.0
      %1208 = vmatmul.mubr.f32.gmra.mxu0 %v1084
      %v1209 = vpop.f32.mrf.mxu0
      %v1210 = vadd.f32 0.0, %v1209
      %v1211 = vpop.f32.mrf.mxu0
      %1212 = vmatprep.mubr.f32.mxu0 0.0
      %1213 = vmatmul.mubr.f32.gmra.mxu0 %v1087
      %v1214 = vpop.f32.mrf.mxu0
      %v1215 = vadd.f32 0.0, %v1214
      %v1216 = vpop.f32.mrf.mxu0
      %1217 = vmatprep.mubr.f32.mxu0 0.0
      %1218 = vmatmul.mubr.f32.gmra.mxu0 %v1090
      %v1219 = vpop.f32.mrf.mxu0
      %v1220 = vadd.f32 0.0, %v1219
      %v1221 = vpop.f32.mrf.mxu0
      %1222 = vmatprep.mubr.f32.mxu0 0.0
      %1223 = vmatmul.mubr.f32.gmra.mxu0 %v1093
      %v1224 = vpop.f32.mrf.mxu0
      %v1225 = vadd.f32 0.0, %v1224
      %v1226 = vpop.f32.mrf.mxu0
      %1227 = vmatprep.mubr.f32.mxu0 0.0
      %1228 = vmatmul.mubr.f32.gmra.mxu0 %v1096
      %v1229 = vpop.f32.mrf.mxu0
      %v1230 = vadd.f32 0.0, %v1229
      %v1231 = vpop.f32.mrf.mxu0
      %1232 = vmatprep.mubr.f32.mxu0 0.0
      %1233 = vmatmul.mubr.f32.gmra.mxu0 %v1099
      %v1234 = vpop.f32.mrf.mxu0
      %v1235 = vadd.f32 0.0, %v1234
      %v1236 = vpop.f32.mrf.mxu0
      %1237 = vmatprep.mubr.f32.mxu0 0.0
      %1238 = vmatmul.mubr.f32.gmra.mxu0 %v1102
      %v1239 = vpop.f32.mrf.mxu0
      %v1240 = vadd.f32 0.0, %v1239
      %v1241 = vpop.f32.mrf.mxu0
      %1242 = vmatprep.mubr.f32.mxu0 0.0
      %1243 = vmatmul.mubr.f32.gmra.mxu0 %v1105
      %v1244 = vpop.f32.mrf.mxu0
      %v1245 = vadd.f32 0.0, %v1244
      %v1246 = vpop.f32.mrf.mxu0
      %1247 = vmatprep.mubr.f32.mxu0 0.0
      %1248 = vmatmul.mubr.f32.gmra.mxu0 %v1108
      %v1249 = vpop.f32.mrf.mxu0
      %v1250 = vadd.f32 0.0, %v1249
      %v1251 = vpop.f32.mrf.mxu0
      %1252 = vmatprep.mubr.f32.mxu0 0.0
      %1253 = vmatmul.mubr.f32.gmra.mxu0 %v1111
      %v1254 = vpop.f32.mrf.mxu0
      %v1255 = vadd.f32 0.0, %v1254
      %v1256 = vpop.f32.mrf.mxu0
      %1257 = vmatprep.mubr.f32.mxu0 0.0
      %1258 = vmatmul.mubr.f32.gmra.mxu0 %v1114
      %v1259 = vpop.f32.mrf.mxu0
      %v1260 = vadd.f32 0.0, %v1259
      %v1261 = vpop.f32.mrf.mxu0
      %1262 = vmatprep.mubr.f32.mxu0 0.0
      %1263 = vmatmul.mubr.f32.gmra.mxu0 %v1117
      %v1264 = vpop.f32.mrf.mxu0
      %v1265 = vadd.f32 0.0, %v1264
      %v1266 = vpop.f32.mrf.mxu0
      %1267 = vmatprep.mubr.f32.mxu0 0.0
      %1268 = vmatmul.mubr.f32.gmra.mxu0 %v1120
      %v1269 = vpop.f32.mrf.mxu0
      %v1270 = vadd.f32 0.0, %v1269
      %v1271 = vpop.f32.mrf.mxu0
      %1272 = vmatprep.mubr.f32.mxu0 0.0
      %1273 = vmatmul.mubr.f32.gmra.mxu0 %v1123
      %v1274 = vpop.f32.mrf.mxu0
      %v1275 = vadd.f32 0.0, %v1274
      %v1276 = vpop.f32.mrf.mxu0
      %1277 = vmatprep.mubr.f32.mxu0 0.0
      %1278 = vmatmul.mubr.f32.gmra.mxu0 %v1126
      %v1279 = vpop.f32.mrf.mxu0
      %v1280 = vadd.f32 0.0, %v1279
      %v1281 = vpop.f32.mrf.mxu0
      %1282 = vdwg.mxu0
      %v1283 = vmax.f32 %v1037, %v1195
      %v1284 = vmax.f32 %v1038, %v1200
      %v1285 = vmax.f32 %v1039, %v1205
      %v1286 = vmax.f32 %v1040, %v1210
      %v1287 = vmax.f32 %v1041, %v1215
      %v1288 = vmax.f32 %v1042, %v1220
      %v1289 = vmax.f32 %v1043, %v1225
      %v1290 = vmax.f32 %v1044, %v1230
      %v1291 = vmax.f32 %v1045, %v1235
      %v1292 = vmax.f32 %v1046, %v1240
      %v1293 = vmax.f32 %v1047, %v1245
      %v1294 = vmax.f32 %v1048, %v1250
      %v1295 = vmax.f32 %v1049, %v1255
      %v1296 = vmax.f32 %v1050, %v1260
      %v1297 = vmax.f32 %v1051, %v1265
      %v1298 = vmax.f32 %v1052, %v1270
      %v1299 = vmax.f32 %v1053, %v1275
      %v1300 = vmax.f32 %v1054, %v1280
      %v1301 = vld [vmem:[%s2] sm:$0x1]
      %v1303 = vlaneseq
      %v1304 = vshrl.u32 %v1303, 7
      %v1305 = vsub.s32 0, %v1304
      %v1306 = vrot.slane %v1301, %v1305
      %v1308 = vadd.f32 %v1283, %v1306
      %v1309 = vadd.f32 %v1284, %v1306
      %v1310 = vadd.f32 %v1285, %v1306
      %v1311 = vadd.f32 %v1286, %v1306
      %v1312 = vadd.f32 %v1287, %v1306
      %v1313 = vadd.f32 %v1288, %v1306
      %v1314 = vadd.f32 %v1289, %v1306
      %v1315 = vadd.f32 %v1290, %v1306
      %v1316 = vadd.f32 %v1291, %v1306
      %v1317 = vadd.f32 %v1292, %v1306
      %v1318 = vadd.f32 %v1293, %v1306
      %v1319 = vadd.f32 %v1294, %v1306
      %v1320 = vadd.f32 %v1295, %v1306
      %v1321 = vadd.f32 %v1296, %v1306
      %v1322 = vadd.f32 %v1297, %v1306
      %v1323 = vadd.f32 %v1298, %v1306
      %v1324 = vadd.f32 %v1299, %v1306
      %v1325 = vadd.f32 %v1300, %v1306
      %v1326 = vmax.f32 %v1308, 0.0
      %v1327 = vmax.f32 %v1309, 0.0
      %v1328 = vmax.f32 %v1310, 0.0
      %v1329 = vmax.f32 %v1311, 0.0
      %v1330 = vmax.f32 %v1312, 0.0
      %v1331 = vmax.f32 %v1313, 0.0
      %v1332 = vmax.f32 %v1314, 0.0
      %v1333 = vmax.f32 %v1315, 0.0
      %v1334 = vmax.f32 %v1316, 0.0
      %v1335 = vmax.f32 %v1317, 0.0
      %v1336 = vmax.f32 %v1318, 0.0
      %v1337 = vmax.f32 %v1319, 0.0
      %v1338 = vmax.f32 %v1320, 0.0
      %v1339 = vmax.f32 %v1321, 0.0
      %v1340 = vmax.f32 %v1322, 0.0
      %v1341 = vmax.f32 %v1323, 0.0
      %v1342 = vmax.f32 %v1324, 0.0
      %v1343 = vmax.f32 %v1325, 0.0
      %vm1357 = vcmask 1046528
      %v1358 = vrot.slane %v1326, 1
      %v1359 = vrot.slane %v1327, 1
      %v1360 = vsel %vm1357, %v1358, %v1359
      %v1361 = vrot.slane %v1328, 1
      %v1362 = vsel %vm1357, %v1359, %v1361
      %v1363 = vrot.slane %v1329, 1
      %v1364 = vsel %vm1357, %v1361, %v1363
      %v1365 = vrot.slane %v1330, 1
      %v1366 = vsel %vm1357, %v1363, %v1365
      %v1367 = vrot.slane %v1331, 1
      %v1368 = vsel %vm1357, %v1365, %v1367
      %v1369 = vrot.slane %v1332, 1
      %v1370 = vsel %vm1357, %v1367, %v1369
      %v1371 = vrot.slane %v1333, 1
      %v1372 = vsel %vm1357, %v1369, %v1371
      %v1373 = vrot.slane %v1334, 1
      %v1374 = vsel %vm1357, %v1371, %v1373
      %v1375 = vrot.slane %v1335, 1
      %v1376 = vsel %vm1357, %v1373, %v1375
      %v1377 = vrot.slane %v1336, 1
      %v1378 = vsel %vm1357, %v1375, %v1377
      %v1379 = vrot.slane %v1337, 1
      %v1380 = vsel %vm1357, %v1377, %v1379
      %v1381 = vrot.slane %v1338, 1
      %v1382 = vsel %vm1357, %v1379, %v1381
      %1383 = vrot.lane.b32.xlu0 %v1360, 16
      %v1384 = vpop.permute.xlu0 %1383
      %1385 = vrot.lane.b32.xlu0 %v1362, 16
      %v1386 = vpop.permute.xlu0 %1385
      %1387 = vrot.lane.b32.xlu0 %v1364, 16
      %v1388 = vpop.permute.xlu0 %1387
      %1389 = vrot.lane.b32.xlu0 %v1366, 16
      %v1390 = vpop.permute.xlu0 %1389
      %1391 = vrot.lane.b32.xlu0 %v1368, 16
      %v1392 = vpop.permute.xlu0 %1391
      %1393 = vrot.lane.b32.xlu0 %v1370, 16
      %v1394 = vpop.permute.xlu0 %1393
      %1395 = vrot.lane.b32.xlu0 %v1372, 16
      %v1396 = vpop.permute.xlu0 %1395
      %1397 = vrot.lane.b32.xlu0 %v1374, 16
      %v1398 = vpop.permute.xlu0 %1397
      %1399 = vrot.lane.b32.xlu0 %v1376, 16
      %v1400 = vpop.permute.xlu0 %1399
      %1401 = vrot.lane.b32.xlu0 %v1378, 16
      %v1402 = vpop.permute.xlu0 %1401
      %1403 = vrot.lane.b32.xlu0 %v1380, 16
      %v1404 = vpop.permute.xlu0 %1403
      %1405 = vrot.lane.b32.xlu0 %v1382, 16
      %v1406 = vpop.permute.xlu0 %1405
      %vm1419 = vcmask 1045504
      %v1420 = vrot.slane %v1326, 2
      %v1421 = vrot.slane %v1327, 2
      %v1422 = vsel %vm1419, %v1420, %v1421
      %v1423 = vrot.slane %v1328, 2
      %v1424 = vsel %vm1419, %v1421, %v1423
      %v1425 = vrot.slane %v1329, 2
      %v1426 = vsel %vm1419, %v1423, %v1425
      %v1427 = vrot.slane %v1330, 2
      %v1428 = vsel %vm1419, %v1425, %v1427
      %v1429 = vrot.slane %v1331, 2
      %v1430 = vsel %vm1419, %v1427, %v1429
      %v1431 = vrot.slane %v1332, 2
      %v1432 = vsel %vm1419, %v1429, %v1431
      %v1433 = vrot.slane %v1333, 2
      %v1434 = vsel %vm1419, %v1431, %v1433
      %v1435 = vrot.slane %v1334, 2
      %v1436 = vsel %vm1419, %v1433, %v1435
      %v1437 = vrot.slane %v1335, 2
      %v1438 = vsel %vm1419, %v1435, %v1437
      %v1439 = vrot.slane %v1336, 2
      %v1440 = vsel %vm1419, %v1437, %v1439
      %v1441 = vrot.slane %v1337, 2
      %v1442 = vsel %vm1419, %v1439, %v1441
      %v1443 = vrot.slane %v1338, 2
      %v1444 = vsel %vm1419, %v1441, %v1443
      %1445 = vrot.lane.b32.xlu0 %v1422, 32
      %v1446 = vpop.permute.xlu0 %1445
      %1447 = vrot.lane.b32.xlu0 %v1424, 32
      %v1448 = vpop.permute.xlu0 %1447
      %1449 = vrot.lane.b32.xlu0 %v1426, 32
      %v1450 = vpop.permute.xlu0 %1449
      %1451 = vrot.lane.b32.xlu0 %v1428, 32
      %v1452 = vpop.permute.xlu0 %1451
      %1453 = vrot.lane.b32.xlu0 %v1430, 32
      %v1454 = vpop.permute.xlu0 %1453
      %1455 = vrot.lane.b32.xlu0 %v1432, 32
      %v1456 = vpop.permute.xlu0 %1455
      %1457 = vrot.lane.b32.xlu0 %v1434, 32
      %v1458 = vpop.permute.xlu0 %1457
      %1459 = vrot.lane.b32.xlu0 %v1436, 32
      %v1460 = vpop.permute.xlu0 %1459
      %1461 = vrot.lane.b32.xlu0 %v1438, 32
      %v1462 = vpop.permute.xlu0 %1461
      %1463 = vrot.lane.b32.xlu0 %v1440, 32
      %v1464 = vpop.permute.xlu0 %1463
      %1465 = vrot.lane.b32.xlu0 %v1442, 32
      %v1466 = vpop.permute.xlu0 %1465
      %1467 = vrot.lane.b32.xlu0 %v1444, 32
      %v1468 = vpop.permute.xlu0 %1467
      %vm1481 = vcmask 1044480
      %v1482 = vrot.slane %v1326, 3
      %v1483 = vrot.slane %v1327, 3
      %v1484 = vsel %vm1481, %v1482, %v1483
      %v1485 = vrot.slane %v1328, 3
      %v1486 = vsel %vm1481, %v1483, %v1485
      %v1487 = vrot.slane %v1329, 3
      %v1488 = vsel %vm1481, %v1485, %v1487
      %v1489 = vrot.slane %v1330, 3
      %v1490 = vsel %vm1481, %v1487, %v1489
      %v1491 = vrot.slane %v1331, 3
      %v1492 = vsel %vm1481, %v1489, %v1491
      %v1493 = vrot.slane %v1332, 3
      %v1494 = vsel %vm1481, %v1491, %v1493
      %v1495 = vrot.slane %v1333, 3
      %v1496 = vsel %vm1481, %v1493, %v1495
      %v1497 = vrot.slane %v1334, 3
      %v1498 = vsel %vm1481, %v1495, %v1497
      %v1499 = vrot.slane %v1335, 3
      %v1500 = vsel %vm1481, %v1497, %v1499
      %v1501 = vrot.slane %v1336, 3
      %v1502 = vsel %vm1481, %v1499, %v1501
      %v1503 = vrot.slane %v1337, 3
      %v1504 = vsel %vm1481, %v1501, %v1503
      %v1505 = vrot.slane %v1338, 3
      %v1506 = vsel %vm1481, %v1503, %v1505
      %1507 = vrot.lane.b32.xlu0 %v1484, 48
      %v1508 = vpop.permute.xlu0 %1507
      %1509 = vrot.lane.b32.xlu0 %v1486, 48
      %v1510 = vpop.permute.xlu0 %1509
      %1511 = vrot.lane.b32.xlu0 %v1488, 48
      %v1512 = vpop.permute.xlu0 %1511
      %1513 = vrot.lane.b32.xlu0 %v1490, 48
      %v1514 = vpop.permute.xlu0 %1513
      %1515 = vrot.lane.b32.xlu0 %v1492, 48
      %v1516 = vpop.permute.xlu0 %1515
      %1517 = vrot.lane.b32.xlu0 %v1494, 48
      %v1518 = vpop.permute.xlu0 %1517
      %1519 = vrot.lane.b32.xlu0 %v1496, 48
      %v1520 = vpop.permute.xlu0 %1519
      %1521 = vrot.lane.b32.xlu0 %v1498, 48
      %v1522 = vpop.permute.xlu0 %1521
      %1523 = vrot.lane.b32.xlu0 %v1500, 48
      %v1524 = vpop.permute.xlu0 %1523
      %1525 = vrot.lane.b32.xlu0 %v1502, 48
      %v1526 = vpop.permute.xlu0 %1525
      %1527 = vrot.lane.b32.xlu0 %v1504, 48
      %v1528 = vpop.permute.xlu0 %1527
      %1529 = vrot.lane.b32.xlu0 %v1506, 48
      %v1530 = vpop.permute.xlu0 %1529
      %vm1543 = vcmask 1043456
      %v1544 = vrot.slane %v1326, 4
      %v1545 = vrot.slane %v1327, 4
      %v1546 = vsel %vm1543, %v1544, %v1545
      %v1547 = vrot.slane %v1328, 4
      %v1548 = vsel %vm1543, %v1545, %v1547
      %v1549 = vrot.slane %v1329, 4
      %v1550 = vsel %vm1543, %v1547, %v1549
      %v1551 = vrot.slane %v1330, 4
      %v1552 = vsel %vm1543, %v1549, %v1551
      %v1553 = vrot.slane %v1331, 4
      %v1554 = vsel %vm1543, %v1551, %v1553
      %v1555 = vrot.slane %v1332, 4
      %v1556 = vsel %vm1543, %v1553, %v1555
      %v1557 = vrot.slane %v1333, 4
      %v1558 = vsel %vm1543, %v1555, %v1557
      %v1559 = vrot.slane %v1334, 4
      %v1560 = vsel %vm1543, %v1557, %v1559
      %v1561 = vrot.slane %v1335, 4
      %v1562 = vsel %vm1543, %v1559, %v1561
      %v1563 = vrot.slane %v1336, 4
      %v1564 = vsel %vm1543, %v1561, %v1563
      %v1565 = vrot.slane %v1337, 4
      %v1566 = vsel %vm1543, %v1563, %v1565
      %v1567 = vrot.slane %v1338, 4
      %v1568 = vsel %vm1543, %v1565, %v1567
      %1569 = vrot.lane.b32.xlu0 %v1546, 64
      %v1570 = vpop.permute.xlu0 %1569
      %1571 = vrot.lane.b32.xlu0 %v1548, 64
      %v1572 = vpop.permute.xlu0 %1571
      %1573 = vrot.lane.b32.xlu0 %v1550, 64
      %v1574 = vpop.permute.xlu0 %1573
      %1575 = vrot.lane.b32.xlu0 %v1552, 64
      %v1576 = vpop.permute.xlu0 %1575
      %1577 = vrot.lane.b32.xlu0 %v1554, 64
      %v1578 = vpop.permute.xlu0 %1577
      %1579 = vrot.lane.b32.xlu0 %v1556, 64
      %v1580 = vpop.permute.xlu0 %1579
      %1581 = vrot.lane.b32.xlu0 %v1558, 64
      %v1582 = vpop.permute.xlu0 %1581
      %1583 = vrot.lane.b32.xlu0 %v1560, 64
      %v1584 = vpop.permute.xlu0 %1583
      %1585 = vrot.lane.b32.xlu0 %v1562, 64
      %v1586 = vpop.permute.xlu0 %1585
      %1587 = vrot.lane.b32.xlu0 %v1564, 64
      %v1588 = vpop.permute.xlu0 %1587
      %1589 = vrot.lane.b32.xlu0 %v1566, 64
      %v1590 = vpop.permute.xlu0 %1589
      %1591 = vrot.lane.b32.xlu0 %v1568, 64
      %v1592 = vpop.permute.xlu0 %1591
      %v1606 = vrot.slane %v1339, 4
      %v1607 = vsel %vm1543, %v1567, %v1606
      %1608 = vrot.lane.b32.xlu0 %v1548, 80
      %v1609 = vpop.permute.xlu0 %1608
      %1610 = vrot.lane.b32.xlu0 %v1550, 80
      %v1611 = vpop.permute.xlu0 %1610
      %1612 = vrot.lane.b32.xlu0 %v1552, 80
      %v1613 = vpop.permute.xlu0 %1612
      %1614 = vrot.lane.b32.xlu0 %v1554, 80
      %v1615 = vpop.permute.xlu0 %1614
      %1616 = vrot.lane.b32.xlu0 %v1556, 80
      %v1617 = vpop.permute.xlu0 %1616
      %1618 = vrot.lane.b32.xlu0 %v1558, 80
      %v1619 = vpop.permute.xlu0 %1618
      %1620 = vrot.lane.b32.xlu0 %v1560, 80
      %v1621 = vpop.permute.xlu0 %1620
      %1622 = vrot.lane.b32.xlu0 %v1562, 80
      %v1623 = vpop.permute.xlu0 %1622
      %1624 = vrot.lane.b32.xlu0 %v1564, 80
      %v1625 = vpop.permute.xlu0 %1624
      %1626 = vrot.lane.b32.xlu0 %v1566, 80
      %v1627 = vpop.permute.xlu0 %1626
      %1628 = vrot.lane.b32.xlu0 %v1568, 80
      %v1629 = vpop.permute.xlu0 %1628
      %1630 = vrot.lane.b32.xlu0 %v1607, 80
      %v1631 = vpop.permute.xlu0 %1630
      %vm1644 = vcmask 1042432
      %v1645 = vrot.slane %v1327, 5
      %v1646 = vrot.slane %v1328, 5
      %v1647 = vsel %vm1644, %v1645, %v1646
      %v1648 = vrot.slane %v1329, 5
      %v1649 = vsel %vm1644, %v1646, %v1648
      %v1650 = vrot.slane %v1330, 5
      %v1651 = vsel %vm1644, %v1648, %v1650
      %v1652 = vrot.slane %v1331, 5
      %v1653 = vsel %vm1644, %v1650, %v1652
      %v1654 = vrot.slane %v1332, 5
      %v1655 = vsel %vm1644, %v1652, %v1654
      %v1656 = vrot.slane %v1333, 5
      %v1657 = vsel %vm1644, %v1654, %v1656
      %v1658 = vrot.slane %v1334, 5
      %v1659 = vsel %vm1644, %v1656, %v1658
      %v1660 = vrot.slane %v1335, 5
      %v1661 = vsel %vm1644, %v1658, %v1660
      %v1662 = vrot.slane %v1336, 5
      %v1663 = vsel %vm1644, %v1660, %v1662
      %v1664 = vrot.slane %v1337, 5
      %v1665 = vsel %vm1644, %v1662, %v1664
      %v1666 = vrot.slane %v1338, 5
      %v1667 = vsel %vm1644, %v1664, %v1666
      %v1668 = vrot.slane %v1339, 5
      %v1669 = vsel %vm1644, %v1666, %v1668
      %1670 = vrot.lane.b32.xlu0 %v1647, 96
      %v1671 = vpop.permute.xlu0 %1670
      %1672 = vrot.lane.b32.xlu0 %v1649, 96
      %v1673 = vpop.permute.xlu0 %1672
      %1674 = vrot.lane.b32.xlu0 %v1651, 96
      %v1675 = vpop.permute.xlu0 %1674
      %1676 = vrot.lane.b32.xlu0 %v1653, 96
      %v1677 = vpop.permute.xlu0 %1676
      %1678 = vrot.lane.b32.xlu0 %v1655, 96
      %v1679 = vpop.permute.xlu0 %1678
      %1680 = vrot.lane.b32.xlu0 %v1657, 96
      %v1681 = vpop.permute.xlu0 %1680
      %1682 = vrot.lane.b32.xlu0 %v1659, 96
      %v1683 = vpop.permute.xlu0 %1682
      %1684 = vrot.lane.b32.xlu0 %v1661, 96
      %v1685 = vpop.permute.xlu0 %1684
      %1686 = vrot.lane.b32.xlu0 %v1663, 96
      %v1687 = vpop.permute.xlu0 %1686
      %1688 = vrot.lane.b32.xlu0 %v1665, 96
      %v1689 = vpop.permute.xlu0 %1688
      %1690 = vrot.lane.b32.xlu0 %v1667, 96
      %v1691 = vpop.permute.xlu0 %1690
      %1692 = vrot.lane.b32.xlu0 %v1669, 96
      %v1693 = vpop.permute.xlu0 %1692
      %vm1706 = vcmask 1041408
      %v1707 = vrot.slane %v1327, 6
      %v1708 = vrot.slane %v1328, 6
      %v1709 = vsel %vm1706, %v1707, %v1708
      %v1710 = vrot.slane %v1329, 6
      %v1711 = vsel %vm1706, %v1708, %v1710
      %v1712 = vrot.slane %v1330, 6
      %v1713 = vsel %vm1706, %v1710, %v1712
      %v1714 = vrot.slane %v1331, 6
      %v1715 = vsel %vm1706, %v1712, %v1714
      %v1716 = vrot.slane %v1332, 6
      %v1717 = vsel %vm1706, %v1714, %v1716
      %v1718 = vrot.slane %v1333, 6
      %v1719 = vsel %vm1706, %v1716, %v1718
      %v1720 = vrot.slane %v1334, 6
      %v1721 = vsel %vm1706, %v1718, %v1720
      %v1722 = vrot.slane %v1335, 6
      %v1723 = vsel %vm1706, %v1720, %v1722
      %v1724 = vrot.slane %v1336, 6
      %v1725 = vsel %vm1706, %v1722, %v1724
      %v1726 = vrot.slane %v1337, 6
      %v1727 = vsel %vm1706, %v1724, %v1726
      %v1728 = vrot.slane %v1338, 6
      %v1729 = vsel %vm1706, %v1726, %v1728
      %v1730 = vrot.slane %v1339, 6
      %v1731 = vsel %vm1706, %v1728, %v1730
      %1732 = vrot.lane.b32.xlu0 %v1709, 112
      %v1733 = vpop.permute.xlu0 %1732
      %1734 = vrot.lane.b32.xlu0 %v1711, 112
      %v1735 = vpop.permute.xlu0 %1734
      %1736 = vrot.lane.b32.xlu0 %v1713, 112
      %v1737 = vpop.permute.xlu0 %1736
      %1738 = vrot.lane.b32.xlu0 %v1715, 112
      %v1739 = vpop.permute.xlu0 %1738
      %1740 = vrot.lane.b32.xlu0 %v1717, 112
      %v1741 = vpop.permute.xlu0 %1740
      %1742 = vrot.lane.b32.xlu0 %v1719, 112
      %v1743 = vpop.permute.xlu0 %1742
      %1744 = vrot.lane.b32.xlu0 %v1721, 112
      %v1745 = vpop.permute.xlu0 %1744
      %1746 = vrot.lane.b32.xlu0 %v1723, 112
      %v1747 = vpop.permute.xlu0 %1746
      %1748 = vrot.lane.b32.xlu0 %v1725, 112
      %v1749 = vpop.permute.xlu0 %1748
      %1750 = vrot.lane.b32.xlu0 %v1727, 112
      %v1751 = vpop.permute.xlu0 %1750
      %1752 = vrot.lane.b32.xlu0 %v1729, 112
      %v1753 = vpop.permute.xlu0 %1752
      %1754 = vrot.lane.b32.xlu0 %v1731, 112
      %v1755 = vpop.permute.xlu0 %1754
      %vm1768 = vcmask 1040384
      %v1769 = vrot.slane %v1327, 7
      %v1770 = vrot.slane %v1328, 7
      %v1771 = vsel %vm1768, %v1769, %v1770
      %v1772 = vrot.slane %v1329, 7
      %v1773 = vsel %vm1768, %v1770, %v1772
      %v1774 = vrot.slane %v1330, 7
      %v1775 = vsel %vm1768, %v1772, %v1774
      %v1776 = vrot.slane %v1331, 7
      %v1777 = vsel %vm1768, %v1774, %v1776
      %v1778 = vrot.slane %v1332, 7
      %v1779 = vsel %vm1768, %v1776, %v1778
      %v1780 = vrot.slane %v1333, 7
      %v1781 = vsel %vm1768, %v1778, %v1780
      %v1782 = vrot.slane %v1334, 7
      %v1783 = vsel %vm1768, %v1780, %v1782
      %v1784 = vrot.slane %v1335, 7
      %v1785 = vsel %vm1768, %v1782, %v1784
      %v1786 = vrot.slane %v1336, 7
      %v1787 = vsel %vm1768, %v1784, %v1786
      %v1788 = vrot.slane %v1337, 7
      %v1789 = vsel %vm1768, %v1786, %v1788
      %v1790 = vrot.slane %v1338, 7
      %v1791 = vsel %vm1768, %v1788, %v1790
      %v1792 = vrot.slane %v1339, 7
      %v1793 = vsel %vm1768, %v1790, %v1792
      %1806 = vrot.lane.b32.xlu0 %v1328, 16
      %v1807 = vpop.permute.xlu0 %1806
      %1808 = vrot.lane.b32.xlu0 %v1329, 16
      %v1809 = vpop.permute.xlu0 %1808
      %1810 = vrot.lane.b32.xlu0 %v1330, 16
      %v1811 = vpop.permute.xlu0 %1810
      %1812 = vrot.lane.b32.xlu0 %v1331, 16
      %v1813 = vpop.permute.xlu0 %1812
      %1814 = vrot.lane.b32.xlu0 %v1332, 16
      %v1815 = vpop.permute.xlu0 %1814
      %1816 = vrot.lane.b32.xlu0 %v1333, 16
      %v1817 = vpop.permute.xlu0 %1816
      %1818 = vrot.lane.b32.xlu0 %v1334, 16
      %v1819 = vpop.permute.xlu0 %1818
      %1820 = vrot.lane.b32.xlu0 %v1335, 16
      %v1821 = vpop.permute.xlu0 %1820
      %1822 = vrot.lane.b32.xlu0 %v1336, 16
      %v1823 = vpop.permute.xlu0 %1822
      %1824 = vrot.lane.b32.xlu0 %v1337, 16
      %v1825 = vpop.permute.xlu0 %1824
      %1826 = vrot.lane.b32.xlu0 %v1338, 16
      %v1827 = vpop.permute.xlu0 %1826
      %1828 = vrot.lane.b32.xlu0 %v1339, 16
      %v1829 = vpop.permute.xlu0 %1828
      %1843 = vrot.lane.b32.xlu0 %v1329, 32
      %v1844 = vpop.permute.xlu0 %1843
      %1845 = vrot.lane.b32.xlu0 %v1330, 32
      %v1846 = vpop.permute.xlu0 %1845
      %1847 = vrot.lane.b32.xlu0 %v1331, 32
      %v1848 = vpop.permute.xlu0 %1847
      %1849 = vrot.lane.b32.xlu0 %v1332, 32
      %v1850 = vpop.permute.xlu0 %1849
      %1851 = vrot.lane.b32.xlu0 %v1333, 32
      %v1852 = vpop.permute.xlu0 %1851
      %1853 = vrot.lane.b32.xlu0 %v1334, 32
      %v1854 = vpop.permute.xlu0 %1853
      %1855 = vrot.lane.b32.xlu0 %v1335, 32
      %v1856 = vpop.permute.xlu0 %1855
      %1857 = vrot.lane.b32.xlu0 %v1336, 32
      %v1858 = vpop.permute.xlu0 %1857
      %1859 = vrot.lane.b32.xlu0 %v1337, 32
      %v1860 = vpop.permute.xlu0 %1859
      %1861 = vrot.lane.b32.xlu0 %v1338, 32
      %v1862 = vpop.permute.xlu0 %1861
      %1863 = vrot.lane.b32.xlu0 %v1339, 32
      %v1864 = vpop.permute.xlu0 %1863
      %1865 = vrot.lane.b32.xlu0 %v1340, 32
      %v1866 = vpop.permute.xlu0 %1865
      %v1880 = vrot.slane %v1339, 1
      %v1881 = vsel %vm1357, %v1381, %v1880
      %v1882 = vrot.slane %v1340, 1
      %v1883 = vsel %vm1357, %v1880, %v1882
      %v1884 = vrot.slane %v1341, 1
      %v1885 = vsel %vm1357, %v1882, %v1884
      %1886 = vrot.lane.b32.xlu0 %v1366, 48
      %v1887 = vpop.permute.xlu0 %1886
      %1888 = vrot.lane.b32.xlu0 %v1368, 48
      %v1889 = vpop.permute.xlu0 %1888
      %1890 = vrot.lane.b32.xlu0 %v1370, 48
      %v1891 = vpop.permute.xlu0 %1890
      %1892 = vrot.lane.b32.xlu0 %v1372, 48
      %v1893 = vpop.permute.xlu0 %1892
      %1894 = vrot.lane.b32.xlu0 %v1374, 48
      %v1895 = vpop.permute.xlu0 %1894
      %1896 = vrot.lane.b32.xlu0 %v1376, 48
      %v1897 = vpop.permute.xlu0 %1896
      %1898 = vrot.lane.b32.xlu0 %v1378, 48
      %v1899 = vpop.permute.xlu0 %1898
      %1900 = vrot.lane.b32.xlu0 %v1380, 48
      %v1901 = vpop.permute.xlu0 %1900
      %1902 = vrot.lane.b32.xlu0 %v1382, 48
      %v1903 = vpop.permute.xlu0 %1902
      %1904 = vrot.lane.b32.xlu0 %v1881, 48
      %v1905 = vpop.permute.xlu0 %1904
      %1906 = vrot.lane.b32.xlu0 %v1883, 48
      %v1907 = vpop.permute.xlu0 %1906
      %1908 = vrot.lane.b32.xlu0 %v1885, 48
      %v1909 = vpop.permute.xlu0 %1908
      %v1922 = vrot.slane %v1339, 2
      %v1923 = vsel %vm1419, %v1443, %v1922
      %v1924 = vrot.slane %v1340, 2
      %v1925 = vsel %vm1419, %v1922, %v1924
      %v1926 = vrot.slane %v1341, 2
      %v1927 = vsel %vm1419, %v1924, %v1926
      %1928 = vrot.lane.b32.xlu0 %v1428, 64
      %v1929 = vpop.permute.xlu0 %1928
      %1930 = vrot.lane.b32.xlu0 %v1430, 64
      %v1931 = vpop.permute.xlu0 %1930
      %1932 = vrot.lane.b32.xlu0 %v1432, 64
      %v1933 = vpop.permute.xlu0 %1932
      %1934 = vrot.lane.b32.xlu0 %v1434, 64
      %v1935 = vpop.permute.xlu0 %1934
      %1936 = vrot.lane.b32.xlu0 %v1436, 64
      %v1937 = vpop.permute.xlu0 %1936
      %1938 = vrot.lane.b32.xlu0 %v1438, 64
      %v1939 = vpop.permute.xlu0 %1938
      %1940 = vrot.lane.b32.xlu0 %v1440, 64
      %v1941 = vpop.permute.xlu0 %1940
      %1942 = vrot.lane.b32.xlu0 %v1442, 64
      %v1943 = vpop.permute.xlu0 %1942
      %1944 = vrot.lane.b32.xlu0 %v1444, 64
      %v1945 = vpop.permute.xlu0 %1944
      %1946 = vrot.lane.b32.xlu0 %v1923, 64
      %v1947 = vpop.permute.xlu0 %1946
      %1948 = vrot.lane.b32.xlu0 %v1925, 64
      %v1949 = vpop.permute.xlu0 %1948
      %1950 = vrot.lane.b32.xlu0 %v1927, 64
      %v1951 = vpop.permute.xlu0 %1950
      %v1964 = vrot.slane %v1339, 3
      %v1965 = vsel %vm1481, %v1505, %v1964
      %v1966 = vrot.slane %v1340, 3
      %v1967 = vsel %vm1481, %v1964, %v1966
      %v1968 = vrot.slane %v1341, 3
      %v1969 = vsel %vm1481, %v1966, %v1968
      %1970 = vrot.lane.b32.xlu0 %v1490, 80
      %v1971 = vpop.permute.xlu0 %1970
      %1972 = vrot.lane.b32.xlu0 %v1492, 80
      %v1973 = vpop.permute.xlu0 %1972
      %1974 = vrot.lane.b32.xlu0 %v1494, 80
      %v1975 = vpop.permute.xlu0 %1974
      %1976 = vrot.lane.b32.xlu0 %v1496, 80
      %v1977 = vpop.permute.xlu0 %1976
      %1978 = vrot.lane.b32.xlu0 %v1498, 80
      %v1979 = vpop.permute.xlu0 %1978
      %1980 = vrot.lane.b32.xlu0 %v1500, 80
      %v1981 = vpop.permute.xlu0 %1980
      %1982 = vrot.lane.b32.xlu0 %v1502, 80
      %v1983 = vpop.permute.xlu0 %1982
      %1984 = vrot.lane.b32.xlu0 %v1504, 80
      %v1985 = vpop.permute.xlu0 %1984
      %1986 = vrot.lane.b32.xlu0 %v1506, 80
      %v1987 = vpop.permute.xlu0 %1986
      %1988 = vrot.lane.b32.xlu0 %v1965, 80
      %v1989 = vpop.permute.xlu0 %1988
      %1990 = vrot.lane.b32.xlu0 %v1967, 80
      %v1991 = vpop.permute.xlu0 %1990
      %1992 = vrot.lane.b32.xlu0 %v1969, 80
      %v1993 = vpop.permute.xlu0 %1992
      %v2006 = vrot.slane %v1340, 4
      %v2007 = vsel %vm1543, %v1606, %v2006
      %v2008 = vrot.slane %v1341, 4
      %v2009 = vsel %vm1543, %v2006, %v2008
      %2010 = vrot.lane.b32.xlu0 %v1552, 96
      %v2011 = vpop.permute.xlu0 %2010
      %2012 = vrot.lane.b32.xlu0 %v1554, 96
      %v2013 = vpop.permute.xlu0 %2012
      %2014 = vrot.lane.b32.xlu0 %v1556, 96
      %v2015 = vpop.permute.xlu0 %2014
      %2016 = vrot.lane.b32.xlu0 %v1558, 96
      %v2017 = vpop.permute.xlu0 %2016
      %2018 = vrot.lane.b32.xlu0 %v1560, 96
      %v2019 = vpop.permute.xlu0 %2018
      %2020 = vrot.lane.b32.xlu0 %v1562, 96
      %v2021 = vpop.permute.xlu0 %2020
      %2022 = vrot.lane.b32.xlu0 %v1564, 96
      %v2023 = vpop.permute.xlu0 %2022
      %2024 = vrot.lane.b32.xlu0 %v1566, 96
      %v2025 = vpop.permute.xlu0 %2024
      %2026 = vrot.lane.b32.xlu0 %v1568, 96
      %v2027 = vpop.permute.xlu0 %2026
      %2028 = vrot.lane.b32.xlu0 %v1607, 96
      %v2029 = vpop.permute.xlu0 %2028
      %2030 = vrot.lane.b32.xlu0 %v2007, 96
      %v2031 = vpop.permute.xlu0 %2030
      %2032 = vrot.lane.b32.xlu0 %v2009, 96
      %v2033 = vpop.permute.xlu0 %2032
      %v2047 = vrot.slane %v1342, 4
      %v2048 = vsel %vm1543, %v2008, %v2047
      %2049 = vrot.lane.b32.xlu0 %v1554, 112
      %v2050 = vpop.permute.xlu0 %2049
      %2051 = vrot.lane.b32.xlu0 %v1556, 112
      %v2052 = vpop.permute.xlu0 %2051
      %2053 = vrot.lane.b32.xlu0 %v1558, 112
      %v2054 = vpop.permute.xlu0 %2053
      %2055 = vrot.lane.b32.xlu0 %v1560, 112
      %v2056 = vpop.permute.xlu0 %2055
      %2057 = vrot.lane.b32.xlu0 %v1562, 112
      %v2058 = vpop.permute.xlu0 %2057
      %2059 = vrot.lane.b32.xlu0 %v1564, 112
      %v2060 = vpop.permute.xlu0 %2059
      %2061 = vrot.lane.b32.xlu0 %v1566, 112
      %v2062 = vpop.permute.xlu0 %2061
      %2063 = vrot.lane.b32.xlu0 %v1568, 112
      %v2064 = vpop.permute.xlu0 %2063
      %2065 = vrot.lane.b32.xlu0 %v1607, 112
      %v2066 = vpop.permute.xlu0 %2065
      %2067 = vrot.lane.b32.xlu0 %v2007, 112
      %v2068 = vpop.permute.xlu0 %2067
      %2069 = vrot.lane.b32.xlu0 %v2009, 112
      %v2070 = vpop.permute.xlu0 %2069
      %2071 = vrot.lane.b32.xlu0 %v2048, 112
      %v2072 = vpop.permute.xlu0 %2071
      %vm2085 = vcmask 130048
      %v2086 = vsel %vm2085, %v1326, %v1384
      %v2087 = vsel %vm2085, %v1327, %v1386
      %v2088 = vsel %vm2085, %v1328, %v1388
      %v2089 = vsel %vm2085, %v1329, %v1390
      %v2090 = vsel %vm2085, %v1330, %v1392
      %v2091 = vsel %vm2085, %v1331, %v1394
      %v2092 = vsel %vm2085, %v1332, %v1396
      %v2093 = vsel %vm2085, %v1333, %v1398
      %v2094 = vsel %vm2085, %v1334, %v1400
      %v2095 = vsel %vm2085, %v1335, %v1402
      %v2096 = vsel %vm2085, %v1336, %v1404
      %v2097 = vsel %vm2085, %v1337, %v1406
      %v2098 = vsel %vm353, %v2086, %v1446
      %v2099 = vsel %vm353, %v2087, %v1448
      %v2100 = vsel %vm353, %v2088, %v1450
      %v2101 = vsel %vm353, %v2089, %v1452
      %v2102 = vsel %vm353, %v2090, %v1454
      %v2103 = vsel %vm353, %v2091, %v1456
      %v2104 = vsel %vm353, %v2092, %v1458
      %v2105 = vsel %vm353, %v2093, %v1460
      %v2106 = vsel %vm353, %v2094, %v1462
      %v2107 = vsel %vm353, %v2095, %v1464
      %v2108 = vsel %vm353, %v2096, %v1466
      %v2109 = vsel %vm353, %v2097, %v1468
      %vm2110 = vcmask 392192
      %v2111 = vsel %vm2110, %v2098, %v1508
      %v2112 = vsel %vm2110, %v2099, %v1510
      %v2113 = vsel %vm2110, %v2100, %v1512
      %v2114 = vsel %vm2110, %v2101, %v1514
      %v2115 = vsel %vm2110, %v2102, %v1516
      %v2116 = vsel %vm2110, %v2103, %v1518
      %v2117 = vsel %vm2110, %v2104, %v1520
      %v2118 = vsel %vm2110, %v2105, %v1522
      %v2119 = vsel %vm2110, %v2106, %v1524
      %v2120 = vsel %vm2110, %v2107, %v1526
      %v2121 = vsel %vm2110, %v2108, %v1528
      %v2122 = vsel %vm2110, %v2109, %v1530
      %vm2123 = vcmask 523264
      %v2124 = vsel %vm2123, %v2111, %v1570
      %v2125 = vsel %vm2123, %v2112, %v1572
      %v2126 = vsel %vm2123, %v2113, %v1574
      %v2127 = vsel %vm2123, %v2114, %v1576
      %v2128 = vsel %vm2123, %v2115, %v1578
      %v2129 = vsel %vm2123, %v2116, %v1580
      %v2130 = vsel %vm2123, %v2117, %v1582
      %v2131 = vsel %vm2123, %v2118, %v1584
      %v2132 = vsel %vm2123, %v2119, %v1586
      %v2133 = vsel %vm2123, %v2120, %v1588
      %v2134 = vsel %vm2123, %v2121, %v1590
      %v2135 = vsel %vm2123, %v2122, %v1592
      %vm2136 = vcmask 654336
      %v2137 = vsel %vm2136, %v2124, %v1609
      %v2138 = vsel %vm2136, %v2125, %v1611
      %v2139 = vsel %vm2136, %v2126, %v1613
      %v2140 = vsel %vm2136, %v2127, %v1615
      %v2141 = vsel %vm2136, %v2128, %v1617
      %v2142 = vsel %vm2136, %v2129, %v1619
      %v2143 = vsel %vm2136, %v2130, %v1621
      %v2144 = vsel %vm2136, %v2131, %v1623
      %v2145 = vsel %vm2136, %v2132, %v1625
      %v2146 = vsel %vm2136, %v2133, %v1627
      %v2147 = vsel %vm2136, %v2134, %v1629
      %v2148 = vsel %vm2136, %v2135, %v1631
      %vm2149 = vcmask 785408
      %v2150 = vsel %vm2149, %v2137, %v1671
      %v2151 = vsel %vm2149, %v2138, %v1673
      %v2152 = vsel %vm2149, %v2139, %v1675
      %v2153 = vsel %vm2149, %v2140, %v1677
      %v2154 = vsel %vm2149, %v2141, %v1679
      %v2155 = vsel %vm2149, %v2142, %v1681
      %v2156 = vsel %vm2149, %v2143, %v1683
      %v2157 = vsel %vm2149, %v2144, %v1685
      %v2158 = vsel %vm2149, %v2145, %v1687
      %v2159 = vsel %vm2149, %v2146, %v1689
      %v2160 = vsel %vm2149, %v2147, %v1691
      %v2161 = vsel %vm2149, %v2148, %v1693
      %vm2162 = vcmask 916480
      %v2163 = vsel %vm2162, %v2150, %v1733
      %v2164 = vsel %vm2162, %v2151, %v1735
      %v2165 = vsel %vm2162, %v2152, %v1737
      %v2166 = vsel %vm2162, %v2153, %v1739
      %v2167 = vsel %vm2162, %v2154, %v1741
      %v2168 = vsel %vm2162, %v2155, %v1743
      %v2169 = vsel %vm2162, %v2156, %v1745
      %v2170 = vsel %vm2162, %v2157, %v1747
      %v2171 = vsel %vm2162, %v2158, %v1749
      %v2172 = vsel %vm2162, %v2159, %v1751
      %v2173 = vsel %vm2162, %v2160, %v1753
      %v2174 = vsel %vm2162, %v2161, %v1755
      %v2175 = vsel %vm2085, %v1771, %v1807
      %v2176 = vsel %vm2085, %v1773, %v1809
      %v2177 = vsel %vm2085, %v1775, %v1811
      %v2178 = vsel %vm2085, %v1777, %v1813
      %v2179 = vsel %vm2085, %v1779, %v1815
      %v2180 = vsel %vm2085, %v1781, %v1817
      %v2181 = vsel %vm2085, %v1783, %v1819
      %v2182 = vsel %vm2085, %v1785, %v1821
      %v2183 = vsel %vm2085, %v1787, %v1823
      %v2184 = vsel %vm2085, %v1789, %v1825
      %v2185 = vsel %vm2085, %v1791, %v1827
      %v2186 = vsel %vm2085, %v1793, %v1829
      %v2187 = vsel %vm353, %v2175, %v1844
      %v2188 = vsel %vm353, %v2176, %v1846
      %v2189 = vsel %vm353, %v2177, %v1848
      %v2190 = vsel %vm353, %v2178, %v1850
      %v2191 = vsel %vm353, %v2179, %v1852
      %v2192 = vsel %vm353, %v2180, %v1854
      %v2193 = vsel %vm353, %v2181, %v1856
      %v2194 = vsel %vm353, %v2182, %v1858
      %v2195 = vsel %vm353, %v2183, %v1860
      %v2196 = vsel %vm353, %v2184, %v1862
      %v2197 = vsel %vm353, %v2185, %v1864
      %v2198 = vsel %vm353, %v2186, %v1866
      %v2199 = vsel %vm2110, %v2187, %v1887
      %v2200 = vsel %vm2110, %v2188, %v1889
      %v2201 = vsel %vm2110, %v2189, %v1891
      %v2202 = vsel %vm2110, %v2190, %v1893
      %v2203 = vsel %vm2110, %v2191, %v1895
      %v2204 = vsel %vm2110, %v2192, %v1897
      %v2205 = vsel %vm2110, %v2193, %v1899
      %v2206 = vsel %vm2110, %v2194, %v1901
      %v2207 = vsel %vm2110, %v2195, %v1903
      %v2208 = vsel %vm2110, %v2196, %v1905
      %v2209 = vsel %vm2110, %v2197, %v1907
      %v2210 = vsel %vm2110, %v2198, %v1909
      %v2211 = vsel %vm2123, %v2199, %v1929
      %v2212 = vsel %vm2123, %v2200, %v1931
      %v2213 = vsel %vm2123, %v2201, %v1933
      %v2214 = vsel %vm2123, %v2202, %v1935
      %v2215 = vsel %vm2123, %v2203, %v1937
      %v2216 = vsel %vm2123, %v2204, %v1939
      %v2217 = vsel %vm2123, %v2205, %v1941
      %v2218 = vsel %vm2123, %v2206, %v1943
      %v2219 = vsel %vm2123, %v2207, %v1945
      %v2220 = vsel %vm2123, %v2208, %v1947
      %v2221 = vsel %vm2123, %v2209, %v1949
      %v2222 = vsel %vm2123, %v2210, %v1951
      %v2223 = vsel %vm2136, %v2211, %v1971
      %v2224 = vsel %vm2136, %v2212, %v1973
      %v2225 = vsel %vm2136, %v2213, %v1975
      %v2226 = vsel %vm2136, %v2214, %v1977
      %v2227 = vsel %vm2136, %v2215, %v1979
      %v2228 = vsel %vm2136, %v2216, %v1981
      %v2229 = vsel %vm2136, %v2217, %v1983
      %v2230 = vsel %vm2136, %v2218, %v1985
      %v2231 = vsel %vm2136, %v2219, %v1987
      %v2232 = vsel %vm2136, %v2220, %v1989
      %v2233 = vsel %vm2136, %v2221, %v1991
      %v2234 = vsel %vm2136, %v2222, %v1993
      %v2235 = vsel %vm2149, %v2223, %v2011
      %v2236 = vsel %vm2149, %v2224, %v2013
      %v2237 = vsel %vm2149, %v2225, %v2015
      %v2238 = vsel %vm2149, %v2226, %v2017
      %v2239 = vsel %vm2149, %v2227, %v2019
      %v2240 = vsel %vm2149, %v2228, %v2021
      %v2241 = vsel %vm2149, %v2229, %v2023
      %v2242 = vsel %vm2149, %v2230, %v2025
      %v2243 = vsel %vm2149, %v2231, %v2027
      %v2244 = vsel %vm2149, %v2232, %v2029
      %v2245 = vsel %vm2149, %v2233, %v2031
      %v2246 = vsel %vm2149, %v2234, %v2033
      %v2247 = vsel %vm2162, %v2235, %v2050
      %v2248 = vsel %vm2162, %v2236, %v2052
      %v2249 = vsel %vm2162, %v2237, %v2054
      %v2250 = vsel %vm2162, %v2238, %v2056
      %v2251 = vsel %vm2162, %v2239, %v2058
      %v2252 = vsel %vm2162, %v2240, %v2060
      %v2253 = vsel %vm2162, %v2241, %v2062
      %v2254 = vsel %vm2162, %v2242, %v2064
      %v2255 = vsel %vm2162, %v2243, %v2066
      %v2256 = vsel %vm2162, %v2244, %v2068
      %v2257 = vsel %vm2162, %v2245, %v2070
      %v2258 = vsel %vm2162, %v2246, %v2072
      %v2259 = vrot.slane %v1342, 1
      %v2260 = vsel %vm1357, %v1884, %v2259
      %2261 = vrot.lane.b32.xlu0 %v1881, 16
      %v2262 = vpop.permute.xlu0 %2261
      %2263 = vrot.lane.b32.xlu0 %v1883, 16
      %v2264 = vpop.permute.xlu0 %2263
      %2265 = vrot.lane.b32.xlu0 %v1885, 16
      %v2266 = vpop.permute.xlu0 %2265
      %2267 = vrot.lane.b32.xlu0 %v2260, 16
      %v2268 = vpop.permute.xlu0 %2267
      %2269 = vrot.lane.b32.xlu0 %v2259, 16
      %v2270 = vpop.permute.xlu0 %2269
      %v2276 = vrot.slane %v1342, 2
      %v2277 = vsel %vm1419, %v1926, %v2276
      %2278 = vrot.lane.b32.xlu0 %v1923, 32
      %v2279 = vpop.permute.xlu0 %2278
      %2280 = vrot.lane.b32.xlu0 %v1925, 32
      %v2281 = vpop.permute.xlu0 %2280
      %2282 = vrot.lane.b32.xlu0 %v1927, 32
      %v2283 = vpop.permute.xlu0 %2282
      %2284 = vrot.lane.b32.xlu0 %v2277, 32
      %v2285 = vpop.permute.xlu0 %2284
      %2286 = vrot.lane.b32.xlu0 %v2276, 32
      %v2287 = vpop.permute.xlu0 %2286
      %v2293 = vrot.slane %v1342, 3
      %v2294 = vsel %vm1481, %v1968, %v2293
      %2295 = vrot.lane.b32.xlu0 %v1491, 48
      %v2296 = vpop.permute.xlu0 %2295
      %2297 = vrot.lane.b32.xlu0 %v1965, 48
      %v2298 = vpop.permute.xlu0 %2297
      %2299 = vrot.lane.b32.xlu0 %v1967, 48
      %v2300 = vpop.permute.xlu0 %2299
      %2301 = vrot.lane.b32.xlu0 %v1969, 48
      %v2302 = vpop.permute.xlu0 %2301
      %2303 = vrot.lane.b32.xlu0 %v2294, 48
      %v2304 = vpop.permute.xlu0 %2303
      %2305 = vrot.lane.b32.xlu0 %v2293, 48
      %v2306 = vpop.permute.xlu0 %2305
      %v2314 = vrot.slane %v1343, 3
      %v2315 = vsel %vm1481, %v2293, %v2314
      %2316 = vrot.lane.b32.xlu0 %v1493, 64
      %v2317 = vpop.permute.xlu0 %2316
      %2318 = vrot.lane.b32.xlu0 %v1496, 64
      %v2319 = vpop.permute.xlu0 %2318
      %2320 = vrot.lane.b32.xlu0 %v1498, 64
      %v2321 = vpop.permute.xlu0 %2320
      %2322 = vrot.lane.b32.xlu0 %v1500, 64
      %v2323 = vpop.permute.xlu0 %2322
      %2324 = vrot.lane.b32.xlu0 %v1502, 64
      %v2325 = vpop.permute.xlu0 %2324
      %2326 = vrot.lane.b32.xlu0 %v1504, 64
      %v2327 = vpop.permute.xlu0 %2326
      %2328 = vrot.lane.b32.xlu0 %v1506, 64
      %v2329 = vpop.permute.xlu0 %2328
      %2330 = vrot.lane.b32.xlu0 %v1965, 64
      %v2331 = vpop.permute.xlu0 %2330
      %2332 = vrot.lane.b32.xlu0 %v1967, 64
      %v2333 = vpop.permute.xlu0 %2332
      %2334 = vrot.lane.b32.xlu0 %v1969, 64
      %v2335 = vpop.permute.xlu0 %2334
      %2336 = vrot.lane.b32.xlu0 %v2294, 64
      %v2337 = vpop.permute.xlu0 %2336
      %2338 = vrot.lane.b32.xlu0 %v2315, 64
      %v2339 = vpop.permute.xlu0 %2338
      %2340 = vrot.lane.b32.xlu0 %v2314, 64
      %v2341 = vpop.permute.xlu0 %2340
      %v2356 = vrot.slane %v1343, 4
      %v2357 = vsel %vm1543, %v2047, %v2356
      %v2358 = vrot.slane 0.0, 4
      %v2359 = vsel %vm1543, %v2356, %v2358
      %2360 = vrot.lane.b32.xlu0 %v1555, 80
      %v2361 = vpop.permute.xlu0 %2360
      %2362 = vrot.lane.b32.xlu0 %v2007, 80
      %v2363 = vpop.permute.xlu0 %2362
      %2364 = vrot.lane.b32.xlu0 %v2009, 80
      %v2365 = vpop.permute.xlu0 %2364
      %2366 = vrot.lane.b32.xlu0 %v2048, 80
      %v2367 = vpop.permute.xlu0 %2366
      %2368 = vrot.lane.b32.xlu0 %v2357, 80
      %v2369 = vpop.permute.xlu0 %2368
      %2370 = vrot.lane.b32.xlu0 %v2359, 80
      %v2371 = vpop.permute.xlu0 %2370
      %v2378 = vrot.slane %v1340, 5
      %v2379 = vsel %vm1644, %v1668, %v2378
      %v2380 = vrot.slane %v1341, 5
      %v2381 = vsel %vm1644, %v2378, %v2380
      %v2382 = vrot.slane %v1342, 5
      %v2383 = vsel %vm1644, %v2380, %v2382
      %v2384 = vrot.slane %v1343, 5
      %v2385 = vsel %vm1644, %v2382, %v2384
      %v2386 = vrot.slane 0.0, 5
      %v2387 = vsel %vm1644, %v2384, %v2386
      %2388 = vrot.lane.b32.xlu0 %v1654, 96
      %v2389 = vpop.permute.xlu0 %2388
      %2390 = vrot.lane.b32.xlu0 %v2379, 96
      %v2391 = vpop.permute.xlu0 %2390
      %2392 = vrot.lane.b32.xlu0 %v2381, 96
      %v2393 = vpop.permute.xlu0 %2392
      %2394 = vrot.lane.b32.xlu0 %v2383, 96
      %v2395 = vpop.permute.xlu0 %2394
      %2396 = vrot.lane.b32.xlu0 %v2385, 96
      %v2397 = vpop.permute.xlu0 %2396
      %2398 = vrot.lane.b32.xlu0 %v2387, 96
      %v2399 = vpop.permute.xlu0 %2398
      %v2406 = vrot.slane %v1340, 6
      %v2407 = vsel %vm1706, %v1730, %v2406
      %v2408 = vrot.slane %v1341, 6
      %v2409 = vsel %vm1706, %v2406, %v2408
      %v2410 = vrot.slane %v1342, 6
      %v2411 = vsel %vm1706, %v2408, %v2410
      %v2412 = vrot.slane %v1343, 6
      %v2413 = vsel %vm1706, %v2410, %v2412
      %v2414 = vrot.slane 0.0, 6
      %v2415 = vsel %vm1706, %v2412, %v2414
      %2416 = vrot.lane.b32.xlu0 %v1716, 112
      %v2417 = vpop.permute.xlu0 %2416
      %2418 = vrot.lane.b32.xlu0 %v2407, 112
      %v2419 = vpop.permute.xlu0 %2418
      %2420 = vrot.lane.b32.xlu0 %v2409, 112
      %v2421 = vpop.permute.xlu0 %2420
      %2422 = vrot.lane.b32.xlu0 %v2411, 112
      %v2423 = vpop.permute.xlu0 %2422
      %2424 = vrot.lane.b32.xlu0 %v2413, 112
      %v2425 = vpop.permute.xlu0 %2424
      %2426 = vrot.lane.b32.xlu0 %v2415, 112
      %v2427 = vpop.permute.xlu0 %2426
      %v2434 = vrot.slane %v1340, 7
      %v2435 = vsel %vm1768, %v1792, %v2434
      %v2436 = vrot.slane %v1341, 7
      %v2437 = vsel %vm1768, %v2434, %v2436
      %v2438 = vrot.slane %v1342, 7
      %v2439 = vsel %vm1768, %v2436, %v2438
      %v2440 = vrot.slane %v1343, 7
      %v2441 = vsel %vm1768, %v2438, %v2440
      %v2442 = vrot.slane 0.0, 7
      %v2443 = vsel %vm1768, %v2440, %v2442
      %v2444 = vsel %vm2085, %v1338, %v2262
      %v2445 = vsel %vm2085, %v1339, %v2264
      %v2446 = vsel %vm2085, %v1340, %v2266
      %v2447 = vsel %vm2085, %v1341, %v2268
      %v2448 = vsel %vm2085, %v1342, %v2270
      %v2449 = vsel %vm353, %v2444, %v2279
      %v2450 = vsel %vm353, %v2445, %v2281
      %v2451 = vsel %vm353, %v2446, %v2283
      %v2452 = vsel %vm353, %v2447, %v2285
      %v2453 = vsel %vm353, %v2448, %v2287
      %v2454 = vsel %vm2110, %v2102, %v2296
      %v2455 = vsel %vm2110, %v2449, %v2298
      %v2456 = vsel %vm2110, %v2450, %v2300
      %v2457 = vsel %vm2110, %v2451, %v2302
      %v2458 = vsel %vm2110, %v2452, %v2304
      %v2459 = vsel %vm2110, %v2453, %v2306
      %v2460 = vsel %vm2123, %v2454, %v2317
      %v2461 = vsel %vm2123, %v2116, %v2319
      %v2462 = vsel %vm2123, %v2117, %v2321
      %v2463 = vsel %vm2123, %v2118, %v2323
      %v2464 = vsel %vm2123, %v2119, %v2325
      %v2465 = vsel %vm2123, %v2120, %v2327
      %v2466 = vsel %vm2123, %v2121, %v2329
      %v2467 = vsel %vm2123, %v2122, %v2331
      %v2468 = vsel %vm2123, %v2455, %v2333
      %v2469 = vsel %vm2123, %v2456, %v2335
      %v2470 = vsel %vm2123, %v2457, %v2337
      %v2471 = vsel %vm2123, %v2458, %v2339
      %v2472 = vsel %vm2123, %v2459, %v2341
      %v2473 = vsel %vm2136, %v2460, %v2361
      %v2474 = vsel %vm2136, %v2461, %v1619
      %v2475 = vsel %vm2136, %v2462, %v1621
      %v2476 = vsel %vm2136, %v2463, %v1623
      %v2477 = vsel %vm2136, %v2464, %v1625
      %v2478 = vsel %vm2136, %v2465, %v1627
      %v2479 = vsel %vm2136, %v2466, %v1629
      %v2480 = vsel %vm2136, %v2467, %v1631
      %v2481 = vsel %vm2136, %v2468, %v2363
      %v2482 = vsel %vm2136, %v2469, %v2365
      %v2483 = vsel %vm2136, %v2470, %v2367
      %v2484 = vsel %vm2136, %v2471, %v2369
      %v2485 = vsel %vm2136, %v2472, %v2371
      %v2486 = vsel %vm2149, %v2473, %v2389
      %v2487 = vsel %vm2149, %v2474, %v1681
      %v2488 = vsel %vm2149, %v2475, %v1683
      %v2489 = vsel %vm2149, %v2476, %v1685
      %v2490 = vsel %vm2149, %v2477, %v1687
      %v2491 = vsel %vm2149, %v2478, %v1689
      %v2492 = vsel %vm2149, %v2479, %v1691
      %v2493 = vsel %vm2149, %v2480, %v1693
      %v2494 = vsel %vm2149, %v2481, %v2391
      %v2495 = vsel %vm2149, %v2482, %v2393
      %v2496 = vsel %vm2149, %v2483, %v2395
      %v2497 = vsel %vm2149, %v2484, %v2397
      %v2498 = vsel %vm2149, %v2485, %v2399
      %v2499 = vsel %vm2162, %v2486, %v2417
      %v2500 = vsel %vm2162, %v2487, %v1743
      %v2501 = vsel %vm2162, %v2488, %v1745
      %v2502 = vsel %vm2162, %v2489, %v1747
      %v2503 = vsel %vm2162, %v2490, %v1749
      %v2504 = vsel %vm2162, %v2491, %v1751
      %v2505 = vsel %vm2162, %v2492, %v1753
      %v2506 = vsel %vm2162, %v2493, %v1755
      %v2507 = vsel %vm2162, %v2494, %v2419
      %v2508 = vsel %vm2162, %v2495, %v2421
      %v2509 = vsel %vm2162, %v2496, %v2423
      %v2510 = vsel %vm2162, %v2497, %v2425
      %v2511 = vsel %vm2162, %v2498, %v2427
      %v2525 = vrot.slane %v2499, 5
      %v2526 = vrot.slane %v2500, 5
      %v2527 = vsel %vm1644, %v2525, %v2526
      %v2528 = vrot.slane %v1778, 5
      %v2529 = vrot.slane %v1781, 5
      %v2530 = vsel %vm1644, %v2528, %v2529
      %v2531 = vrot.slane %v2501, 5
      %v2532 = vsel %vm1644, %v2526, %v2531
      %v2533 = vrot.slane %v1783, 5
      %v2534 = vsel %vm1644, %v2529, %v2533
      %v2535 = vrot.slane %v2502, 5
      %v2536 = vsel %vm1644, %v2531, %v2535
      %v2537 = vrot.slane %v1785, 5
      %v2538 = vsel %vm1644, %v2533, %v2537
      %v2539 = vrot.slane %v2503, 5
      %v2540 = vsel %vm1644, %v2535, %v2539
      %v2541 = vrot.slane %v1787, 5
      %v2542 = vsel %vm1644, %v2537, %v2541
      %v2543 = vrot.slane %v2504, 5
      %v2544 = vsel %vm1644, %v2539, %v2543
      %v2545 = vrot.slane %v1789, 5
      %v2546 = vsel %vm1644, %v2541, %v2545
      %v2547 = vrot.slane %v2505, 5
      %v2548 = vsel %vm1644, %v2543, %v2547
      %v2549 = vrot.slane %v1791, 5
      %v2550 = vsel %vm1644, %v2545, %v2549
      %v2551 = vrot.slane %v2506, 5
      %v2552 = vsel %vm1644, %v2547, %v2551
      %v2553 = vrot.slane %v1793, 5
      %v2554 = vsel %vm1644, %v2549, %v2553
      %v2555 = vrot.slane %v2507, 5
      %v2556 = vsel %vm1644, %v2551, %v2555
      %v2557 = vrot.slane %v2435, 5
      %v2558 = vsel %vm1644, %v2553, %v2557
      %v2559 = vrot.slane %v2508, 5
      %v2560 = vsel %vm1644, %v2555, %v2559
      %v2561 = vrot.slane %v2437, 5
      %v2562 = vsel %vm1644, %v2557, %v2561
      %v2563 = vrot.slane %v2509, 5
      %v2564 = vsel %vm1644, %v2559, %v2563
      %v2565 = vrot.slane %v2439, 5
      %v2566 = vsel %vm1644, %v2561, %v2565
      %v2567 = vrot.slane %v2510, 5
      %v2568 = vsel %vm1644, %v2563, %v2567
      %v2569 = vrot.slane %v2441, 5
      %v2570 = vsel %vm1644, %v2565, %v2569
      %v2571 = vrot.slane %v2511, 5
      %v2572 = vsel %vm1644, %v2567, %v2571
      %v2573 = vrot.slane %v2443, 5
      %v2574 = vsel %vm1644, %v2569, %v2573
      %v2587 = vld [vmem:[%s3] sm:$0xff]
      %v2588 = vld [vmem:[%s3 + $0x8] sm:$0xff]
      %v2589 = vld [vmem:[%s3 + $0x10] sm:$0xff]
      %v2590 = vld [vmem:[%s3 + $0x18] sm:$0xff]
      %v2591 = vld [vmem:[%s3 + $0x20] sm:$0xff]
      %v2592 = vld [vmem:[%s3 + $0x28] sm:$0xff]
      %v2593 = vld [vmem:[%s3 + $0x30] sm:$0xff]
      %v2594 = vld [vmem:[%s3 + $0x38] sm:$0xff]
      %v2595 = vld [vmem:[%s3 + $0x40] sm:$0xff]
      %v2596 = vld [vmem:[%s3 + $0x48] sm:$0xff]
      %v2597 = vld [vmem:[%s3 + $0x50] sm:$0xff]
      %v2598 = vld [vmem:[%s3 + $0x58] sm:$0xff]
      %v2599 = vld [vmem:[%s3 + $0x60] sm:$0xff]
      %v2600 = vld [vmem:[%s3 + $0x68] sm:$0xff]
      %v2601 = vld [vmem:[%s3 + $0x70] sm:$0xff]
      %v2602 = vld [vmem:[%s3 + $0x78] sm:$0xff]
      %v2603 = vld [vmem:[%s3 + $0x80] sm:$0xff]
      %v2604 = vld [vmem:[%s3 + $0x88] sm:$0xff]
      %v2605 = vld [vmem:[%s3 + $0x90] sm:$0xff]
      %v2606 = vld [vmem:[%s3 + $0x98] sm:$0xff]
      %v2607 = vld [vmem:[%s3 + $0xa0] sm:$0xff]
      %v2608 = vld [vmem:[%s3 + $0xa8] sm:$0xff]
      %v2609 = vld [vmem:[%s3 + $0xb0] sm:$0xff]
      %v2610 = vld [vmem:[%s3 + $0xb8] sm:$0xff]
      %v2611 = vld [vmem:[%s3 + $0xc0] sm:$0xff]
      %v2612 = vld [vmem:[%s3 + $0xc8] sm:$0xff]
      %v2613 = vld [vmem:[%s3 + $0xd0] sm:$0xff]
      %v2614 = vld [vmem:[%s3 + $0xd8] sm:$0xff]
      %v2615 = vld [vmem:[%s3 + $0xe0] sm:$0xff]
      %v2616 = vld [vmem:[%s3 + $0xe8] sm:$0xff]
      %v2617 = vld [vmem:[%s3 + $0xf0] sm:$0xff]
      %v2618 = vld [vmem:[%s3 + $0xf8] sm:$0xff]
      %v2619 = vld [vmem:[%s3 + $0x100] sm:$0xff]
      %v2620 = vld [vmem:[%s3 + $0x108] sm:$0xff]
      %v2621 = vld [vmem:[%s3 + $0x110] sm:$0xff]
      %v2622 = vld [vmem:[%s3 + $0x118] sm:$0xff]
      %v2623 = vld [vmem:[%s3 + $0x120] sm:$0xff]
      %v2624 = vld [vmem:[%s3 + $0x128] sm:$0xff]
      %v2625 = vld [vmem:[%s3 + $0x130] sm:$0xff]
      %v2626 = vld [vmem:[%s3 + $0x138] sm:$0xff]
      %v2627 = vld [vmem:[%s3 + $0x140] sm:$0xff]
      %v2628 = vld [vmem:[%s3 + $0x148] sm:$0xff]
      %v2629 = vld [vmem:[%s3 + $0x150] sm:$0xff]
      %v2630 = vld [vmem:[%s3 + $0x158] sm:$0xff]
      %v2631 = vld [vmem:[%s3 + $0x160] sm:$0xff]
      %v2632 = vld [vmem:[%s3 + $0x168] sm:$0xff]
      %v2633 = vld [vmem:[%s3 + $0x170] sm:$0xff]
      %v2634 = vld [vmem:[%s3 + $0x178] sm:$0xff]
      %v2635 = vld [vmem:[%s3 + $0x180] sm:$0xff]
      %v2636 = vld [vmem:[%s3 + $0x188] sm:$0xff]
      %v2637 = vld [vmem:[%s4] sm:$0x1]
      %v2639 = vlaneseq
      %v2640 = vshrl.u32 %v2639, 7
      %v2641 = vsub.s32 0, %v2640
      %v2642 = vrot.slane %v2637, %v2641
      %v2644 = vsel %vm2085, %v2530, 0
      %v2646 = vsel %vm2085, %v2534, 0
      %v2648 = vsel %vm2085, %v2538, 0
      %v2650 = vsel %vm2085, %v2542, 0
      %v2652 = vsel %vm2085, %v2546, 0
      %v2654 = vsel %vm2085, %v2550, 0
      %v2656 = vsel %vm2085, %v2554, 0
      %v2658 = vsel %vm2085, %v2558, 0
      %v2660 = vsel %vm2085, %v2562, 0
      %v2662 = vsel %vm2085, %v2566, 0
      %v2664 = vsel %vm2085, %v2570, 0
      %v2666 = vsel %vm2085, %v2574, 0
      %2668 = vmatprep.subr.mxu0 0.0
      %2669 = vmatpush1.msra.mxu0 %v2602
      %2670 = vmatprep.subr.mxu0 0.0
      %2671 = vmatpush1.msra.mxu0 %v2601
      %2672 = vmatprep.subr.mxu0 0.0
      %2673 = vmatpush1.msra.mxu0 %v2600
      %2674 = vmatprep.subr.mxu0 0.0
      %2675 = vmatpush1.msra.mxu0 %v2599
      %2676 = vmatprep.subr.mxu0 0.0
      %2677 = vmatpush1.msra.mxu0 %v2598
      %2678 = vmatprep.subr.mxu0 0.0
      %2679 = vmatpush1.msra.mxu0 %v2597
      %2680 = vmatprep.subr.mxu0 0.0
      %2681 = vmatpush1.msra.mxu0 %v2596
      %2682 = vmatprep.subr.mxu0 0.0
      %2683 = vmatpush1.msra.mxu0 %v2595
      %2684 = vmatprep.subr.mxu0 0.0
      %2685 = vmatpush1.msra.mxu0 %v2594
      %2686 = vmatprep.subr.mxu0 0.0
      %2687 = vmatpush1.msra.mxu0 %v2593
      %2688 = vmatprep.subr.mxu0 0.0
      %2689 = vmatpush1.msra.mxu0 %v2592
      %2690 = vmatprep.subr.mxu0 0.0
      %2691 = vmatpush1.msra.mxu0 %v2591
      %2692 = vmatprep.subr.mxu0 0.0
      %2693 = vmatpush1.msra.mxu0 %v2590
      %2694 = vmatprep.subr.mxu0 0.0
      %2695 = vmatpush1.msra.mxu0 %v2589
      %2696 = vmatprep.subr.mxu0 0.0
      %2697 = vmatpush1.msra.mxu0 %v2588
      %2698 = vmatprep.subr.mxu0 0.0
      %2699 = vmatpush1.msra.mxu0 %v2587
      %2700 = vmatprep.subr.mxu0 0.0
      %2701 = vmatpush2.msra.mxu0 %v2618
      %2702 = vmatprep.subr.mxu0 0.0
      %2703 = vmatpush2.msra.mxu0 %v2617
      %2704 = vmatprep.subr.mxu0 0.0
      %2705 = vmatpush2.msra.mxu0 %v2616
      %2706 = vmatprep.subr.mxu0 0.0
      %2707 = vmatpush2.msra.mxu0 %v2615
      %2708 = vmatprep.subr.mxu0 0.0
      %2709 = vmatpush2.msra.mxu0 %v2614
      %2710 = vmatprep.subr.mxu0 0.0
      %2711 = vmatpush2.msra.mxu0 %v2613
      %2712 = vmatprep.subr.mxu0 0.0
      %2713 = vmatpush2.msra.mxu0 %v2612
      %2714 = vmatprep.subr.mxu0 0.0
      %2715 = vmatpush2.msra.mxu0 %v2611
      %2716 = vmatprep.subr.mxu0 0.0
      %2717 = vmatpush2.msra.mxu0 %v2610
      %2718 = vmatprep.subr.mxu0 0.0
      %2719 = vmatpush2.msra.mxu0 %v2609
      %2720 = vmatprep.subr.mxu0 0.0
      %2721 = vmatpush2.msra.mxu0 %v2608
      %2722 = vmatprep.subr.mxu0 0.0
      %2723 = vmatpush2.msra.mxu0 %v2607
      %2724 = vmatprep.subr.mxu0 0.0
      %2725 = vmatpush2.msra.mxu0 %v2606
      %2726 = vmatprep.subr.mxu0 0.0
      %2727 = vmatpush2.msra.mxu0 %v2605
      %2728 = vmatprep.subr.mxu0 0.0
      %2729 = vmatpush2.msra.mxu0 %v2604
      %2730 = vmatprep.subr.mxu0 0.0
      %2731 = vmatpush2.msra.mxu0 %v2603
      %2732 = vmatprep.mubr.f32.mxu0 %v2247
      %2733 = vmatmul.mubr.f32.gmra.mxu0 %v2163
      %v2734 = vpop.f32.mrf.mxu0
      %v2735 = vadd.f32 %v2642, %v2734
      %v2736 = vpop.f32.mrf.mxu0
      %2737 = vmatprep.mubr.f32.mxu0 %v2248
      %2738 = vmatmul.mubr.f32.gmra.mxu0 %v2164
      %v2739 = vpop.f32.mrf.mxu0
      %v2740 = vadd.f32 %v2642, %v2739
      %v2741 = vpop.f32.mrf.mxu0
      %2742 = vmatprep.mubr.f32.mxu0 %v2249
      %2743 = vmatmul.mubr.f32.gmra.mxu0 %v2165
      %v2744 = vpop.f32.mrf.mxu0
      %v2745 = vadd.f32 %v2642, %v2744
      %v2746 = vpop.f32.mrf.mxu0
      %2747 = vmatprep.mubr.f32.mxu0 %v2250
      %2748 = vmatmul.mubr.f32.gmra.mxu0 %v2166
      %v2749 = vpop.f32.mrf.mxu0
      %v2750 = vadd.f32 %v2642, %v2749
      %v2751 = vpop.f32.mrf.mxu0
      %2752 = vmatprep.mubr.f32.mxu0 %v2251
      %2753 = vmatmul.mubr.f32.gmra.mxu0 %v2167
      %v2754 = vpop.f32.mrf.mxu0
      %v2755 = vadd.f32 %v2642, %v2754
      %v2756 = vpop.f32.mrf.mxu0
      %2757 = vmatprep.mubr.f32.mxu0 %v2252
      %2758 = vmatmul.mubr.f32.gmra.mxu0 %v2168
      %v2759 = vpop.f32.mrf.mxu0
      %v2760 = vadd.f32 %v2642, %v2759
      %v2761 = vpop.f32.mrf.mxu0
      %2762 = vmatprep.mubr.f32.mxu0 %v2253
      %2763 = vmatmul.mubr.f32.gmra.mxu0 %v2169
      %v2764 = vpop.f32.mrf.mxu0
      %v2765 = vadd.f32 %v2642, %v2764
      %v2766 = vpop.f32.mrf.mxu0
      %2767 = vmatprep.mubr.f32.mxu0 %v2254
      %2768 = vmatmul.mubr.f32.gmra.mxu0 %v2170
      %v2769 = vpop.f32.mrf.mxu0
      %v2770 = vadd.f32 %v2642, %v2769
      %v2771 = vpop.f32.mrf.mxu0
      %2772 = vmatprep.mubr.f32.mxu0 %v2255
      %2773 = vmatmul.mubr.f32.gmra.mxu0 %v2171
      %v2774 = vpop.f32.mrf.mxu0
      %v2775 = vadd.f32 %v2642, %v2774
      %v2776 = vpop.f32.mrf.mxu0
      %2777 = vmatprep.mubr.f32.mxu0 %v2256
      %2778 = vmatmul.mubr.f32.gmra.mxu0 %v2172
      %v2779 = vpop.f32.mrf.mxu0
      %v2780 = vadd.f32 %v2642, %v2779
      %v2781 = vpop.f32.mrf.mxu0
      %2782 = vmatprep.mubr.f32.mxu0 %v2257
      %2783 = vmatmul.mubr.f32.gmra.mxu0 %v2173
      %v2784 = vpop.f32.mrf.mxu0
      %v2785 = vadd.f32 %v2642, %v2784
      %v2786 = vpop.f32.mrf.mxu0
      %2787 = vmatprep.mubr.f32.mxu0 %v2258
      %2788 = vmatmul.mubr.f32.gmra.mxu0 %v2174
      %v2789 = vpop.f32.mrf.mxu0
      %v2790 = vadd.f32 %v2642, %v2789
      %v2791 = vpop.f32.mrf.mxu0
      %2792 = vdwg.mxu0
      %2793 = vmatprep.subr.mxu0 0.0
      %2794 = vmatpush1.msra.mxu0 %v2634
      %2795 = vmatprep.subr.mxu0 0.0
      %2796 = vmatpush1.msra.mxu0 %v2633
      %2797 = vmatprep.subr.mxu0 0.0
      %2798 = vmatpush1.msra.mxu0 %v2632
      %2799 = vmatprep.subr.mxu0 0.0
      %2800 = vmatpush1.msra.mxu0 %v2631
      %2801 = vmatprep.subr.mxu0 0.0
      %2802 = vmatpush1.msra.mxu0 %v2630
      %2803 = vmatprep.subr.mxu0 0.0
      %2804 = vmatpush1.msra.mxu0 %v2629
      %2805 = vmatprep.subr.mxu0 0.0
      %2806 = vmatpush1.msra.mxu0 %v2628
      %2807 = vmatprep.subr.mxu0 0.0
      %2808 = vmatpush1.msra.mxu0 %v2627
      %2809 = vmatprep.subr.mxu0 0.0
      %2810 = vmatpush1.msra.mxu0 %v2626
      %2811 = vmatprep.subr.mxu0 0.0
      %2812 = vmatpush1.msra.mxu0 %v2625
      %2813 = vmatprep.subr.mxu0 0.0
      %2814 = vmatpush1.msra.mxu0 %v2624
      %2815 = vmatprep.subr.mxu0 0.0
      %2816 = vmatpush1.msra.mxu0 %v2623
      %2817 = vmatprep.subr.mxu0 0.0
      %2818 = vmatpush1.msra.mxu0 %v2622
      %2819 = vmatprep.subr.mxu0 0.0
      %2820 = vmatpush1.msra.mxu0 %v2621
      %2821 = vmatprep.subr.mxu0 0.0
      %2822 = vmatpush1.msra.mxu0 %v2620
      %2823 = vmatprep.subr.mxu0 0.0
      %2824 = vmatpush1.msra.mxu0 %v2619
      %2825 = vmatprep.subr.mxu0 0.0
      %2826 = vmatpush2.msra.mxu0 0.0
      %2827 = vmatprep.subr.mxu0 0.0
      %2828 = vmatpush2.msra.mxu0 0.0
      %2829 = vmatprep.subr.mxu0 0.0
      %2830 = vmatpush2.msra.mxu0 0.0
      %2831 = vmatprep.subr.mxu0 0.0
      %2832 = vmatpush2.msra.mxu0 0.0
      %2833 = vmatprep.subr.mxu0 0.0
      %2834 = vmatpush2.msra.mxu0 0.0
      %2835 = vmatprep.subr.mxu0 0.0
      %2836 = vmatpush2.msra.mxu0 0.0
      %2837 = vmatprep.subr.mxu0 0.0
      %2838 = vmatpush2.msra.mxu0 0.0
      %2839 = vmatprep.subr.mxu0 0.0
      %2840 = vmatpush2.msra.mxu0 0.0
      %2841 = vmatprep.subr.mxu0 0.0
      %2842 = vmatpush2.msra.mxu0 0.0
      %2843 = vmatprep.subr.mxu0 0.0
      %2844 = vmatpush2.msra.mxu0 0.0
      %2845 = vmatprep.subr.mxu0 0.0
      %2846 = vmatpush2.msra.mxu0 0.0
      %2847 = vmatprep.subr.mxu0 0.0
      %2848 = vmatpush2.msra.mxu0 0.0
      %2849 = vmatprep.subr.mxu0 0.0
      %2850 = vmatpush2.msra.mxu0 0.0
      %2851 = vmatprep.subr.mxu0 0.0
      %2852 = vmatpush2.msra.mxu0 0.0
      %2853 = vmatprep.subr.mxu0 0.0
      %2854 = vmatpush2.msra.mxu0 %v2636
      %2855 = vmatprep.subr.mxu0 0.0
      %2856 = vmatpush2.msra.mxu0 %v2635
      %2857 = vmatprep.mubr.f32.mxu0 %v2644
      %2858 = vmatmul.mubr.f32.gmra.mxu0 %v2527
      %v2859 = vpop.f32.mrf.mxu0
      %v2860 = vadd.f32 %v2735, %v2859
      %v2861 = vpop.f32.mrf.mxu0
      %2862 = vmatprep.mubr.f32.mxu0 %v2646
      %2863 = vmatmul.mubr.f32.gmra.mxu0 %v2532
      %v2864 = vpop.f32.mrf.mxu0
      %v2865 = vadd.f32 %v2740, %v2864
      %v2866 = vpop.f32.mrf.mxu0
      %2867 = vmatprep.mubr.f32.mxu0 %v2648
      %2868 = vmatmul.mubr.f32.gmra.mxu0 %v2536
      %v2869 = vpop.f32.mrf.mxu0
      %v2870 = vadd.f32 %v2745, %v2869
      %v2871 = vpop.f32.mrf.mxu0
      %2872 = vmatprep.mubr.f32.mxu0 %v2650
      %2873 = vmatmul.mubr.f32.gmra.mxu0 %v2540
      %v2874 = vpop.f32.mrf.mxu0
      %v2875 = vadd.f32 %v2750, %v2874
      %v2876 = vpop.f32.mrf.mxu0
      %2877 = vmatprep.mubr.f32.mxu0 %v2652
      %2878 = vmatmul.mubr.f32.gmra.mxu0 %v2544
      %v2879 = vpop.f32.mrf.mxu0
      %v2880 = vadd.f32 %v2755, %v2879
      %v2881 = vpop.f32.mrf.mxu0
      %2882 = vmatprep.mubr.f32.mxu0 %v2654
      %2883 = vmatmul.mubr.f32.gmra.mxu0 %v2548
      %v2884 = vpop.f32.mrf.mxu0
      %v2885 = vadd.f32 %v2760, %v2884
      %v2886 = vpop.f32.mrf.mxu0
      %2887 = vmatprep.mubr.f32.mxu0 %v2656
      %2888 = vmatmul.mubr.f32.gmra.mxu0 %v2552
      %v2889 = vpop.f32.mrf.mxu0
      %v2890 = vadd.f32 %v2765, %v2889
      %v2891 = vpop.f32.mrf.mxu0
      %2892 = vmatprep.mubr.f32.mxu0 %v2658
      %2893 = vmatmul.mubr.f32.gmra.mxu0 %v2556
      %v2894 = vpop.f32.mrf.mxu0
      %v2895 = vadd.f32 %v2770, %v2894
      %v2896 = vpop.f32.mrf.mxu0
      %2897 = vmatprep.mubr.f32.mxu0 %v2660
      %2898 = vmatmul.mubr.f32.gmra.mxu0 %v2560
      %v2899 = vpop.f32.mrf.mxu0
      %v2900 = vadd.f32 %v2775, %v2899
      %v2901 = vpop.f32.mrf.mxu0
      %2902 = vmatprep.mubr.f32.mxu0 %v2662
      %2903 = vmatmul.mubr.f32.gmra.mxu0 %v2564
      %v2904 = vpop.f32.mrf.mxu0
      %v2905 = vadd.f32 %v2780, %v2904
      %v2906 = vpop.f32.mrf.mxu0
      %2907 = vmatprep.mubr.f32.mxu0 %v2664
      %2908 = vmatmul.mubr.f32.gmra.mxu0 %v2568
      %v2909 = vpop.f32.mrf.mxu0
      %v2910 = vadd.f32 %v2785, %v2909
      %v2911 = vpop.f32.mrf.mxu0
      %2912 = vmatprep.mubr.f32.mxu0 %v2666
      %2913 = vmatmul.mubr.f32.gmra.mxu0 %v2572
      %v2914 = vpop.f32.mrf.mxu0
      %v2915 = vadd.f32 %v2790, %v2914
      %v2916 = vpop.f32.mrf.mxu0
      %2917 = vdwg.mxu0
      %v2918 = vmax.f32 %v2860, 0.0
      %v2919 = vmax.f32 %v2865, 0.0
      %v2920 = vmax.f32 %v2870, 0.0
      %v2921 = vmax.f32 %v2875, 0.0
      %v2922 = vmax.f32 %v2880, 0.0
      %v2923 = vmax.f32 %v2885, 0.0
      %v2924 = vmax.f32 %v2890, 0.0
      %v2925 = vmax.f32 %v2895, 0.0
      %v2926 = vmax.f32 %v2900, 0.0
      %v2927 = vmax.f32 %v2905, 0.0
      %v2928 = vmax.f32 %v2910, 0.0
      %v2929 = vmax.f32 %v2915, 0.0
      %v2931 = vrot.slane %v2918, 1
      %v2933 = vmax.f32 %v2918, %v2931
      %v2935 = vrot.slane %v2919, 1
      %v2937 = vmax.f32 %v2919, %v2935
      %v2939 = vrot.slane %v2937, 4
      %v2941 = vmax.f32 %v2933, %v2939
      %v2943 = vrot.slane %v2920, 1
      %v2945 = vmax.f32 %v2920, %v2943
      %v2947 = vrot.slane %v2945, 4
      %v2949 = vmax.f32 %v2933, %v2947
      %v2951 = vrot.slane %v2921, 1
      %v2953 = vmax.f32 %v2921, %v2951
      %v2955 = vrot.slane %v2922, 1
      %v2957 = vmax.f32 %v2922, %v2955
      %v2959 = vrot.slane %v2957, 4
      %v2961 = vmax.f32 %v2953, %v2959
      %v2963 = vrot.slane %v2923, 1
      %v2965 = vmax.f32 %v2923, %v2963
      %v2967 = vrot.slane %v2965, 4
      %v2969 = vmax.f32 %v2953, %v2967
      %v2971 = vrot.slane %v2924, 1
      %v2973 = vmax.f32 %v2924, %v2971
      %v2975 = vrot.slane %v2925, 1
      %v2977 = vmax.f32 %v2925, %v2975
      %v2979 = vrot.slane %v2977, 4
      %v2981 = vmax.f32 %v2973, %v2979
      %v2983 = vrot.slane %v2926, 1
      %v2985 = vmax.f32 %v2926, %v2983
      %v2987 = vrot.slane %v2985, 4
      %v2989 = vmax.f32 %v2973, %v2987
      %v2991 = vrot.slane %v2927, 1
      %v2993 = vmax.f32 %v2927, %v2991
      %v2995 = vrot.slane %v2928, 1
      %v2997 = vmax.f32 %v2928, %v2995
      %v2999 = vrot.slane %v2997, 4
      %v3001 = vmax.f32 %v2993, %v2999
      %v3003 = vrot.slane %v2929, 1
      %v3005 = vmax.f32 %v2929, %v3003
      %v3007 = vrot.slane %v3005, 4
      %v3009 = vmax.f32 %v2993, %v3007
      %v3011 = vrot.slane %v2941, 2
      %3012 = vrot.lane.b32.xlu0 %v3011, 16
      %v3013 = vpop.permute.xlu0 %3012
      %v3016 = vrot.slane %v2949, 4
      %3017 = vrot.lane.b32.xlu0 %v3016, 32
      %v3018 = vpop.permute.xlu0 %3017
      %v3020 = vrot.slane %v2949, 6
      %3021 = vrot.lane.b32.xlu0 %v3020, 48
      %v3022 = vpop.permute.xlu0 %3021
      %3025 = vrot.lane.b32.xlu0 %v2961, 64
      %v3026 = vpop.permute.xlu0 %3025
      %v3028 = vrot.slane %v2961, 2
      %3029 = vrot.lane.b32.xlu0 %v3028, 80
      %v3030 = vpop.permute.xlu0 %3029
      %v3033 = vrot.slane %v2969, 4
      %3034 = vrot.lane.b32.xlu0 %v3033, 96
      %v3035 = vpop.permute.xlu0 %3034
      %v3037 = vrot.slane %v2969, 6
      %3038 = vrot.lane.b32.xlu0 %v3037, 112
      %v3039 = vpop.permute.xlu0 %3038
      %v3042 = vrot.slane %v2981, 2
      %3043 = vrot.lane.b32.xlu0 %v3042, 16
      %v3044 = vpop.permute.xlu0 %3043
      %v3047 = vrot.slane %v2989, 4
      %3048 = vrot.lane.b32.xlu0 %v3047, 32
      %v3049 = vpop.permute.xlu0 %3048
      %v3051 = vrot.slane %v2989, 6
      %3052 = vrot.lane.b32.xlu0 %v3051, 48
      %v3053 = vpop.permute.xlu0 %3052
      %3056 = vrot.lane.b32.xlu0 %v3001, 64
      %v3057 = vpop.permute.xlu0 %3056
      %v3059 = vrot.slane %v3001, 2
      %3060 = vrot.lane.b32.xlu0 %v3059, 80
      %v3061 = vpop.permute.xlu0 %3060
      %v3064 = vrot.slane %v3009, 4
      %3065 = vrot.lane.b32.xlu0 %v3064, 96
      %v3066 = vpop.permute.xlu0 %3065
      %v3068 = vrot.slane %v3009, 6
      %3069 = vrot.lane.b32.xlu0 %v3068, 112
      %v3070 = vpop.permute.xlu0 %3069
      %v3072 = vsel %vm2085, %v2941, %v3013
      %v3073 = vsel %vm353, %v3072, %v3018
      %v3074 = vsel %vm2110, %v3073, %v3022
      %v3075 = vsel %vm2123, %v3074, %v3026
      %v3076 = vsel %vm2136, %v3075, %v3030
      %v3077 = vsel %vm2149, %v3076, %v3035
      %v3078 = vsel %vm2162, %v3077, %v3039
      %v3079 = vsel %vm2085, %v2981, %v3044
      %v3080 = vsel %vm353, %v3079, %v3049
      %v3081 = vsel %vm2110, %v3080, %v3053
      %v3082 = vsel %vm2123, %v3081, %v3057
      %v3083 = vsel %vm2136, %v3082, %v3061
      %v3084 = vsel %vm2149, %v3083, %v3066
      %v3085 = vsel %vm2162, %v3084, %v3070
      %v3086 = vld [vmem:[%s5] sm:$0xff]
      %v3087 = vld [vmem:[%s5 + $0x8] sm:$0xff]
      %v3088 = vld [vmem:[%s5 + $0x10] sm:$0xff]
      %v3089 = vld [vmem:[%s5 + $0x18] sm:$0xff]
      %v3090 = vld [vmem:[%s5 + $0x20] sm:$0xff]
      %v3091 = vld [vmem:[%s5 + $0x28] sm:$0xff]
      %v3092 = vld [vmem:[%s5 + $0x30] sm:$0xff]
      %v3093 = vld [vmem:[%s5 + $0x38] sm:$0xff]
      %v3094 = vld [vmem:[%s5 + $0x40] sm:$0xff]
      %v3095 = vld [vmem:[%s5 + $0x48] sm:$0xff]
      %v3096 = vld [vmem:[%s5 + $0x50] sm:$0xff]
      %v3097 = vld [vmem:[%s5 + $0x58] sm:$0xff]
      %v3098 = vld [vmem:[%s5 + $0x60] sm:$0xff]
      %v3099 = vld [vmem:[%s5 + $0x68] sm:$0xff]
      %v3100 = vld [vmem:[%s5 + $0x70] sm:$0xff]
      %v3101 = vld [vmem:[%s5 + $0x78] sm:$0xff]
      %v3102 = vld [vmem:[%s5 + $0x80] sm:$0xff]
      %v3103 = vld [vmem:[%s5 + $0x88] sm:$0xff]
      %v3104 = vld [vmem:[%s5 + $0x90] sm:$0xff]
      %v3105 = vld [vmem:[%s5 + $0x98] sm:$0xff]
      %v3106 = vld [vmem:[%s5 + $0xa0] sm:$0xff]
      %v3107 = vld [vmem:[%s5 + $0xa8] sm:$0xff]
      %v3108 = vld [vmem:[%s5 + $0xb0] sm:$0xff]
      %v3109 = vld [vmem:[%s5 + $0xb8] sm:$0xff]
      %v3110 = vld [vmem:[%s5 + $0xc0] sm:$0xff]
      %v3111 = vld [vmem:[%s5 + $0xc8] sm:$0xff]
      %v3112 = vld [vmem:[%s5 + $0xd0] sm:$0xff]
      %v3113 = vld [vmem:[%s5 + $0xd8] sm:$0xff]
      %v3114 = vld [vmem:[%s5 + $0xe0] sm:$0xff]
      %v3115 = vld [vmem:[%s5 + $0xe8] sm:$0xff]
      %v3116 = vld [vmem:[%s5 + $0xf0] sm:$0xff]
      %v3117 = vld [vmem:[%s5 + $0xf8] sm:$0xff]
      %v3118 = vld [vmem:[%s6] sm:$0x1]
      %3119 = vmatprep.subr.mxu0 0.0
      %3120 = vmatpush1.msra.mxu0 %v3101
      %3121 = vmatprep.subr.mxu0 0.0
      %3122 = vmatpush1.msra.mxu0 %v3100
      %3123 = vmatprep.subr.mxu0 0.0
      %3124 = vmatpush1.msra.mxu0 %v3099
      %3125 = vmatprep.subr.mxu0 0.0
      %3126 = vmatpush1.msra.mxu0 %v3098
      %3127 = vmatprep.subr.mxu0 0.0
      %3128 = vmatpush1.msra.mxu0 %v3097
      %3129 = vmatprep.subr.mxu0 0.0
      %3130 = vmatpush1.msra.mxu0 %v3096
      %3131 = vmatprep.subr.mxu0 0.0
      %3132 = vmatpush1.msra.mxu0 %v3095
      %3133 = vmatprep.subr.mxu0 0.0
      %3134 = vmatpush1.msra.mxu0 %v3094
      %3135 = vmatprep.subr.mxu0 0.0
      %3136 = vmatpush1.msra.mxu0 %v3093
      %3137 = vmatprep.subr.mxu0 0.0
      %3138 = vmatpush1.msra.mxu0 %v3092
      %3139 = vmatprep.subr.mxu0 0.0
      %3140 = vmatpush1.msra.mxu0 %v3091
      %3141 = vmatprep.subr.mxu0 0.0
      %3142 = vmatpush1.msra.mxu0 %v3090
      %3143 = vmatprep.subr.mxu0 0.0
      %3144 = vmatpush1.msra.mxu0 %v3089
      %3145 = vmatprep.subr.mxu0 0.0
      %3146 = vmatpush1.msra.mxu0 %v3088
      %3147 = vmatprep.subr.mxu0 0.0
      %3148 = vmatpush1.msra.mxu0 %v3087
      %3149 = vmatprep.subr.mxu0 0.0
      %3150 = vmatpush1.msra.mxu0 %v3086
      %3151 = vmatprep.subr.mxu0 0.0
      %3152 = vmatpush2.msra.mxu0 %v3117
      %3153 = vmatprep.subr.mxu0 0.0
      %3154 = vmatpush2.msra.mxu0 %v3116
      %3155 = vmatprep.subr.mxu0 0.0
      %3156 = vmatpush2.msra.mxu0 %v3115
      %3157 = vmatprep.subr.mxu0 0.0
      %3158 = vmatpush2.msra.mxu0 %v3114
      %3159 = vmatprep.subr.mxu0 0.0
      %3160 = vmatpush2.msra.mxu0 %v3113
      %3161 = vmatprep.subr.mxu0 0.0
      %3162 = vmatpush2.msra.mxu0 %v3112
      %3163 = vmatprep.subr.mxu0 0.0
      %3164 = vmatpush2.msra.mxu0 %v3111
      %3165 = vmatprep.subr.mxu0 0.0
      %3166 = vmatpush2.msra.mxu0 %v3110
      %3167 = vmatprep.subr.mxu0 0.0
      %3168 = vmatpush2.msra.mxu0 %v3109
      %3169 = vmatprep.subr.mxu0 0.0
      %3170 = vmatpush2.msra.mxu0 %v3108
      %3171 = vmatprep.subr.mxu0 0.0
      %3172 = vmatpush2.msra.mxu0 %v3107
      %3173 = vmatprep.subr.mxu0 0.0
      %3174 = vmatpush2.msra.mxu0 %v3106
      %3175 = vmatprep.subr.mxu0 0.0
      %3176 = vmatpush2.msra.mxu0 %v3105
      %3177 = vmatprep.subr.mxu0 0.0
      %3178 = vmatpush2.msra.mxu0 %v3104
      %3179 = vmatprep.subr.mxu0 0.0
      %3180 = vmatpush2.msra.mxu0 %v3103
      %3181 = vmatprep.subr.mxu0 0.0
      %3182 = vmatpush2.msra.mxu0 %v3102
      %3183 = vmatprep.mubr.f32.mxu0 %v3085
      %3184 = vmatmul.mubr.f32.gmra.mxu0 %v3078
      %v3185 = vpop.f32.mrf.mxu0
      %v3186 = vadd.f32 %v3118, %v3185
      %v3187 = vpop.f32.mrf.mxu0
      %3188 = vdwg.mxu0
      %v3189 = vmax.f32 %v3186, 0.0
      %v3190 = vld [vmem:[%s7] sm:$0xff]
      %v3191 = vld [vmem:[%s7 + $0x8] sm:$0xff]
      %v3192 = vld [vmem:[%s7 + $0x10] sm:$0xff]
      %v3193 = vld [vmem:[%s7 + $0x18] sm:$0xff]
      %v3194 = vld [vmem:[%s7 + $0x20] sm:$0xff]
      %v3195 = vld [vmem:[%s7 + $0x28] sm:$0xff]
      %v3196 = vld [vmem:[%s7 + $0x30] sm:$0xff]
      %v3197 = vld [vmem:[%s7 + $0x38] sm:$0xff]
      %v3198 = vld [vmem:[%s7 + $0x40] sm:$0xff]
      %v3199 = vld [vmem:[%s7 + $0x48] sm:$0xff]
      %v3200 = vld [vmem:[%s7 + $0x50] sm:$0xff]
      %v3201 = vld [vmem:[%s7 + $0x58] sm:$0xff]
      %v3202 = vld [vmem:[%s7 + $0x60] sm:$0xff]
      %v3203 = vld [vmem:[%s7 + $0x68] sm:$0xff]
      %v3204 = vld [vmem:[%s7 + $0x70] sm:$0xff]
      %v3205 = vld [vmem:[%s7 + $0x78] sm:$0xff]
      %v3206 = vld [vmem:[%s8] sm:$0x1]
      %3207 = vmatprep.subr.mxu0 0.0
      %3208 = vmatpush1.msra.mxu0 %v3205
      %3209 = vmatprep.subr.mxu0 0.0
      %3210 = vmatpush1.msra.mxu0 %v3204
      %3211 = vmatprep.subr.mxu0 0.0
      %3212 = vmatpush1.msra.mxu0 %v3203
      %3213 = vmatprep.subr.mxu0 0.0
      %3214 = vmatpush1.msra.mxu0 %v3202
      %3215 = vmatprep.subr.mxu0 0.0
      %3216 = vmatpush1.msra.mxu0 %v3201
      %3217 = vmatprep.subr.mxu0 0.0
      %3218 = vmatpush1.msra.mxu0 %v3200
      %3219 = vmatprep.subr.mxu0 0.0
      %3220 = vmatpush1.msra.mxu0 %v3199
      %3221 = vmatprep.subr.mxu0 0.0
      %3222 = vmatpush1.msra.mxu0 %v3198
      %3223 = vmatprep.subr.mxu0 0.0
      %3224 = vmatpush1.msra.mxu0 %v3197
      %3225 = vmatprep.subr.mxu0 0.0
      %3226 = vmatpush1.msra.mxu0 %v3196
      %3227 = vmatprep.subr.mxu0 0.0
      %3228 = vmatpush1.msra.mxu0 %v3195
      %3229 = vmatprep.subr.mxu0 0.0
      %3230 = vmatpush1.msra.mxu0 %v3194
      %3231 = vmatprep.subr.mxu0 0.0
      %3232 = vmatpush1.msra.mxu0 %v3193
      %3233 = vmatprep.subr.mxu0 0.0
      %3234 = vmatpush1.msra.mxu0 %v3192
      %3235 = vmatprep.subr.mxu0 0.0
      %3236 = vmatpush1.msra.mxu0 %v3191
      %3237 = vmatprep.subr.mxu0 0.0
      %3238 = vmatpush1.msra.mxu0 %v3190
      %3239 = vmatprep.subr.mxu0 0.0
      %3240 = vmatpush2.msra.mxu0 0.0
      %3241 = vmatprep.subr.mxu0 0.0
      %3242 = vmatpush2.msra.mxu0 0.0
      %3243 = vmatprep.subr.mxu0 0.0
      %3244 = vmatpush2.msra.mxu0 0.0
      %3245 = vmatprep.subr.mxu0 0.0
      %3246 = vmatpush2.msra.mxu0 0.0
      %3247 = vmatprep.subr.mxu0 0.0
      %3248 = vmatpush2.msra.mxu0 0.0
      %3249 = vmatprep.subr.mxu0 0.0
      %3250 = vmatpush2.msra.mxu0 0.0
      %3251 = vmatprep.subr.mxu0 0.0
      %3252 = vmatpush2.msra.mxu0 0.0
      %3253 = vmatprep.subr.mxu0 0.0
      %3254 = vmatpush2.msra.mxu0 0.0
      %3255 = vmatprep.subr.mxu0 0.0
      %3256 = vmatpush2.msra.mxu0 0.0
      %3257 = vmatprep.subr.mxu0 0.0
      %3258 = vmatpush2.msra.mxu0 0.0
      %3259 = vmatprep.subr.mxu0 0.0
      %3260 = vmatpush2.msra.mxu0 0.0
      %3261 = vmatprep.subr.mxu0 0.0
      %3262 = vmatpush2.msra.mxu0 0.0
      %3263 = vmatprep.subr.mxu0 0.0
      %3264 = vmatpush2.msra.mxu0 0.0
      %3265 = vmatprep.subr.mxu0 0.0
      %3266 = vmatpush2.msra.mxu0 0.0
      %3267 = vmatprep.subr.mxu0 0.0
      %3268 = vmatpush2.msra.mxu0 0.0
      %3269 = vmatprep.subr.mxu0 0.0
      %3270 = vmatpush2.msra.mxu0 0.0
      %3271 = vmatprep.mubr.f32.mxu0 0.0
      %3272 = vmatmul.mubr.f32.gmra.mxu0 %v3189
      %v3273 = vpop.f32.mrf.mxu0
      %v3274 = vadd.f32 %v3206, %v3273
      %v3275 = vpop.f32.mrf.mxu0
      %3276 = vdwg.mxu0
      %v3277 = vmax.f32 %v3274, 0.0
      %v3278 = vlaneseq
      %v3279 = vshrl.u32 %v3278, 7
      %v3280 = vsub.s32 0, %v3279
      %v3281 = vrot.slane %v3277, %v3280
      %3282 = vst [vmem:[%s330] sm:$0xff] %v3281
      %p3283 = scmp.lt.s32.totalorder %s20, 1
      %s3284 = scalar_select %p3283, %s20, 1
      %s3285 = smul.addr %s3284, 8
      %s3286 = scalar_lea.vmem %s9, %s3285
      // Predicated region
      $region57: #{mnist_net_forward.1} parent=55 // pred_check
        %p3287 = pneg %p232
      $region58: #{mnist_net_forward.1} parent=55 // pred_check_branch
        %3289 = sbr.rel (%p3287) target = $region60
      $region59: #{mnist_net_forward.1} parent=55 // pred_region
        _
      $region60: #{mnist_net_forward.1} parent=55 // pred_fallthru
        _
    $region56: #{mnist_net_forward.1} parent=5 // pred_fallthru
      _
    %p3290 = scmp.le.s32.totalorder 2, %s15
    // Predicated region
    $region61: #{mnist_net_forward.1} parent=5 // pred_check
      %p3291 = pneg %p3290
    $region62: #{mnist_net_forward.1} parent=5 // pred_check_branch
      %3293 = sbr.rel (%p3291) target = $region64
    $region63: #{mnist_net_forward.1} parent=5 // pred_region
      %s3294 = ssub.s32 %s15, 2
      // Predicated region
      $region65: #{mnist_net_forward.1} parent=63 // pred_check
        %p3295 = pneg %p238
      $region66: #{mnist_net_forward.1} parent=63 // pred_check_branch
        %3297 = sbr.rel (%p3295) target = $region68
      $region67: #{mnist_net_forward.1} parent=63 // pred_region
        %p3298 = scmp.lt.s32.totalorder %s21, 1
        %s3299 = scalar_select %p3298, %s21, 1
        %s3300 = smul.addr %s3299, 8
        %s3301 = scalar_lea.vmem %s9, %s3300
      $region68: #{mnist_net_forward.1} parent=63 // pred_fallthru
        _
    $region64: #{mnist_net_forward.1} parent=5 // pred_fallthru
      _
  $region6: #{mnist_net_forward.1} parent=0 // loop_footer
    %s19 = sadd.s32 1, %s15
  $region7: #{mnist_net_forward.1} parent=0 // loop_footer_branch
    %14 = sbr.rel target = $region3
  $region8: #{mnist_net_forward.1} parent=0 // loop_exit
    _

</llo_original>
